<compile_context>
chip_gen: v7x
topology: tpu7x:2x2x1
jax: 0.10.0
libtpu: 0.0.40
codegen_flags: <defaults>
</compile_context>

<pallas_src>
import functools

import jax
import jax.numpy as jnp
from jax import lax
from jax.experimental import pallas as pl
from jax.experimental.pallas import tpu as pltpu

EPS = 1e-5


def _round_up(x, m):
    return (x + m - 1) // m * m


@functools.partial(jax.jit, static_argnames=("stride",))
def conv_bn_relu(x_nchw, w, b, gamma, beta, stride=1):
    """Forward pass of ConvBNReLU. x_nchw: (N, Cin, H, W) f32 -> (N, Cout, Ho, Wo) f32."""
    N, Cin, H, W = x_nchw.shape
    Cout = w.shape[0]
    Ho = (H - 1) // stride + 1          # kernel 3, padding 1
    Wo = (W - 1) // stride + 1

    Wp = W + 2                          # padded image width
    L = H * Wp                          # accumulator rows: p = i*(W+2) + j covers all (i, j)
    L_blk = _round_up(L, 8)
    # Rows per flattened padded image; must hold the padded image and allow the largest
    # shifted slab (base_max = 2*(W+2)+2) of length L_blk.
    R_img = _round_up(max((H + 2) * Wp, 2 * Wp + 2 + L_blk), 8)

    # ---- glue: NCHW -> NHWC, zero-pad spatially, flatten to (N*R_img, Cin) bf16 ----
    x = jnp.transpose(x_nchw, (0, 2, 3, 1)).astype(jnp.bfloat16)
    xp = jnp.pad(x, ((0, 0), (1, 1), (1, 1), (0, 0)))               # (N, H+2, W+2, Cin)
    xf = xp.reshape(N, (H + 2) * Wp, Cin)
    xf = jnp.pad(xf, ((0, 0), (0, R_img - (H + 2) * Wp), (0, 0)))
    xf = xf.reshape(N * R_img, Cin)

    # PyTorch weight (Cout, Cin, kh, kw) -> (9, Cin, Cout), matching base = kh*(W+2)+kw.
    w9 = jnp.transpose(w, (2, 3, 1, 0)).reshape(9, Cin, Cout).astype(jnp.bfloat16)

    # Conv bias is a no-op under training-mode BN (it only shifts the batch mean).
    del b

    # Row-validity mask over accumulator positions p = i*(W+2) + j:
    # keep j < W (drop the 2 wrap-around columns), stride-selected (i, j), and p < L.
    p = jnp.arange(L_blk)
    i_idx, j_idx = p // Wp, p % Wp
    mask = ((j_idx < W) & (p < L)
            & (i_idx % stride == 0) & (j_idx % stride == 0)).astype(jnp.float32)
    mask = mask.reshape(L_blk, 1)

    # ---- kernel 1: in-kernel im2col (9 shifted dots) + per-image partial BN stats ----
    def conv_stats_kernel(xf_ref, w_ref, m_ref, y_ref, s_ref, sq_ref, x32_ref, acc_ref):
        # Stage the padded image as f32 once (aligned full-block load); the 9 shifted
        # slabs below then slice an unpacked f32 buffer (plain sublane shifts, no bf16
        # repacking at odd row offsets).
        x32_ref[...] = xf_ref[...].astype(jnp.float32)
        acc_ref[...] = jnp.zeros_like(acc_ref)
        for kh in range(3):
            for kw in range(3):
                base = kh * Wp + kw          # static offset; all slabs alias one block
                lhs = x32_ref[base:base + L_blk, :].astype(jnp.bfloat16)
                acc_ref[...] += jnp.dot(lhs, w_ref[kh * 3 + kw],
                                        preferred_element_type=jnp.float32)
        # Zero the wrap-around / pad rows so stats and the stored y only carry real
        # output pixels; pad rows then contribute exact zeros to the batch sums.
        acc = acc_ref[...] * m_ref[...]
        y_ref[...] = acc.astype(y_ref.dtype)
        s_ref[...] = jnp.sum(acc, axis=0, keepdims=True)[None]
        sq_ref[...] = jnp.sum(acc * acc, axis=0, keepdims=True)[None]

    # Explicit VMEM budget: double-buffered I/O blocks + staging/accumulator scratch.
    est = (2 * (R_img * Cin * 2 + 9 * Cin * Cout * 2 + L_blk * 4
                + L_blk * Cout * 2 + 2 * Cout * 4)
           + R_img * Cin * 4 + L_blk * Cout * 4)
    vmem_limit = int(min(48 * 2 ** 20, max(16 * 2 ** 20, 4 * est)))

    y, s, sq = pl.pallas_call(
        conv_stats_kernel,
        out_shape=(jax.ShapeDtypeStruct((N * L_blk, Cout), jnp.bfloat16),
                   jax.ShapeDtypeStruct((N, 1, Cout), jnp.float32),
                   jax.ShapeDtypeStruct((N, 1, Cout), jnp.float32)),
        grid=(N,),
        in_specs=[pl.BlockSpec((R_img, Cin), lambda n: (n, 0)),
                  pl.BlockSpec((9, Cin, Cout), lambda n: (0, 0, 0)),
                  pl.BlockSpec((L_blk, 1), lambda n: (0, 0))],
        out_specs=(pl.BlockSpec((L_blk, Cout), lambda n: (n, 0)),
                   pl.BlockSpec((1, 1, Cout), lambda n: (n, 0, 0)),
                   pl.BlockSpec((1, 1, Cout), lambda n: (n, 0, 0))),
        scratch_shapes=[pltpu.VMEM((R_img, Cin), jnp.float32),
                        pltpu.VMEM((L_blk, Cout), jnp.float32)],
        compiler_params=pltpu.CompilerParams(
            dimension_semantics=("parallel",),
            vmem_limit_bytes=vmem_limit),
    )(xf, w9, mask)

    # ---- tiny wrapper math: reduce partial stats, precompute BN scale/shift once ----
    cnt = N * Ho * Wo
    mean = jnp.sum(s, axis=(0, 1)) / cnt
    var = jnp.maximum(jnp.sum(sq, axis=(0, 1)) / cnt - mean * mean, 0.0)   # biased (BN train)
    scale = (gamma.astype(jnp.float32) * lax.rsqrt(var + EPS)).reshape(1, Cout)
    shift = (beta.astype(jnp.float32) - mean * scale[0]).reshape(1, Cout)

    # ---- kernel 2: fused normalize + ReLU, written back in place (aliased with y) ----
    def scale_shift_relu_kernel(y_ref, sc_ref, sh_ref, o_ref):
        o_ref[...] = jnp.maximum(
            y_ref[...].astype(jnp.float32) * sc_ref[...] + sh_ref[...], 0.0
        ).astype(o_ref.dtype)

    out = pl.pallas_call(
        scale_shift_relu_kernel,
        out_shape=jax.ShapeDtypeStruct((N * L_blk, Cout), jnp.bfloat16),
        grid=(N,),
        in_specs=[pl.BlockSpec((L_blk, Cout), lambda n: (n, 0)),
                  pl.BlockSpec((1, Cout), lambda n: (0, 0)),
                  pl.BlockSpec((1, Cout), lambda n: (0, 0))],
        out_specs=pl.BlockSpec((L_blk, Cout), lambda n: (n, 0)),
        input_output_aliases={0: 0},
        compiler_params=pltpu.CompilerParams(
            dimension_semantics=("parallel",),
            vmem_limit_bytes=vmem_limit),
    )(y, scale, shift)

    # glue (fused by XLA): crop wrap-around columns / pad rows, apply stride, NCHW, f32.
    out = out.reshape(N, L_blk, Cout)[:, :L, :].reshape(N, H, Wp, Cout)[:, :, :W, :]
    out = out[:, ::stride, ::stride, :]
    return jnp.transpose(out, (0, 3, 1, 2)).astype(jnp.float32)


def _reference(x, w, b, gamma, beta, stride=1):
    y = lax.conv_general_dilated(x, w, (stride, stride), ((1, 1), (1, 1)),
                                 dimension_numbers=("NCHW", "OIHW", "NCHW"))
    y = y + b.reshape(1, -1, 1, 1)
    mean = y.mean(axis=(0, 2, 3), keepdims=True)
    var = y.var(axis=(0, 2, 3), keepdims=True)      # biased, as BN uses for normalization
    y_hat = (y - mean) / jnp.sqrt(var + EPS)
    return jnp.maximum(y_hat * gamma.reshape(1, -1, 1, 1) + beta.reshape(1, -1, 1, 1), 0.0)


if __name__ == "__main__":
    key = jax.random.PRNGKey(0)
    k_x, k_w, k_b = jax.random.split(key, 3)

    N, Cin, H, W = 2, 4, 16, 16
    Cout = 8

    x = jax.random.normal(k_x, (N, Cin, H, W), dtype=jnp.float32)
    # Shapes match nn.Conv2d(4, 8, 3, padding=1) / nn.BatchNorm2d(8) defaults.
    w = 0.1 * jax.random.normal(k_w, (Cout, Cin, 3, 3), dtype=jnp.float32)
    b = 0.1 * jax.random.normal(k_b, (Cout,), dtype=jnp.float32)
    gamma = jnp.ones((Cout,), dtype=jnp.float32)    # BatchNorm2d default weight
    beta = jnp.zeros((Cout,), dtype=jnp.float32)    # BatchNorm2d default bias

    out = conv_bn_relu(x, w, b, gamma, beta, stride=1)
    out = jax.block_until_ready(out)

    ref = _reference(x, w, b, gamma, beta, stride=1)
    assert out.shape == (N, Cout, H, W), out.shape
    # Tolerance reflects bf16 conv operands / bf16 y storage (f32 accumulation & stats).
    assert jnp.allclose(out, ref, atol=2e-2, rtol=2e-2), float(jnp.max(jnp.abs(out - ref)))

    print("KERNEL_OK")
</pallas_src>

<mosaic_0001>
module attributes {stable_mosaic.version = 11 : i64} {
  func.func @conv_stats_kernel(%arg0: i32, %arg1: memref<328x4xbf16, #tpu.memory_space<vmem>>, %arg2: memref<9x4x8xbf16, #tpu.memory_space<vmem>>, %arg3: memref<288x1xf32, #tpu.memory_space<vmem>>, %arg4: memref<288x8xbf16, #tpu.memory_space<vmem>>, %arg5: memref<1x1x8xf32, #tpu.memory_space<vmem>>, %arg6: memref<1x1x8xf32, #tpu.memory_space<vmem>>, %arg7: memref<328x4xf32, #tpu.memory_space<vmem>>, %arg8: memref<288x8xf32, #tpu.memory_space<vmem>>) attributes {dimension_semantics = [#tpu.dimension_semantics<parallel>], iteration_bounds = array<i64: 2>, scalar_prefetch = 0 : i64, scratch_operands = 2 : i64, tpu.core_type = #tpu.core_type<tc>, window_params = [{transform_indices = @transform_0, window_bounds = array<i64: 328, 4>}, {pipeline_mode = #tpu.pipeline_mode<synchronous>, transform_indices = @transform_1, window_bounds = array<i64: 9, 4, 8>}, {pipeline_mode = #tpu.pipeline_mode<synchronous>, transform_indices = @transform_2, window_bounds = array<i64: 288, 1>}, {transform_indices = @transform_3, window_bounds = array<i64: 288, 8>}, {transform_indices = @transform_4, window_bounds = array<i64: 1, 1, 8>}, {transform_indices = @transform_5, window_bounds = array<i64: 1, 1, 8>}]} {
    %c0 = arith.constant 0 : index
    %c0_0 = arith.constant 0 : index
    %0 = vector.load %arg1[%c0, %c0_0] : memref<328x4xbf16, #tpu.memory_space<vmem>>, vector<328x4xbf16>
    %1 = arith.extf %0 : vector<328x4xbf16> to vector<328x4xf32>
    %c0_1 = arith.constant 0 : index
    %c0_2 = arith.constant 0 : index
    %2 = vector.load %arg7[%c0_1, %c0_2] : memref<328x4xf32, #tpu.memory_space<vmem>>, vector<328x4xf32>
    tpu.vector_store %arg7[%c0_1, %c0_2], %1 {strides = array<i32>} : memref<328x4xf32, #tpu.memory_space<vmem>>, vector<328x4xf32>,
    %cst = arith.constant 0.000000e+00 : f32
    %3 = vector.broadcast %cst : f32 to vector<288x8xf32>
    %c0_3 = arith.constant 0 : index
    %c0_4 = arith.constant 0 : index
    %4 = vector.load %arg8[%c0_3, %c0_4] : memref<288x8xf32, #tpu.memory_space<vmem>>, vector<288x8xf32>
    tpu.vector_store %arg8[%c0_3, %c0_4], %3 {strides = array<i32>} : memref<288x8xf32, #tpu.memory_space<vmem>>, vector<288x8xf32>,
    %c0_5 = arith.constant 0 : index
    %c0_6 = arith.constant 0 : index
    %5 = vector.load %arg7[%c0_5, %c0_6] : memref<328x4xf32, #tpu.memory_space<vmem>>, vector<288x4xf32>
    %6 = arith.truncf %5 : vector<288x4xf32> to vector<288x4xbf16>
    %c0_7 = arith.constant 0 : index
    %c0_8 = arith.constant 0 : index
    %7 = vector.load %arg8[%c0_7, %c0_8] : memref<288x8xf32, #tpu.memory_space<vmem>>, vector<288x8xf32>
    %c0_9 = arith.constant 0 : index
    %c0_10 = arith.constant 0 : index
    %c0_11 = arith.constant 0 : index
    %8 = vector.load %arg2[%c0_9, %c0_10, %c0_11] : memref<9x4x8xbf16, #tpu.memory_space<vmem>>, vector<1x4x8xbf16>
    %9 = vector.shape_cast %8 : vector<1x4x8xbf16> to vector<4x8xbf16>
    %cst_12 = arith.constant dense<0.000000e+00> : vector<288x8xf32>
    %10 = tpu.matmul %6, %9, %cst_12 {dimension_numbers = #tpu.dot_dimension_numbers<[1], [0], [0], [1], [0, 0, 1, 1], [], []>} : vector<288x4xbf16>, vector<4x8xbf16>, vector<288x8xf32> -> vector<288x8xf32>
    %11 = arith.addf %7, %10 : vector<288x8xf32>
    %c0_13 = arith.constant 0 : index
    %c0_14 = arith.constant 0 : index
    %12 = vector.load %arg8[%c0_13, %c0_14] : memref<288x8xf32, #tpu.memory_space<vmem>>, vector<288x8xf32>
    tpu.vector_store %arg8[%c0_13, %c0_14], %11 {strides = array<i32>} : memref<288x8xf32, #tpu.memory_space<vmem>>, vector<288x8xf32>,
    %c1 = arith.constant 1 : index
    %c0_15 = arith.constant 0 : index
    %13 = vector.load %arg7[%c1, %c0_15] : memref<328x4xf32, #tpu.memory_space<vmem>>, vector<288x4xf32>
    %14 = arith.truncf %13 : vector<288x4xf32> to vector<288x4xbf16>
    %c0_16 = arith.constant 0 : index
    %c0_17 = arith.constant 0 : index
    %15 = vector.load %arg8[%c0_16, %c0_17] : memref<288x8xf32, #tpu.memory_space<vmem>>, vector<288x8xf32>
    %c1_18 = arith.constant 1 : index
    %c0_19 = arith.constant 0 : index
    %c0_20 = arith.constant 0 : index
    %16 = vector.load %arg2[%c1_18, %c0_19, %c0_20] : memref<9x4x8xbf16, #tpu.memory_space<vmem>>, vector<1x4x8xbf16>
    %17 = vector.shape_cast %16 : vector<1x4x8xbf16> to vector<4x8xbf16>
    %cst_21 = arith.constant dense<0.000000e+00> : vector<288x8xf32>
    %18 = tpu.matmul %14, %17, %cst_21 {dimension_numbers = #tpu.dot_dimension_numbers<[1], [0], [0], [1], [0, 0, 1, 1], [], []>} : vector<288x4xbf16>, vector<4x8xbf16>, vector<288x8xf32> -> vector<288x8xf32>
    %19 = arith.addf %15, %18 : vector<288x8xf32>
    %c0_22 = arith.constant 0 : index
    %c0_23 = arith.constant 0 : index
    %20 = vector.load %arg8[%c0_22, %c0_23] : memref<288x8xf32, #tpu.memory_space<vmem>>, vector<288x8xf32>
    tpu.vector_store %arg8[%c0_22, %c0_23], %19 {strides = array<i32>} : memref<288x8xf32, #tpu.memory_space<vmem>>, vector<288x8xf32>,
    %c2 = arith.constant 2 : index
    %c0_24 = arith.constant 0 : index
    %21 = vector.load %arg7[%c2, %c0_24] : memref<328x4xf32, #tpu.memory_space<vmem>>, vector<288x4xf32>
    %22 = arith.truncf %21 : vector<288x4xf32> to vector<288x4xbf16>
    %c0_25 = arith.constant 0 : index
    %c0_26 = arith.constant 0 : index
    %23 = vector.load %arg8[%c0_25, %c0_26] : memref<288x8xf32, #tpu.memory_space<vmem>>, vector<288x8xf32>
    %c2_27 = arith.constant 2 : index
    %c0_28 = arith.constant 0 : index
    %c0_29 = arith.constant 0 : index
    %24 = vector.load %arg2[%c2_27, %c0_28, %c0_29] : memref<9x4x8xbf16, #tpu.memory_space<vmem>>, vector<1x4x8xbf16>
    %25 = vector.shape_cast %24 : vector<1x4x8xbf16> to vector<4x8xbf16>
    %cst_30 = arith.constant dense<0.000000e+00> : vector<288x8xf32>
    %26 = tpu.matmul %22, %25, %cst_30 {dimension_numbers = #tpu.dot_dimension_numbers<[1], [0], [0], [1], [0, 0, 1, 1], [], []>} : vector<288x4xbf16>, vector<4x8xbf16>, vector<288x8xf32> -> vector<288x8xf32>
    %27 = arith.addf %23, %26 : vector<288x8xf32>
    %c0_31 = arith.constant 0 : index
    %c0_32 = arith.constant 0 : index
    %28 = vector.load %arg8[%c0_31, %c0_32] : memref<288x8xf32, #tpu.memory_space<vmem>>, vector<288x8xf32>
    tpu.vector_store %arg8[%c0_31, %c0_32], %27 {strides = array<i32>} : memref<288x8xf32, #tpu.memory_space<vmem>>, vector<288x8xf32>,
    %c18 = arith.constant 18 : index
    %c0_33 = arith.constant 0 : index
    %29 = vector.load %arg7[%c18, %c0_33] : memref<328x4xf32, #tpu.memory_space<vmem>>, vector<288x4xf32>
    %30 = arith.truncf %29 : vector<288x4xf32> to vector<288x4xbf16>
    %c0_34 = arith.constant 0 : index
    %c0_35 = arith.constant 0 : index
    %31 = vector.load %arg8[%c0_34, %c0_35] : memref<288x8xf32, #tpu.memory_space<vmem>>, vector<288x8xf32>
    %c3 = arith.constant 3 : index
    %c0_36 = arith.constant 0 : index
    %c0_37 = arith.constant 0 : index
    %32 = vector.load %arg2[%c3, %c0_36, %c0_37] : memref<9x4x8xbf16, #tpu.memory_space<vmem>>, vector<1x4x8xbf16>
    %33 = vector.shape_cast %32 : vector<1x4x8xbf16> to vector<4x8xbf16>
    %cst_38 = arith.constant dense<0.000000e+00> : vector<288x8xf32>
    %34 = tpu.matmul %30, %33, %cst_38 {dimension_numbers = #tpu.dot_dimension_numbers<[1], [0], [0], [1], [0, 0, 1, 1], [], []>} : vector<288x4xbf16>, vector<4x8xbf16>, vector<288x8xf32> -> vector<288x8xf32>
    %35 = arith.addf %31, %34 : vector<288x8xf32>
    %c0_39 = arith.constant 0 : index
    %c0_40 = arith.constant 0 : index
    %36 = vector.load %arg8[%c0_39, %c0_40] : memref<288x8xf32, #tpu.memory_space<vmem>>, vector<288x8xf32>
    tpu.vector_store %arg8[%c0_39, %c0_40], %35 {strides = array<i32>} : memref<288x8xf32, #tpu.memory_space<vmem>>, vector<288x8xf32>,
    %c19 = arith.constant 19 : index
    %c0_41 = arith.constant 0 : index
    %37 = vector.load %arg7[%c19, %c0_41] : memref<328x4xf32, #tpu.memory_space<vmem>>, vector<288x4xf32>
    %38 = arith.truncf %37 : vector<288x4xf32> to vector<288x4xbf16>
    %c0_42 = arith.constant 0 : index
    %c0_43 = arith.constant 0 : index
    %39 = vector.load %arg8[%c0_42, %c0_43] : memref<288x8xf32, #tpu.memory_space<vmem>>, vector<288x8xf32>
    %c4 = arith.constant 4 : index
    %c0_44 = arith.constant 0 : index
    %c0_45 = arith.constant 0 : index
    %40 = vector.load %arg2[%c4, %c0_44, %c0_45] : memref<9x4x8xbf16, #tpu.memory_space<vmem>>, vector<1x4x8xbf16>
    %41 = vector.shape_cast %40 : vector<1x4x8xbf16> to vector<4x8xbf16>
    %cst_46 = arith.constant dense<0.000000e+00> : vector<288x8xf32>
    %42 = tpu.matmul %38, %41, %cst_46 {dimension_numbers = #tpu.dot_dimension_numbers<[1], [0], [0], [1], [0, 0, 1, 1], [], []>} : vector<288x4xbf16>, vector<4x8xbf16>, vector<288x8xf32> -> vector<288x8xf32>
    %43 = arith.addf %39, %42 : vector<288x8xf32>
    %c0_47 = arith.constant 0 : index
    %c0_48 = arith.constant 0 : index
    %44 = vector.load %arg8[%c0_47, %c0_48] : memref<288x8xf32, #tpu.memory_space<vmem>>, vector<288x8xf32>
    tpu.vector_store %arg8[%c0_47, %c0_48], %43 {strides = array<i32>} : memref<288x8xf32, #tpu.memory_space<vmem>>, vector<288x8xf32>,
    %c20 = arith.constant 20 : index
    %c0_49 = arith.constant 0 : index
    %45 = vector.load %arg7[%c20, %c0_49] : memref<328x4xf32, #tpu.memory_space<vmem>>, vector<288x4xf32>
    %46 = arith.truncf %45 : vector<288x4xf32> to vector<288x4xbf16>
    %c0_50 = arith.constant 0 : index
    %c0_51 = arith.constant 0 : index
    %47 = vector.load %arg8[%c0_50, %c0_51] : memref<288x8xf32, #tpu.memory_space<vmem>>, vector<288x8xf32>
    %c5 = arith.constant 5 : index
    %c0_52 = arith.constant 0 : index
    %c0_53 = arith.constant 0 : index
    %48 = vector.load %arg2[%c5, %c0_52, %c0_53] : memref<9x4x8xbf16, #tpu.memory_space<vmem>>, vector<1x4x8xbf16>
    %49 = vector.shape_cast %48 : vector<1x4x8xbf16> to vector<4x8xbf16>
    %cst_54 = arith.constant dense<0.000000e+00> : vector<288x8xf32>
    %50 = tpu.matmul %46, %49, %cst_54 {dimension_numbers = #tpu.dot_dimension_numbers<[1], [0], [0], [1], [0, 0, 1, 1], [], []>} : vector<288x4xbf16>, vector<4x8xbf16>, vector<288x8xf32> -> vector<288x8xf32>
    %51 = arith.addf %47, %50 : vector<288x8xf32>
    %c0_55 = arith.constant 0 : index
    %c0_56 = arith.constant 0 : index
    %52 = vector.load %arg8[%c0_55, %c0_56] : memref<288x8xf32, #tpu.memory_space<vmem>>, vector<288x8xf32>
    tpu.vector_store %arg8[%c0_55, %c0_56], %51 {strides = array<i32>} : memref<288x8xf32, #tpu.memory_space<vmem>>, vector<288x8xf32>,
    %c36 = arith.constant 36 : index
    %c0_57 = arith.constant 0 : index
    %53 = vector.load %arg7[%c36, %c0_57] : memref<328x4xf32, #tpu.memory_space<vmem>>, vector<288x4xf32>
    %54 = arith.truncf %53 : vector<288x4xf32> to vector<288x4xbf16>
    %c0_58 = arith.constant 0 : index
    %c0_59 = arith.constant 0 : index
    %55 = vector.load %arg8[%c0_58, %c0_59] : memref<288x8xf32, #tpu.memory_space<vmem>>, vector<288x8xf32>
    %c6 = arith.constant 6 : index
    %c0_60 = arith.constant 0 : index
    %c0_61 = arith.constant 0 : index
    %56 = vector.load %arg2[%c6, %c0_60, %c0_61] : memref<9x4x8xbf16, #tpu.memory_space<vmem>>, vector<1x4x8xbf16>
    %57 = vector.shape_cast %56 : vector<1x4x8xbf16> to vector<4x8xbf16>
    %cst_62 = arith.constant dense<0.000000e+00> : vector<288x8xf32>
    %58 = tpu.matmul %54, %57, %cst_62 {dimension_numbers = #tpu.dot_dimension_numbers<[1], [0], [0], [1], [0, 0, 1, 1], [], []>} : vector<288x4xbf16>, vector<4x8xbf16>, vector<288x8xf32> -> vector<288x8xf32>
    %59 = arith.addf %55, %58 : vector<288x8xf32>
    %c0_63 = arith.constant 0 : index
    %c0_64 = arith.constant 0 : index
    %60 = vector.load %arg8[%c0_63, %c0_64] : memref<288x8xf32, #tpu.memory_space<vmem>>, vector<288x8xf32>
    tpu.vector_store %arg8[%c0_63, %c0_64], %59 {strides = array<i32>} : memref<288x8xf32, #tpu.memory_space<vmem>>, vector<288x8xf32>,
    %c37 = arith.constant 37 : index
    %c0_65 = arith.constant 0 : index
    %61 = vector.load %arg7[%c37, %c0_65] : memref<328x4xf32, #tpu.memory_space<vmem>>, vector<288x4xf32>
    %62 = arith.truncf %61 : vector<288x4xf32> to vector<288x4xbf16>
    %c0_66 = arith.constant 0 : index
    %c0_67 = arith.constant 0 : index
    %63 = vector.load %arg8[%c0_66, %c0_67] : memref<288x8xf32, #tpu.memory_space<vmem>>, vector<288x8xf32>
    %c7 = arith.constant 7 : index
    %c0_68 = arith.constant 0 : index
    %c0_69 = arith.constant 0 : index
    %64 = vector.load %arg2[%c7, %c0_68, %c0_69] : memref<9x4x8xbf16, #tpu.memory_space<vmem>>, vector<1x4x8xbf16>
    %65 = vector.shape_cast %64 : vector<1x4x8xbf16> to vector<4x8xbf16>
    %cst_70 = arith.constant dense<0.000000e+00> : vector<288x8xf32>
    %66 = tpu.matmul %62, %65, %cst_70 {dimension_numbers = #tpu.dot_dimension_numbers<[1], [0], [0], [1], [0, 0, 1, 1], [], []>} : vector<288x4xbf16>, vector<4x8xbf16>, vector<288x8xf32> -> vector<288x8xf32>
    %67 = arith.addf %63, %66 : vector<288x8xf32>
    %c0_71 = arith.constant 0 : index
    %c0_72 = arith.constant 0 : index
    %68 = vector.load %arg8[%c0_71, %c0_72] : memref<288x8xf32, #tpu.memory_space<vmem>>, vector<288x8xf32>
    tpu.vector_store %arg8[%c0_71, %c0_72], %67 {strides = array<i32>} : memref<288x8xf32, #tpu.memory_space<vmem>>, vector<288x8xf32>,
    %c38 = arith.constant 38 : index
    %c0_73 = arith.constant 0 : index
    %69 = vector.load %arg7[%c38, %c0_73] : memref<328x4xf32, #tpu.memory_space<vmem>>, vector<288x4xf32>
    %70 = arith.truncf %69 : vector<288x4xf32> to vector<288x4xbf16>
    %c0_74 = arith.constant 0 : index
    %c0_75 = arith.constant 0 : index
    %71 = vector.load %arg8[%c0_74, %c0_75] : memref<288x8xf32, #tpu.memory_space<vmem>>, vector<288x8xf32>
    %c8 = arith.constant 8 : index
    %c0_76 = arith.constant 0 : index
    %c0_77 = arith.constant 0 : index
    %72 = vector.load %arg2[%c8, %c0_76, %c0_77] : memref<9x4x8xbf16, #tpu.memory_space<vmem>>, vector<1x4x8xbf16>
    %73 = vector.shape_cast %72 : vector<1x4x8xbf16> to vector<4x8xbf16>
    %cst_78 = arith.constant dense<0.000000e+00> : vector<288x8xf32>
    %74 = tpu.matmul %70, %73, %cst_78 {dimension_numbers = #tpu.dot_dimension_numbers<[1], [0], [0], [1], [0, 0, 1, 1], [], []>} : vector<288x4xbf16>, vector<4x8xbf16>, vector<288x8xf32> -> vector<288x8xf32>
    %75 = arith.addf %71, %74 : vector<288x8xf32>
    %c0_79 = arith.constant 0 : index
    %c0_80 = arith.constant 0 : index
    %76 = vector.load %arg8[%c0_79, %c0_80] : memref<288x8xf32, #tpu.memory_space<vmem>>, vector<288x8xf32>
    tpu.vector_store %arg8[%c0_79, %c0_80], %75 {strides = array<i32>} : memref<288x8xf32, #tpu.memory_space<vmem>>, vector<288x8xf32>,
    %c0_81 = arith.constant 0 : index
    %c0_82 = arith.constant 0 : index
    %77 = vector.load %arg8[%c0_81, %c0_82] : memref<288x8xf32, #tpu.memory_space<vmem>>, vector<288x8xf32>
    %c0_83 = arith.constant 0 : index
    %c0_84 = arith.constant 0 : index
    %78 = vector.load %arg3[%c0_83, %c0_84] : memref<288x1xf32, #tpu.memory_space<vmem>>, vector<288x1xf32>
    %79 = vector.broadcast %78 : vector<288x1xf32> to vector<288x8xf32>
    %80 = arith.mulf %77, %79 : vector<288x8xf32>
    %81 = arith.truncf %80 : vector<288x8xf32> to vector<288x8xbf16>
    %c0_85 = arith.constant 0 : index
    %c0_86 = arith.constant 0 : index
    %82 = vector.load %arg4[%c0_85, %c0_86] : memref<288x8xbf16, #tpu.memory_space<vmem>>, vector<288x8xbf16>
    tpu.vector_store %arg4[%c0_85, %c0_86], %81 {strides = array<i32>} : memref<288x8xbf16, #tpu.memory_space<vmem>>, vector<288x8xbf16>,
    %cst_87 = arith.constant dense<0.000000e+00> : vector<8xf32>
    %83 = vector.multi_reduction <add>, %80, %cst_87 [0] : vector<288x8xf32> to vector<8xf32>
    %84 = vector.shape_cast %83 : vector<8xf32> to vector<1x8xf32>
    %85 = vector.shape_cast %84 : vector<1x8xf32> to vector<1x1x8xf32>
    %c0_88 = arith.constant 0 : index
    %c0_89 = arith.constant 0 : index
    %c0_90 = arith.constant 0 : index
    %86 = vector.load %arg5[%c0_88, %c0_89, %c0_90] : memref<1x1x8xf32, #tpu.memory_space<vmem>>, vector<1x1x8xf32>
    tpu.vector_store %arg5[%c0_88, %c0_89, %c0_90], %85 {strides = array<i32>} : memref<1x1x8xf32, #tpu.memory_space<vmem>>, vector<1x1x8xf32>,
    %87 = arith.mulf %80, %80 : vector<288x8xf32>
    %cst_91 = arith.constant dense<0.000000e+00> : vector<8xf32>
    %88 = vector.multi_reduction <add>, %87, %cst_91 [0] : vector<288x8xf32> to vector<8xf32>
    %89 = vector.shape_cast %88 : vector<8xf32> to vector<1x8xf32>
    %90 = vector.shape_cast %89 : vector<1x8xf32> to vector<1x1x8xf32>
    %c0_92 = arith.constant 0 : index
    %c0_93 = arith.constant 0 : index
    %c0_94 = arith.constant 0 : index
    %91 = vector.load %arg6[%c0_92, %c0_93, %c0_94] : memref<1x1x8xf32, #tpu.memory_space<vmem>>, vector<1x1x8xf32>
    tpu.vector_store %arg6[%c0_92, %c0_93, %c0_94], %90 {strides = array<i32>} : memref<1x1x8xf32, #tpu.memory_space<vmem>>, vector<1x1x8xf32>,
    return
  }
  func.func @transform_0(%arg0: i32) -> (i32, i32) {
    %c0_i32 = arith.constant 0 : i32
    %c0_i32_0 = arith.constant 0 : i32
    return %arg0, %c0_i32 : i32, i32
  }
  func.func @transform_1(%arg0: i32) -> (i32, i32, i32) {
    %c0_i32 = arith.constant 0 : i32
    %c0_i32_0 = arith.constant 0 : i32
    %c0_i32_1 = arith.constant 0 : i32
    %c0_i32_2 = arith.constant 0 : i32
    return %c0_i32, %c0_i32_0, %c0_i32_1 : i32, i32, i32
  }
  func.func @transform_2(%arg0: i32) -> (i32, i32) {
    %c0_i32 = arith.constant 0 : i32
    %c0_i32_0 = arith.constant 0 : i32
    %c0_i32_1 = arith.constant 0 : i32
    return %c0_i32, %c0_i32_0 : i32, i32
  }
  func.func @transform_3(%arg0: i32) -> (i32, i32) {
    %c0_i32 = arith.constant 0 : i32
    %c0_i32_0 = arith.constant 0 : i32
    return %arg0, %c0_i32 : i32, i32
  }
  func.func @transform_4(%arg0: i32) -> (i32, i32, i32) {
    %c0_i32 = arith.constant 0 : i32
    %c0_i32_0 = arith.constant 0 : i32
    %c0_i32_1 = arith.constant 0 : i32
    return %arg0, %c0_i32, %c0_i32_0 : i32, i32, i32
  }
  func.func @transform_5(%arg0: i32) -> (i32, i32, i32) {
    %c0_i32 = arith.constant 0 : i32
    %c0_i32_0 = arith.constant 0 : i32
    %c0_i32_1 = arith.constant 0 : i32
    return %arg0, %c0_i32, %c0_i32_0 : i32, i32, i32
  }
}

module attributes {stable_mosaic.version = 11 : i64} {
  func.func @scale_shift_relu_kernel(%arg0: i32, %arg1: memref<288x8xbf16, #tpu.memory_space<vmem>>, %arg2: memref<1x8xf32, #tpu.memory_space<vmem>>, %arg3: memref<1x8xf32, #tpu.memory_space<vmem>>, %arg4: memref<288x8xbf16, #tpu.memory_space<vmem>>) attributes {dimension_semantics = [#tpu.dimension_semantics<parallel>], iteration_bounds = array<i64: 2>, scalar_prefetch = 0 : i64, scratch_operands = 0 : i64, tpu.core_type = #tpu.core_type<tc>, window_params = [{transform_indices = @transform_0, window_bounds = array<i64: 288, 8>}, {pipeline_mode = #tpu.pipeline_mode<synchronous>, transform_indices = @transform_1, window_bounds = array<i64: 1, 8>}, {pipeline_mode = #tpu.pipeline_mode<synchronous>, transform_indices = @transform_2, window_bounds = array<i64: 1, 8>}, {transform_indices = @transform_3, window_bounds = array<i64: 288, 8>}]} {
    %c0 = arith.constant 0 : index
    %c0_0 = arith.constant 0 : index
    %0 = vector.load %arg1[%c0, %c0_0] : memref<288x8xbf16, #tpu.memory_space<vmem>>, vector<288x8xbf16>
    %1 = arith.extf %0 : vector<288x8xbf16> to vector<288x8xf32>
    %c0_1 = arith.constant 0 : index
    %c0_2 = arith.constant 0 : index
    %2 = vector.load %arg2[%c0_1, %c0_2] : memref<1x8xf32, #tpu.memory_space<vmem>>, vector<1x8xf32>
    %3 = vector.broadcast %2 : vector<1x8xf32> to vector<288x8xf32>
    %4 = arith.mulf %1, %3 : vector<288x8xf32>
    %c0_3 = arith.constant 0 : index
    %c0_4 = arith.constant 0 : index
    %5 = vector.load %arg3[%c0_3, %c0_4] : memref<1x8xf32, #tpu.memory_space<vmem>>, vector<1x8xf32>
    %6 = vector.broadcast %5 : vector<1x8xf32> to vector<288x8xf32>
    %7 = arith.addf %4, %6 : vector<288x8xf32>
    %cst = arith.constant 0.000000e+00 : f32
    %8 = vector.broadcast %cst : f32 to vector<288x8xf32>
    %9 = arith.maximumf %7, %8 : vector<288x8xf32>
    %10 = arith.truncf %9 : vector<288x8xf32> to vector<288x8xbf16>
    %c0_5 = arith.constant 0 : index
    %c0_6 = arith.constant 0 : index
    %11 = vector.load %arg4[%c0_5, %c0_6] : memref<288x8xbf16, #tpu.memory_space<vmem>>, vector<288x8xbf16>
    tpu.vector_store %arg4[%c0_5, %c0_6], %10 {strides = array<i32>} : memref<288x8xbf16, #tpu.memory_space<vmem>>, vector<288x8xbf16>,
    return
  }
  func.func @transform_0(%arg0: i32) -> (i32, i32) {
    %c0_i32 = arith.constant 0 : i32
    %c0_i32_0 = arith.constant 0 : i32
    return %arg0, %c0_i32 : i32, i32
  }
  func.func @transform_1(%arg0: i32) -> (i32, i32) {
    %c0_i32 = arith.constant 0 : i32
    %c0_i32_0 = arith.constant 0 : i32
    %c0_i32_1 = arith.constant 0 : i32
    return %c0_i32, %c0_i32_0 : i32, i32
  }
  func.func @transform_2(%arg0: i32) -> (i32, i32) {
    %c0_i32 = arith.constant 0 : i32
    %c0_i32_0 = arith.constant 0 : i32
    %c0_i32_1 = arith.constant 0 : i32
    return %c0_i32, %c0_i32_0 : i32, i32
  }
  func.func @transform_3(%arg0: i32) -> (i32, i32) {
    %c0_i32 = arith.constant 0 : i32
    %c0_i32_0 = arith.constant 0 : i32
    return %arg0, %c0_i32 : i32, i32
  }
}

</mosaic_0001>

<llo_original>
// kernel: conv_bn_relu.3
$region0: #{conv_bn_relu.3}
  #allocation0 [shape = 'u32[]', space=smem, size = 0x4, offset = 0x4, fixed_abs, tag = 'smem constant byte address 0x4 - core index']
  #allocation1 [shape = 'u32[144,128]{1,0:T(1,128)}', space=vmem, size = 0x12000, scoped, tag = 'internal scratch']
  %s0 = inlined_call_operand.vmem [shape: bf16[576,8], index: 0, kind: input, shape index: {}, may-alias: {0,3}]
  %s1 = inlined_call_operand.vmem [shape: f32[1,8], index: 1, kind: input, shape index: {}]
  %s2 = inlined_call_operand.vmem [shape: f32[1,8], index: 2, kind: input, shape index: {}]
  %s3 = inlined_call_operand.vmem [shape: bf16[576,8], index: 3, kind: output, shape index: {}, may-alias: {0,3}]
  %s4 = sld [smem:[#allocation0]]
  $region45: #{conv_bn_relu.3} parent=0
    _
  %s6 = ssub.s32 1, %s4
  %s7 = scalar_select 0, %s6, %s4
  loop: start=0, step=1, limit=4
  $region2: #{conv_bn_relu.3} parent=0 // loop_pre_header
    _
  $region3: #{conv_bn_relu.3} parent=0 // loop_header
    %s9 = sphi 0, %s13
    %p10 = scmp.ge.s32.totalorder %s9, 4
    %s19 = sphi 0, %s21
    %s22 = sphi 0, %s19
    %s23 = sphi 0, %s22
    %s39 = sphi 0, %s23
    %s43 = sphi 0, %s43
    %s45 = sphi 0, %s43
    %s46 = sphi 0, %s45
    %s60 = sphi 0, %s46
    %s64 = sphi 0, %s64
    %s66 = sphi 0, %s64
    %s67 = sphi 0, %s66
    %s81 = sphi 0, %s67
    %s87 = sphi 0, %s89
    %s90 = sphi 0, %s87
    %s91 = sphi 0, %s90
    %s107 = sphi 0, %s91
  $region4: #{conv_bn_relu.3} parent=0 // loop_header_branch
    %12 = sbr.rel (%p10) target = $region8
  $region5: #{conv_bn_relu.3} parent=0 // loop_body
    %s14 = ssub.s32 %s9, 1
    %s15 = ssub.s32 %s9, 2
    %s16 = sadd.s32 %s9, 1
    %s17 = ssub.s32 %s9, %s16
    %p18 = scmp.eq.s32.totalorder %s17, 0
    %s20 = sadd.s32 %s19, 1
    %s21 = scalar_select %p18, %s19, %s20
    %p24 = pneg %p18
    %p25 = scmp.eq.s32.totalorder %s9, 1
    %p26 = por %p24, %p25
    %p27 = scmp.ne.s32.totalorder %s19, %s22
    %p28 = scmp.eq.s32.totalorder %s9, 0
    %p29 = por %p27, %p28
    %p30 = scmp.ne.s32.totalorder %s19, %s22
    %p31 = scmp.eq.s32.totalorder %s14, 1
    %p32 = por %p30, %p31
    %p33 = scmp.ne.s32.totalorder %s22, %s23
    %p34 = scmp.eq.s32.totalorder %s14, 0
    %p35 = por %p33, %p34
    %p36 = scmp.ne.s32.totalorder %s22, %s23
    %p37 = scmp.eq.s32.totalorder %s15, 1
    %p38 = por %p36, %p37
    %p40 = scmp.ne.s32.totalorder %s23, %s39
    %p41 = scmp.eq.s32.totalorder %s15, 0
    %p42 = por %p40, %p41
    %s44 = sadd.s32 %s43, 1
    %p47 = scmp.eq.s32.totalorder %s9, 1
    %p48 = scmp.ne.s32.totalorder %s43, %s45
    %p49 = scmp.eq.s32.totalorder %s9, 0
    %p50 = por %p48, %p49
    %p51 = scmp.ne.s32.totalorder %s43, %s45
    %p52 = scmp.eq.s32.totalorder %s14, 1
    %p53 = por %p51, %p52
    %p54 = scmp.ne.s32.totalorder %s45, %s46
    %p55 = scmp.eq.s32.totalorder %s14, 0
    %p56 = por %p54, %p55
    %p57 = scmp.ne.s32.totalorder %s45, %s46
    %p58 = scmp.eq.s32.totalorder %s15, 1
    %p59 = por %p57, %p58
    %p61 = scmp.ne.s32.totalorder %s46, %s60
    %p62 = scmp.eq.s32.totalorder %s15, 0
    %p63 = por %p61, %p62
    %s65 = sadd.s32 %s64, 1
    %p68 = scmp.eq.s32.totalorder %s9, 1
    %p69 = scmp.ne.s32.totalorder %s64, %s66
    %p70 = scmp.eq.s32.totalorder %s9, 0
    %p71 = por %p69, %p70
    %p72 = scmp.ne.s32.totalorder %s64, %s66
    %p73 = scmp.eq.s32.totalorder %s14, 1
    %p74 = por %p72, %p73
    %p75 = scmp.ne.s32.totalorder %s66, %s67
    %p76 = scmp.eq.s32.totalorder %s14, 0
    %p77 = por %p75, %p76
    %p78 = scmp.ne.s32.totalorder %s66, %s67
    %p79 = scmp.eq.s32.totalorder %s15, 1
    %p80 = por %p78, %p79
    %p82 = scmp.ne.s32.totalorder %s67, %s81
    %p83 = scmp.eq.s32.totalorder %s15, 0
    %p84 = por %p82, %p83
    %s85 = ssub.s32 %s9, %s16
    %p86 = scmp.eq.s32.totalorder %s85, 0
    %s88 = sadd.s32 %s87, 1
    %s89 = scalar_select %p86, %s87, %s88
    %p92 = pneg %p86
    %p93 = scmp.eq.s32.totalorder %s9, 1
    %p94 = por %p92, %p93
    %p95 = scmp.ne.s32.totalorder %s87, %s90
    %p96 = scmp.eq.s32.totalorder %s9, 0
    %p97 = por %p95, %p96
    %p98 = scmp.ne.s32.totalorder %s87, %s90
    %p99 = scmp.eq.s32.totalorder %s14, 1
    %p100 = por %p98, %p99
    %p101 = scmp.ne.s32.totalorder %s90, %s91
    %p102 = scmp.eq.s32.totalorder %s14, 0
    %p103 = por %p101, %p102
    %p104 = scmp.ne.s32.totalorder %s90, %s91
    %p105 = scmp.eq.s32.totalorder %s15, 1
    %p106 = por %p104, %p105
    %p108 = scmp.ne.s32.totalorder %s91, %s107
    %p109 = scmp.eq.s32.totalorder %s15, 0
    %p110 = por %p108, %p109
    %p111 = scmp.le.s32.totalorder 1, %s9
    %p112 = scmp.lt.s32.totalorder %s9, 3
    %p113 = pnand %p111, %p112
    %p114 = pneg %p113
    // Predicated region
    $region9: #{conv_bn_relu.3} parent=5 // pred_check
      _
    $region10: #{conv_bn_relu.3} parent=5 // pred_check_branch
      %116 = sbr.rel (%p113) target = $region12
    $region11: #{conv_bn_relu.3} parent=5 // pred_region
      %s117 = ssub.s32 %s9, 1
      // Predicated region
      $region13: #{conv_bn_relu.3} parent=11 // pred_check
        %p118 = pneg %p56
      $region14: #{conv_bn_relu.3} parent=11 // pred_check_branch
        %120 = sbr.rel (%p118) target = $region16
      $region15: #{conv_bn_relu.3} parent=11 // pred_region
        _
      $region16: #{conv_bn_relu.3} parent=11 // pred_fallthru
        _
      // Predicated region
      $region17: #{conv_bn_relu.3} parent=11 // pred_check
        %p121 = pneg %p77
      $region18: #{conv_bn_relu.3} parent=11 // pred_check_branch
        %123 = sbr.rel (%p121) target = $region20
      $region19: #{conv_bn_relu.3} parent=11 // pred_region
        _
      $region20: #{conv_bn_relu.3} parent=11 // pred_fallthru
        _
    $region12: #{conv_bn_relu.3} parent=5 // pred_fallthru
      _
    %p124 = scmp.lt.s32.totalorder %s9, 2
    // Predicated region
    $region21: #{conv_bn_relu.3} parent=5 // pred_check
      %p125 = pneg %p124
    $region22: #{conv_bn_relu.3} parent=5 // pred_check_branch
      %127 = sbr.rel (%p125) target = $region24
    $region23: #{conv_bn_relu.3} parent=5 // pred_region
      // Predicated region
      $region25: #{conv_bn_relu.3} parent=23 // pred_check
        %p128 = pneg %p29
      $region26: #{conv_bn_relu.3} parent=23 // pred_check_branch
        %130 = sbr.rel (%p128) target = $region28
      $region27: #{conv_bn_relu.3} parent=23 // pred_region
        %s131 = smul.u32 36, %s9
        %p132 = scmp.lt.s32.totalorder %s131, 71
        %s133 = scalar_select %p132, %s131, 71
        %s134 = smul.addr %s133, 4
        %s135 = scalar_lea.vmem %s0, %s134
        %s136 = smul.u32 36, %s9
      $region28: #{conv_bn_relu.3} parent=23 // pred_fallthru
        _
    $region24: #{conv_bn_relu.3} parent=5 // pred_fallthru
      _
    %p137 = scmp.le.s32.totalorder 1, %s9
    %p138 = scmp.lt.s32.totalorder %s9, 3
    %p139 = pnand %p137, %p138
    %p140 = pneg %p139
    // Predicated region
    $region29: #{conv_bn_relu.3} parent=5 // pred_check
      _
    $region30: #{conv_bn_relu.3} parent=5 // pred_check_branch
      %142 = sbr.rel (%p139) target = $region32
    $region31: #{conv_bn_relu.3} parent=5 // pred_region
      %s143 = ssub.s32 %s9, 1
      %s144 = smul.u32 36, %s14
      %p145 = scmp.lt.s32.totalorder %s144, 71
      %s146 = scalar_select %p145, %s144, 71
      %s147 = smul.addr %s146, 4
      %s148 = scalar_lea.vmem %s0, %s147
      %p149 = pneg %p35
      %p150 = pneg %p32
      %p151 = pneg %p56
      %p152 = pneg %p53
      %p153 = pneg %p77
      %p154 = pneg %p74
      %p155 = pneg %p103
      %p156 = pneg %p100
      %s157 = smul.u32 36, %s14
      %p158 = scmp.lt.s32.totalorder %s157, 71
      %s159 = scalar_select %p158, %s157, 71
      %s160 = smul.addr %s159, 4
      %s161 = scalar_lea.vmem %s3, %s160
      %s162 = smul.u32 36, %s14
      %p163 = scmp.lt.s32.totalorder %s162, 71
      %s164 = scalar_select %p163, %s162, 71
      %s165 = smul.addr %s164, 4
      %s166 = scalar_lea.vmem %s0, %s165
      %s167 = smul.u32 36, %s14
      %s168 = smul.u32 36, %s14
      %p169 = scmp.lt.s32.totalorder %s168, 71
      %s170 = scalar_select %p169, %s168, 71
      %s171 = smul.addr %s170, 4
      %s172 = scalar_lea.vmem %s3, %s171
      %s173 = smul.u32 36, %s14
      %v174 = vld [vmem:[%s166] sm:$0xf]
      %v175 = vld [vmem:[%s166 + $0x4] sm:$0xf]
      %v176 = vld [vmem:[%s166 + $0x8] sm:$0xf]
      %v177 = vld [vmem:[%s166 + $0xc] sm:$0xf]
      %v178 = vld [vmem:[%s166 + $0x10] sm:$0xf]
      %v179 = vld [vmem:[%s166 + $0x14] sm:$0xf]
      %v180 = vld [vmem:[%s166 + $0x18] sm:$0xf]
      %v181 = vld [vmem:[%s166 + $0x1c] sm:$0xf]
      %v182 = vld [vmem:[%s166 + $0x20] sm:$0xf]
      %v183 = vld [vmem:[%s166 + $0x24] sm:$0xf]
      %v184 = vld [vmem:[%s166 + $0x28] sm:$0xf]
      %v185 = vld [vmem:[%s166 + $0x2c] sm:$0xf]
      %v186 = vld [vmem:[%s166 + $0x30] sm:$0xf]
      %v187 = vld [vmem:[%s166 + $0x34] sm:$0xf]
      %v188 = vld [vmem:[%s166 + $0x38] sm:$0xf]
      %v189 = vld [vmem:[%s166 + $0x3c] sm:$0xf]
      %v190 = vld [vmem:[%s166 + $0x40] sm:$0xf]
      %v191 = vld [vmem:[%s166 + $0x44] sm:$0xf]
      %v192 = vld [vmem:[%s166 + $0x48] sm:$0xf]
      %v193 = vld [vmem:[%s166 + $0x4c] sm:$0xf]
      %v194 = vld [vmem:[%s166 + $0x50] sm:$0xf]
      %v195 = vld [vmem:[%s166 + $0x54] sm:$0xf]
      %v196 = vld [vmem:[%s166 + $0x58] sm:$0xf]
      %v197 = vld [vmem:[%s166 + $0x5c] sm:$0xf]
      %v198 = vld [vmem:[%s166 + $0x60] sm:$0xf]
      %v199 = vld [vmem:[%s166 + $0x64] sm:$0xf]
      %v200 = vld [vmem:[%s166 + $0x68] sm:$0xf]
      %v201 = vld [vmem:[%s166 + $0x6c] sm:$0xf]
      %v202 = vld [vmem:[%s166 + $0x70] sm:$0xf]
      %v203 = vld [vmem:[%s166 + $0x74] sm:$0xf]
      %v204 = vld [vmem:[%s166 + $0x78] sm:$0xf]
      %v205 = vld [vmem:[%s166 + $0x7c] sm:$0xf]
      %v206 = vld [vmem:[%s166 + $0x80] sm:$0xf]
      %v207 = vld [vmem:[%s166 + $0x84] sm:$0xf]
      %v208 = vld [vmem:[%s166 + $0x88] sm:$0xf]
      %v209 = vld [vmem:[%s166 + $0x8c] sm:$0xf]
      %v210 = vunpack.c.l.bf16 %v174
      %v211 = vunpack.c.l.bf16 %v175
      %v212 = vunpack.c.l.bf16 %v176
      %v213 = vunpack.c.l.bf16 %v177
      %v214 = vunpack.c.l.bf16 %v178
      %v215 = vunpack.c.l.bf16 %v179
      %v216 = vunpack.c.l.bf16 %v180
      %v217 = vunpack.c.l.bf16 %v181
      %v218 = vunpack.c.l.bf16 %v182
      %v219 = vunpack.c.l.bf16 %v183
      %v220 = vunpack.c.l.bf16 %v184
      %v221 = vunpack.c.l.bf16 %v185
      %v222 = vunpack.c.l.bf16 %v186
      %v223 = vunpack.c.l.bf16 %v187
      %v224 = vunpack.c.l.bf16 %v188
      %v225 = vunpack.c.l.bf16 %v189
      %v226 = vunpack.c.l.bf16 %v190
      %v227 = vunpack.c.l.bf16 %v191
      %v228 = vunpack.c.l.bf16 %v192
      %v229 = vunpack.c.l.bf16 %v193
      %v230 = vunpack.c.l.bf16 %v194
      %v231 = vunpack.c.l.bf16 %v195
      %v232 = vunpack.c.l.bf16 %v196
      %v233 = vunpack.c.l.bf16 %v197
      %v234 = vunpack.c.l.bf16 %v198
      %v235 = vunpack.c.l.bf16 %v199
      %v236 = vunpack.c.l.bf16 %v200
      %v237 = vunpack.c.l.bf16 %v201
      %v238 = vunpack.c.l.bf16 %v202
      %v239 = vunpack.c.l.bf16 %v203
      %v240 = vunpack.c.l.bf16 %v204
      %v241 = vunpack.c.l.bf16 %v205
      %v242 = vunpack.c.l.bf16 %v206
      %v243 = vunpack.c.l.bf16 %v207
      %v244 = vunpack.c.l.bf16 %v208
      %v245 = vunpack.c.l.bf16 %v209
      %v246 = vld [vmem:[%s1] sm:$0x1]
      %v248 = vlaneseq
      %v249 = vshrl.u32 %v248, 7
      %v250 = vsub.s32 0, %v249
      %v251 = vrot.slane %v246, %v250
      %v253 = vmul.f32 %v210, %v251
      %v254 = vmul.f32 %v211, %v251
      %v255 = vmul.f32 %v212, %v251
      %v256 = vmul.f32 %v213, %v251
      %v257 = vmul.f32 %v214, %v251
      %v258 = vmul.f32 %v215, %v251
      %v259 = vmul.f32 %v216, %v251
      %v260 = vmul.f32 %v217, %v251
      %v261 = vmul.f32 %v218, %v251
      %v262 = vmul.f32 %v219, %v251
      %v263 = vmul.f32 %v220, %v251
      %v264 = vmul.f32 %v221, %v251
      %v265 = vmul.f32 %v222, %v251
      %v266 = vmul.f32 %v223, %v251
      %v267 = vmul.f32 %v224, %v251
      %v268 = vmul.f32 %v225, %v251
      %v269 = vmul.f32 %v226, %v251
      %v270 = vmul.f32 %v227, %v251
      %v271 = vmul.f32 %v228, %v251
      %v272 = vmul.f32 %v229, %v251
      %v273 = vmul.f32 %v230, %v251
      %v274 = vmul.f32 %v231, %v251
      %v275 = vmul.f32 %v232, %v251
      %v276 = vmul.f32 %v233, %v251
      %v277 = vmul.f32 %v234, %v251
      %v278 = vmul.f32 %v235, %v251
      %v279 = vmul.f32 %v236, %v251
      %v280 = vmul.f32 %v237, %v251
      %v281 = vmul.f32 %v238, %v251
      %v282 = vmul.f32 %v239, %v251
      %v283 = vmul.f32 %v240, %v251
      %v284 = vmul.f32 %v241, %v251
      %v285 = vmul.f32 %v242, %v251
      %v286 = vmul.f32 %v243, %v251
      %v287 = vmul.f32 %v244, %v251
      %v288 = vmul.f32 %v245, %v251
      %v289 = vld [vmem:[%s2] sm:$0x1]
      %v291 = vlaneseq
      %v292 = vshrl.u32 %v291, 7
      %v293 = vsub.s32 0, %v292
      %v294 = vrot.slane %v289, %v293
      %v296 = vadd.f32 %v253, %v294
      %v297 = vadd.f32 %v254, %v294
      %v298 = vadd.f32 %v255, %v294
      %v299 = vadd.f32 %v256, %v294
      %v300 = vadd.f32 %v257, %v294
      %v301 = vadd.f32 %v258, %v294
      %v302 = vadd.f32 %v259, %v294
      %v303 = vadd.f32 %v260, %v294
      %v304 = vadd.f32 %v261, %v294
      %v305 = vadd.f32 %v262, %v294
      %v306 = vadd.f32 %v263, %v294
      %v307 = vadd.f32 %v264, %v294
      %v308 = vadd.f32 %v265, %v294
      %v309 = vadd.f32 %v266, %v294
      %v310 = vadd.f32 %v267, %v294
      %v311 = vadd.f32 %v268, %v294
      %v312 = vadd.f32 %v269, %v294
      %v313 = vadd.f32 %v270, %v294
      %v314 = vadd.f32 %v271, %v294
      %v315 = vadd.f32 %v272, %v294
      %v316 = vadd.f32 %v273, %v294
      %v317 = vadd.f32 %v274, %v294
      %v318 = vadd.f32 %v275, %v294
      %v319 = vadd.f32 %v276, %v294
      %v320 = vadd.f32 %v277, %v294
      %v321 = vadd.f32 %v278, %v294
      %v322 = vadd.f32 %v279, %v294
      %v323 = vadd.f32 %v280, %v294
      %v324 = vadd.f32 %v281, %v294
      %v325 = vadd.f32 %v282, %v294
      %v326 = vadd.f32 %v283, %v294
      %v327 = vadd.f32 %v284, %v294
      %v328 = vadd.f32 %v285, %v294
      %v329 = vadd.f32 %v286, %v294
      %v330 = vadd.f32 %v287, %v294
      %v331 = vadd.f32 %v288, %v294
      %v332 = vmax.f32 %v296, 0.0
      %v333 = vmax.f32 %v297, 0.0
      %v334 = vmax.f32 %v298, 0.0
      %v335 = vmax.f32 %v299, 0.0
      %v336 = vmax.f32 %v300, 0.0
      %v337 = vmax.f32 %v301, 0.0
      %v338 = vmax.f32 %v302, 0.0
      %v339 = vmax.f32 %v303, 0.0
      %v340 = vmax.f32 %v304, 0.0
      %v341 = vmax.f32 %v305, 0.0
      %v342 = vmax.f32 %v306, 0.0
      %v343 = vmax.f32 %v307, 0.0
      %v344 = vmax.f32 %v308, 0.0
      %v345 = vmax.f32 %v309, 0.0
      %v346 = vmax.f32 %v310, 0.0
      %v347 = vmax.f32 %v311, 0.0
      %v348 = vmax.f32 %v312, 0.0
      %v349 = vmax.f32 %v313, 0.0
      %v350 = vmax.f32 %v314, 0.0
      %v351 = vmax.f32 %v315, 0.0
      %v352 = vmax.f32 %v316, 0.0
      %v353 = vmax.f32 %v317, 0.0
      %v354 = vmax.f32 %v318, 0.0
      %v355 = vmax.f32 %v319, 0.0
      %v356 = vmax.f32 %v320, 0.0
      %v357 = vmax.f32 %v321, 0.0
      %v358 = vmax.f32 %v322, 0.0
      %v359 = vmax.f32 %v323, 0.0
      %v360 = vmax.f32 %v324, 0.0
      %v361 = vmax.f32 %v325, 0.0
      %v362 = vmax.f32 %v326, 0.0
      %v363 = vmax.f32 %v327, 0.0
      %v364 = vmax.f32 %v328, 0.0
      %v365 = vmax.f32 %v329, 0.0
      %v366 = vmax.f32 %v330, 0.0
      %v367 = vmax.f32 %v331, 0.0
      %v368 = vpack.c.bf16 %v333, %v332
      %v369 = vpack.c.bf16 %v335, %v334
      %v370 = vpack.c.bf16 %v337, %v336
      %v371 = vpack.c.bf16 %v339, %v338
      %v372 = vpack.c.bf16 %v341, %v340
      %v373 = vpack.c.bf16 %v343, %v342
      %v374 = vpack.c.bf16 %v345, %v344
      %v375 = vpack.c.bf16 %v347, %v346
      %v376 = vpack.c.bf16 %v349, %v348
      %v377 = vpack.c.bf16 %v351, %v350
      %v378 = vpack.c.bf16 %v353, %v352
      %v379 = vpack.c.bf16 %v355, %v354
      %v380 = vpack.c.bf16 %v357, %v356
      %v381 = vpack.c.bf16 %v359, %v358
      %v382 = vpack.c.bf16 %v361, %v360
      %v383 = vpack.c.bf16 %v363, %v362
      %v384 = vpack.c.bf16 %v365, %v364
      %v385 = vpack.c.bf16 %v367, %v366
      %v404 = vunpack.c.l.b16 %v368
      %v405 = vunpack.c.h.b16 %v368
      %v406 = vunpack.c.l.b16 %v369
      %v407 = vunpack.c.h.b16 %v369
      %v408 = vunpack.c.l.b16 %v370
      %v409 = vunpack.c.h.b16 %v370
      %v410 = vunpack.c.l.b16 %v371
      %v411 = vunpack.c.h.b16 %v371
      %v412 = vunpack.c.l.b16 %v372
      %v413 = vunpack.c.h.b16 %v372
      %v414 = vunpack.c.l.b16 %v373
      %v415 = vunpack.c.h.b16 %v373
      %v416 = vunpack.c.l.b16 %v374
      %v417 = vunpack.c.h.b16 %v374
      %v418 = vunpack.c.l.b16 %v375
      %v419 = vunpack.c.h.b16 %v375
      %v420 = vunpack.c.l.b16 %v376
      %v421 = vunpack.c.h.b16 %v376
      %v422 = vunpack.c.l.b16 %v377
      %v423 = vunpack.c.h.b16 %v377
      %v424 = vunpack.c.l.b16 %v378
      %v425 = vunpack.c.h.b16 %v378
      %v426 = vunpack.c.l.b16 %v379
      %v427 = vunpack.c.h.b16 %v379
      %v428 = vunpack.c.l.b16 %v380
      %v429 = vunpack.c.h.b16 %v380
      %v430 = vunpack.c.l.b16 %v381
      %v431 = vunpack.c.h.b16 %v381
      %v432 = vunpack.c.l.b16 %v382
      %v433 = vunpack.c.h.b16 %v382
      %v434 = vunpack.c.l.b16 %v383
      %v435 = vunpack.c.h.b16 %v383
      %v436 = vunpack.c.l.b16 %v384
      %v437 = vunpack.c.h.b16 %v384
      %v438 = vunpack.c.l.b16 %v385
      %v439 = vunpack.c.h.b16 %v385
      %v440 = vpack.c.b16 %v404, %v404
      %v441 = vpack.c.b16 %v405, %v405
      %v442 = vpack.c.b16 %v406, %v406
      %v443 = vpack.c.b16 %v407, %v407
      %v444 = vpack.c.b16 %v408, %v408
      %v445 = vpack.c.b16 %v409, %v409
      %v446 = vpack.c.b16 %v410, %v410
      %v447 = vpack.c.b16 %v411, %v411
      %v448 = vpack.c.b16 %v412, %v412
      %v449 = vpack.c.b16 %v413, %v413
      %v450 = vpack.c.b16 %v414, %v414
      %v451 = vpack.c.b16 %v415, %v415
      %v452 = vpack.c.b16 %v416, %v416
      %v453 = vpack.c.b16 %v417, %v417
      %v454 = vpack.c.b16 %v418, %v418
      %v455 = vpack.c.b16 %v419, %v419
      %v456 = vpack.c.b16 %v420, %v420
      %v457 = vpack.c.b16 %v421, %v421
      %v458 = vpack.c.b16 %v422, %v422
      %v459 = vpack.c.b16 %v423, %v423
      %v460 = vpack.c.b16 %v424, %v424
      %v461 = vpack.c.b16 %v425, %v425
      %v462 = vpack.c.b16 %v426, %v426
      %v463 = vpack.c.b16 %v427, %v427
      %v464 = vpack.c.b16 %v428, %v428
      %v465 = vpack.c.b16 %v429, %v429
      %v466 = vpack.c.b16 %v430, %v430
      %v467 = vpack.c.b16 %v431, %v431
      %v468 = vpack.c.b16 %v432, %v432
      %v469 = vpack.c.b16 %v433, %v433
      %v470 = vpack.c.b16 %v434, %v434
      %v471 = vpack.c.b16 %v435, %v435
      %v472 = vpack.c.b16 %v436, %v436
      %v473 = vpack.c.b16 %v437, %v437
      %v474 = vpack.c.b16 %v438, %v438
      %v475 = vpack.c.b16 %v439, %v439
      %vm512 = vcmask 60416
      %513 = vst.msk [vmem:[%s172] sm:$0xf] %vm512, %v440
      %514 = vst.msk [vmem:[%s172 + $0x4] sm:$0xf] %vm512, %v441
      %515 = vst.msk [vmem:[%s172 + $0x8] sm:$0xf] %vm512, %v442
      %516 = vst.msk [vmem:[%s172 + $0xc] sm:$0xf] %vm512, %v443
      %517 = vst.msk [vmem:[%s172 + $0x10] sm:$0xf] %vm512, %v444
      %518 = vst.msk [vmem:[%s172 + $0x14] sm:$0xf] %vm512, %v445
      %519 = vst.msk [vmem:[%s172 + $0x18] sm:$0xf] %vm512, %v446
      %520 = vst.msk [vmem:[%s172 + $0x1c] sm:$0xf] %vm512, %v447
      %521 = vst.msk [vmem:[%s172 + $0x20] sm:$0xf] %vm512, %v448
      %522 = vst.msk [vmem:[%s172 + $0x24] sm:$0xf] %vm512, %v449
      %523 = vst.msk [vmem:[%s172 + $0x28] sm:$0xf] %vm512, %v450
      %524 = vst.msk [vmem:[%s172 + $0x2c] sm:$0xf] %vm512, %v451
      %525 = vst.msk [vmem:[%s172 + $0x30] sm:$0xf] %vm512, %v452
      %526 = vst.msk [vmem:[%s172 + $0x34] sm:$0xf] %vm512, %v453
      %527 = vst.msk [vmem:[%s172 + $0x38] sm:$0xf] %vm512, %v454
      %528 = vst.msk [vmem:[%s172 + $0x3c] sm:$0xf] %vm512, %v455
      %529 = vst.msk [vmem:[%s172 + $0x40] sm:$0xf] %vm512, %v456
      %530 = vst.msk [vmem:[%s172 + $0x44] sm:$0xf] %vm512, %v457
      %531 = vst.msk [vmem:[%s172 + $0x48] sm:$0xf] %vm512, %v458
      %532 = vst.msk [vmem:[%s172 + $0x4c] sm:$0xf] %vm512, %v459
      %533 = vst.msk [vmem:[%s172 + $0x50] sm:$0xf] %vm512, %v460
      %534 = vst.msk [vmem:[%s172 + $0x54] sm:$0xf] %vm512, %v461
      %535 = vst.msk [vmem:[%s172 + $0x58] sm:$0xf] %vm512, %v462
      %536 = vst.msk [vmem:[%s172 + $0x5c] sm:$0xf] %vm512, %v463
      %537 = vst.msk [vmem:[%s172 + $0x60] sm:$0xf] %vm512, %v464
      %538 = vst.msk [vmem:[%s172 + $0x64] sm:$0xf] %vm512, %v465
      %539 = vst.msk [vmem:[%s172 + $0x68] sm:$0xf] %vm512, %v466
      %540 = vst.msk [vmem:[%s172 + $0x6c] sm:$0xf] %vm512, %v467
      %541 = vst.msk [vmem:[%s172 + $0x70] sm:$0xf] %vm512, %v468
      %542 = vst.msk [vmem:[%s172 + $0x74] sm:$0xf] %vm512, %v469
      %543 = vst.msk [vmem:[%s172 + $0x78] sm:$0xf] %vm512, %v470
      %544 = vst.msk [vmem:[%s172 + $0x7c] sm:$0xf] %vm512, %v471
      %545 = vst.msk [vmem:[%s172 + $0x80] sm:$0xf] %vm512, %v472
      %546 = vst.msk [vmem:[%s172 + $0x84] sm:$0xf] %vm512, %v473
      %547 = vst.msk [vmem:[%s172 + $0x88] sm:$0xf] %vm512, %v474
      %548 = vst.msk [vmem:[%s172 + $0x8c] sm:$0xf] %vm512, %v475
      %s549 = smul.u32 36, %s14
      %p550 = scmp.lt.s32.totalorder %s549, 71
      %s551 = scalar_select %p550, %s549, 71
      %s552 = smul.addr %s551, 4
      %s553 = scalar_lea.vmem %s3, %s552
      // Predicated region
      $region33: #{conv_bn_relu.3} parent=31 // pred_check
        %p554 = pneg %p100
      $region34: #{conv_bn_relu.3} parent=31 // pred_check_branch
        %556 = sbr.rel (%p554) target = $region36
      $region35: #{conv_bn_relu.3} parent=31 // pred_region
        %s557 = smul.u32 36, %s14
      $region36: #{conv_bn_relu.3} parent=31 // pred_fallthru
        _
    $region32: #{conv_bn_relu.3} parent=5 // pred_fallthru
      _
    %p558 = scmp.le.s32.totalorder 2, %s9
    // Predicated region
    $region37: #{conv_bn_relu.3} parent=5 // pred_check
      %p559 = pneg %p558
    $region38: #{conv_bn_relu.3} parent=5 // pred_check_branch
      %561 = sbr.rel (%p559) target = $region40
    $region39: #{conv_bn_relu.3} parent=5 // pred_region
      %s562 = ssub.s32 %s9, 2
      // Predicated region
      $region41: #{conv_bn_relu.3} parent=39 // pred_check
        %p563 = pneg %p106
      $region42: #{conv_bn_relu.3} parent=39 // pred_check_branch
        %565 = sbr.rel (%p563) target = $region44
      $region43: #{conv_bn_relu.3} parent=39 // pred_region
        %s566 = smul.u32 36, %s15
        %p567 = scmp.lt.s32.totalorder %s566, 71
        %s568 = scalar_select %p567, %s566, 71
        %s569 = smul.addr %s568, 4
        %s570 = scalar_lea.vmem %s3, %s569
      $region44: #{conv_bn_relu.3} parent=39 // pred_fallthru
        _
    $region40: #{conv_bn_relu.3} parent=5 // pred_fallthru
      _
  $region6: #{conv_bn_relu.3} parent=0 // loop_footer
    %s13 = sadd.s32 1, %s9
  $region7: #{conv_bn_relu.3} parent=0 // loop_footer_branch
    %8 = sbr.rel target = $region3
  $region8: #{conv_bn_relu.3} parent=0 // loop_exit
    _

// kernel: conv_bn_relu.2
$region0: #{conv_bn_relu.2}
  #allocation0 [shape = 'u32[]', space=smem, size = 0x4, offset = 0x4, fixed_abs, tag = 'smem constant byte address 0x4 - core index']
  #allocation1 [shape = 'u32[144,128]{1,0:T(1,128)}', space=vmem, size = 0x12000, scoped, tag = 'internal scratch']
  #allocation2 [shape = 'f32[328,4]{1,0:T(8,128)}', space=vmem, size = 0x29000, scoped, tag = 'scratch operand']
  #allocation3 [shape = 'f32[288,8]{1,0:T(8,128)}', space=vmem, size = 0x24000, scoped, tag = 'scratch operand']
  %s0 = inlined_call_operand.vmem [shape: bf16[656,4], index: 0, kind: input, shape index: {}]
  %s1 = inlined_call_operand.vmem [shape: bf16[9,4,8], index: 1, kind: input, shape index: {}]
  %s2 = inlined_call_operand.vmem [shape: f32[288,1], index: 2, kind: input, shape index: {}]
  %s3 = inlined_call_operand.vmem [shape: bf16[576,8], index: 3, kind: output, shape index: {0}]
  %s4 = inlined_call_operand.vmem [shape: f32[2,1,8], index: 4, kind: output, shape index: {1}]
  %s5 = inlined_call_operand.vmem [shape: f32[2,1,8], index: 5, kind: output, shape index: {2}]
  %6 = xla_tuple %s3, %s4, %s5
  %s7 = sld [smem:[#allocation0]]
  $region61: #{conv_bn_relu.2} parent=0
    _
  %s9 = ssub.s32 1, %s7
  %s10 = scalar_select 0, %s9, %s7
  loop: start=0, step=1, limit=4
  $region2: #{conv_bn_relu.2} parent=0 // loop_pre_header
    _
  $region3: #{conv_bn_relu.2} parent=0 // loop_header
    %s12 = sphi 0, %s16
    %p13 = scmp.ge.s32.totalorder %s12, 4
    %s22 = sphi 0, %s24
    %s25 = sphi 0, %s22
    %s26 = sphi 0, %s25
    %s42 = sphi 0, %s26
    %s46 = sphi 0, %s46
    %s48 = sphi 0, %s46
    %s49 = sphi 0, %s48
    %s63 = sphi 0, %s49
    %s67 = sphi 0, %s67
    %s69 = sphi 0, %s67
    %s70 = sphi 0, %s69
    %s84 = sphi 0, %s70
    %s90 = sphi 0, %s92
    %s93 = sphi 0, %s90
    %s94 = sphi 0, %s93
    %s110 = sphi 0, %s94
    %s116 = sphi 0, %s118
    %s119 = sphi 0, %s116
    %s120 = sphi 0, %s119
    %s136 = sphi 0, %s120
    %s142 = sphi 0, %s144
    %s145 = sphi 0, %s142
    %s146 = sphi 0, %s145
    %s162 = sphi 0, %s146
  $region4: #{conv_bn_relu.2} parent=0 // loop_header_branch
    %15 = sbr.rel (%p13) target = $region8
  $region5: #{conv_bn_relu.2} parent=0 // loop_body
    %s17 = ssub.s32 %s12, 1
    %s18 = ssub.s32 %s12, 2
    %s19 = sadd.s32 %s12, 1
    %s20 = ssub.s32 %s12, %s19
    %p21 = scmp.eq.s32.totalorder %s20, 0
    %s23 = sadd.s32 %s22, 1
    %s24 = scalar_select %p21, %s22, %s23
    %p27 = pneg %p21
    %p28 = scmp.eq.s32.totalorder %s12, 1
    %p29 = por %p27, %p28
    %p30 = scmp.ne.s32.totalorder %s22, %s25
    %p31 = scmp.eq.s32.totalorder %s12, 0
    %p32 = por %p30, %p31
    %p33 = scmp.ne.s32.totalorder %s22, %s25
    %p34 = scmp.eq.s32.totalorder %s17, 1
    %p35 = por %p33, %p34
    %p36 = scmp.ne.s32.totalorder %s25, %s26
    %p37 = scmp.eq.s32.totalorder %s17, 0
    %p38 = por %p36, %p37
    %p39 = scmp.ne.s32.totalorder %s25, %s26
    %p40 = scmp.eq.s32.totalorder %s18, 1
    %p41 = por %p39, %p40
    %p43 = scmp.ne.s32.totalorder %s26, %s42
    %p44 = scmp.eq.s32.totalorder %s18, 0
    %p45 = por %p43, %p44
    %s47 = sadd.s32 %s46, 1
    %p50 = scmp.eq.s32.totalorder %s12, 1
    %p51 = scmp.ne.s32.totalorder %s46, %s48
    %p52 = scmp.eq.s32.totalorder %s12, 0
    %p53 = por %p51, %p52
    %p54 = scmp.ne.s32.totalorder %s46, %s48
    %p55 = scmp.eq.s32.totalorder %s17, 1
    %p56 = por %p54, %p55
    %p57 = scmp.ne.s32.totalorder %s48, %s49
    %p58 = scmp.eq.s32.totalorder %s17, 0
    %p59 = por %p57, %p58
    %p60 = scmp.ne.s32.totalorder %s48, %s49
    %p61 = scmp.eq.s32.totalorder %s18, 1
    %p62 = por %p60, %p61
    %p64 = scmp.ne.s32.totalorder %s49, %s63
    %p65 = scmp.eq.s32.totalorder %s18, 0
    %p66 = por %p64, %p65
    %s68 = sadd.s32 %s67, 1
    %p71 = scmp.eq.s32.totalorder %s12, 1
    %p72 = scmp.ne.s32.totalorder %s67, %s69
    %p73 = scmp.eq.s32.totalorder %s12, 0
    %p74 = por %p72, %p73
    %p75 = scmp.ne.s32.totalorder %s67, %s69
    %p76 = scmp.eq.s32.totalorder %s17, 1
    %p77 = por %p75, %p76
    %p78 = scmp.ne.s32.totalorder %s69, %s70
    %p79 = scmp.eq.s32.totalorder %s17, 0
    %p80 = por %p78, %p79
    %p81 = scmp.ne.s32.totalorder %s69, %s70
    %p82 = scmp.eq.s32.totalorder %s18, 1
    %p83 = por %p81, %p82
    %p85 = scmp.ne.s32.totalorder %s70, %s84
    %p86 = scmp.eq.s32.totalorder %s18, 0
    %p87 = por %p85, %p86
    %s88 = ssub.s32 %s12, %s19
    %p89 = scmp.eq.s32.totalorder %s88, 0
    %s91 = sadd.s32 %s90, 1
    %s92 = scalar_select %p89, %s90, %s91
    %p95 = pneg %p89
    %p96 = scmp.eq.s32.totalorder %s12, 1
    %p97 = por %p95, %p96
    %p98 = scmp.ne.s32.totalorder %s90, %s93
    %p99 = scmp.eq.s32.totalorder %s12, 0
    %p100 = por %p98, %p99
    %p101 = scmp.ne.s32.totalorder %s90, %s93
    %p102 = scmp.eq.s32.totalorder %s17, 1
    %p103 = por %p101, %p102
    %p104 = scmp.ne.s32.totalorder %s93, %s94
    %p105 = scmp.eq.s32.totalorder %s17, 0
    %p106 = por %p104, %p105
    %p107 = scmp.ne.s32.totalorder %s93, %s94
    %p108 = scmp.eq.s32.totalorder %s18, 1
    %p109 = por %p107, %p108
    %p111 = scmp.ne.s32.totalorder %s94, %s110
    %p112 = scmp.eq.s32.totalorder %s18, 0
    %p113 = por %p111, %p112
    %s114 = ssub.s32 %s12, %s19
    %p115 = scmp.eq.s32.totalorder %s114, 0
    %s117 = sadd.s32 %s116, 1
    %s118 = scalar_select %p115, %s116, %s117
    %p121 = pneg %p115
    %p122 = scmp.eq.s32.totalorder %s12, 1
    %p123 = por %p121, %p122
    %p124 = scmp.ne.s32.totalorder %s116, %s119
    %p125 = scmp.eq.s32.totalorder %s12, 0
    %p126 = por %p124, %p125
    %p127 = scmp.ne.s32.totalorder %s116, %s119
    %p128 = scmp.eq.s32.totalorder %s17, 1
    %p129 = por %p127, %p128
    %p130 = scmp.ne.s32.totalorder %s119, %s120
    %p131 = scmp.eq.s32.totalorder %s17, 0
    %p132 = por %p130, %p131
    %p133 = scmp.ne.s32.totalorder %s119, %s120
    %p134 = scmp.eq.s32.totalorder %s18, 1
    %p135 = por %p133, %p134
    %p137 = scmp.ne.s32.totalorder %s120, %s136
    %p138 = scmp.eq.s32.totalorder %s18, 0
    %p139 = por %p137, %p138
    %s140 = ssub.s32 %s12, %s19
    %p141 = scmp.eq.s32.totalorder %s140, 0
    %s143 = sadd.s32 %s142, 1
    %s144 = scalar_select %p141, %s142, %s143
    %p147 = pneg %p141
    %p148 = scmp.eq.s32.totalorder %s12, 1
    %p149 = por %p147, %p148
    %p150 = scmp.ne.s32.totalorder %s142, %s145
    %p151 = scmp.eq.s32.totalorder %s12, 0
    %p152 = por %p150, %p151
    %p153 = scmp.ne.s32.totalorder %s142, %s145
    %p154 = scmp.eq.s32.totalorder %s17, 1
    %p155 = por %p153, %p154
    %p156 = scmp.ne.s32.totalorder %s145, %s146
    %p157 = scmp.eq.s32.totalorder %s17, 0
    %p158 = por %p156, %p157
    %p159 = scmp.ne.s32.totalorder %s145, %s146
    %p160 = scmp.eq.s32.totalorder %s18, 1
    %p161 = por %p159, %p160
    %p163 = scmp.ne.s32.totalorder %s146, %s162
    %p164 = scmp.eq.s32.totalorder %s18, 0
    %p165 = por %p163, %p164
    %p166 = scmp.le.s32.totalorder 1, %s12
    %p167 = scmp.lt.s32.totalorder %s12, 3
    %p168 = pnand %p166, %p167
    %p169 = pneg %p168
    // Predicated region
    $region9: #{conv_bn_relu.2} parent=5 // pred_check
      _
    $region10: #{conv_bn_relu.2} parent=5 // pred_check_branch
      %171 = sbr.rel (%p168) target = $region12
    $region11: #{conv_bn_relu.2} parent=5 // pred_region
      %s172 = ssub.s32 %s12, 1
      // Predicated region
      $region13: #{conv_bn_relu.2} parent=11 // pred_check
        %p173 = pneg %p59
      $region14: #{conv_bn_relu.2} parent=11 // pred_check_branch
        %175 = sbr.rel (%p173) target = $region16
      $region15: #{conv_bn_relu.2} parent=11 // pred_region
        _
      $region16: #{conv_bn_relu.2} parent=11 // pred_fallthru
        _
      // Predicated region
      $region17: #{conv_bn_relu.2} parent=11 // pred_check
        %p176 = pneg %p80
      $region18: #{conv_bn_relu.2} parent=11 // pred_check_branch
        %178 = sbr.rel (%p176) target = $region20
      $region19: #{conv_bn_relu.2} parent=11 // pred_region
        _
      $region20: #{conv_bn_relu.2} parent=11 // pred_fallthru
        _
    $region12: #{conv_bn_relu.2} parent=5 // pred_fallthru
      _
    %p179 = scmp.lt.s32.totalorder %s12, 2
    // Predicated region
    $region21: #{conv_bn_relu.2} parent=5 // pred_check
      %p180 = pneg %p179
    $region22: #{conv_bn_relu.2} parent=5 // pred_check_branch
      %182 = sbr.rel (%p180) target = $region24
    $region23: #{conv_bn_relu.2} parent=5 // pred_region
      // Predicated region
      $region25: #{conv_bn_relu.2} parent=23 // pred_check
        %p183 = pneg %p32
      $region26: #{conv_bn_relu.2} parent=23 // pred_check_branch
        %185 = sbr.rel (%p183) target = $region28
      $region27: #{conv_bn_relu.2} parent=23 // pred_region
        %s186 = smul.u32 41, %s12
        %p187 = scmp.lt.s32.totalorder %s186, 81
        %s188 = scalar_select %p187, %s186, 81
        %s189 = smul.addr %s188, 4
        %s190 = scalar_lea.vmem %s0, %s189
        %s191 = smul.u32 41, %s12
      $region28: #{conv_bn_relu.2} parent=23 // pred_fallthru
        _
    $region24: #{conv_bn_relu.2} parent=5 // pred_fallthru
      _
    %p192 = scmp.le.s32.totalorder 1, %s12
    %p193 = scmp.lt.s32.totalorder %s12, 3
    %p194 = pnand %p192, %p193
    %p195 = pneg %p194
    // Predicated region
    $region29: #{conv_bn_relu.2} parent=5 // pred_check
      _
    $region30: #{conv_bn_relu.2} parent=5 // pred_check_branch
      %197 = sbr.rel (%p194) target = $region32
    $region31: #{conv_bn_relu.2} parent=5 // pred_region
      %s198 = ssub.s32 %s12, 1
      %s199 = smul.u32 41, %s17
      %p200 = scmp.lt.s32.totalorder %s199, 81
      %s201 = scalar_select %p200, %s199, 81
      %s202 = smul.addr %s201, 4
      %s203 = scalar_lea.vmem %s0, %s202
      %p204 = pneg %p38
      %p205 = pneg %p35
      %p206 = pneg %p59
      %p207 = pneg %p56
      %p208 = pneg %p80
      %p209 = pneg %p77
      %p210 = pneg %p106
      %p211 = pneg %p103
      %s212 = smul.u32 36, %s17
      %p213 = scmp.lt.s32.totalorder %s212, 71
      %s214 = scalar_select %p213, %s212, 71
      %s215 = smul.addr %s214, 4
      %s216 = scalar_lea.vmem %s3, %s215
      %p217 = pneg %p132
      %p218 = pneg %p129
      %p219 = scmp.lt.s32.totalorder %s17, 1
      %s220 = scalar_select %p219, %s17, 1
      %s221 = scalar_lea.vmem %s4, %s220
      %p222 = pneg %p158
      %p223 = pneg %p155
      %p224 = scmp.lt.s32.totalorder %s17, 1
      %s225 = scalar_select %p224, %s17, 1
      %s226 = scalar_lea.vmem %s5, %s225
      %s227 = smul.u32 41, %s17
      %p228 = scmp.lt.s32.totalorder %s227, 81
      %s229 = scalar_select %p228, %s227, 81
      %s230 = smul.addr %s229, 4
      %s231 = scalar_lea.vmem %s0, %s230
      %s232 = smul.u32 41, %s17
      %s233 = smul.u32 36, %s17
      %p234 = scmp.lt.s32.totalorder %s233, 71
      %s235 = scalar_select %p234, %s233, 71
      %s236 = smul.addr %s235, 4
      %s237 = scalar_lea.vmem %s3, %s236
      %s238 = smul.u32 36, %s17
      %p239 = scmp.lt.s32.totalorder %s17, 1
      %s240 = scalar_select %p239, %s17, 1
      %s241 = scalar_lea.vmem %s4, %s240
      %p242 = scmp.lt.s32.totalorder %s17, 1
      %s243 = scalar_select %p242, %s17, 1
      %s244 = scalar_lea.vmem %s5, %s243
      %v246 = vld [vmem:[%s231] sm:$0xf]
      %v247 = vld [vmem:[%s231 + $0x4] sm:$0xf]
      %v248 = vld [vmem:[%s231 + $0x8] sm:$0xf]
      %v249 = vld [vmem:[%s231 + $0xc] sm:$0xf]
      %v250 = vld [vmem:[%s231 + $0x10] sm:$0xf]
      %v251 = vld [vmem:[%s231 + $0x14] sm:$0xf]
      %v252 = vld [vmem:[%s231 + $0x18] sm:$0xf]
      %v253 = vld [vmem:[%s231 + $0x1c] sm:$0xf]
      %v254 = vld [vmem:[%s231 + $0x20] sm:$0xf]
      %v255 = vld [vmem:[%s231 + $0x24] sm:$0xf]
      %v256 = vld [vmem:[%s231 + $0x28] sm:$0xf]
      %v257 = vld [vmem:[%s231 + $0x2c] sm:$0xf]
      %v258 = vld [vmem:[%s231 + $0x30] sm:$0xf]
      %v259 = vld [vmem:[%s231 + $0x34] sm:$0xf]
      %v260 = vld [vmem:[%s231 + $0x38] sm:$0xf]
      %v261 = vld [vmem:[%s231 + $0x3c] sm:$0xf]
      %v262 = vld [vmem:[%s231 + $0x40] sm:$0xf]
      %v263 = vld [vmem:[%s231 + $0x44] sm:$0xf]
      %v264 = vld [vmem:[%s231 + $0x48] sm:$0xf]
      %v265 = vld [vmem:[%s231 + $0x4c] sm:$0xf]
      %v266 = vld [vmem:[%s231 + $0x50] sm:$0xf]
      %v267 = vld [vmem:[%s231 + $0x54] sm:$0xf]
      %v268 = vld [vmem:[%s231 + $0x58] sm:$0xf]
      %v269 = vld [vmem:[%s231 + $0x5c] sm:$0xf]
      %v270 = vld [vmem:[%s231 + $0x60] sm:$0xf]
      %v271 = vld [vmem:[%s231 + $0x64] sm:$0xf]
      %v272 = vld [vmem:[%s231 + $0x68] sm:$0xf]
      %v273 = vld [vmem:[%s231 + $0x6c] sm:$0xf]
      %v274 = vld [vmem:[%s231 + $0x70] sm:$0xf]
      %v275 = vld [vmem:[%s231 + $0x74] sm:$0xf]
      %v276 = vld [vmem:[%s231 + $0x78] sm:$0xf]
      %v277 = vld [vmem:[%s231 + $0x7c] sm:$0xf]
      %v278 = vld [vmem:[%s231 + $0x80] sm:$0xf]
      %v279 = vld [vmem:[%s231 + $0x84] sm:$0xf]
      %v280 = vld [vmem:[%s231 + $0x88] sm:$0xf]
      %v281 = vld [vmem:[%s231 + $0x8c] sm:$0xf]
      %v282 = vld [vmem:[%s231 + $0x90] sm:$0xf]
      %v283 = vld [vmem:[%s231 + $0x94] sm:$0xf]
      %v284 = vld [vmem:[%s231 + $0x98] sm:$0xf]
      %v285 = vld [vmem:[%s231 + $0x9c] sm:$0xf]
      %v286 = vld [vmem:[%s231 + $0xa0] sm:$0xf]
      %v287 = vunpack.c.l.bf16 %v246
      %v288 = vunpack.c.l.bf16 %v247
      %v289 = vunpack.c.l.bf16 %v248
      %v290 = vunpack.c.l.bf16 %v249
      %v291 = vunpack.c.l.bf16 %v250
      %v292 = vunpack.c.l.bf16 %v251
      %v293 = vunpack.c.l.bf16 %v252
      %v294 = vunpack.c.l.bf16 %v253
      %v295 = vunpack.c.l.bf16 %v254
      %v296 = vunpack.c.l.bf16 %v255
      %v297 = vunpack.c.l.bf16 %v256
      %v298 = vunpack.c.l.bf16 %v257
      %v299 = vunpack.c.l.bf16 %v258
      %v300 = vunpack.c.l.bf16 %v259
      %v301 = vunpack.c.l.bf16 %v260
      %v302 = vunpack.c.l.bf16 %v261
      %v303 = vunpack.c.l.bf16 %v262
      %v304 = vunpack.c.l.bf16 %v263
      %v305 = vunpack.c.l.bf16 %v264
      %v306 = vunpack.c.l.bf16 %v265
      %v307 = vunpack.c.l.bf16 %v266
      %v308 = vunpack.c.l.bf16 %v267
      %v309 = vunpack.c.l.bf16 %v268
      %v310 = vunpack.c.l.bf16 %v269
      %v311 = vunpack.c.l.bf16 %v270
      %v312 = vunpack.c.l.bf16 %v271
      %v313 = vunpack.c.l.bf16 %v272
      %v314 = vunpack.c.l.bf16 %v273
      %v315 = vunpack.c.l.bf16 %v274
      %v316 = vunpack.c.l.bf16 %v275
      %v317 = vunpack.c.l.bf16 %v276
      %v318 = vunpack.c.l.bf16 %v277
      %v319 = vunpack.c.l.bf16 %v278
      %v320 = vunpack.c.l.bf16 %v279
      %v321 = vunpack.c.l.bf16 %v280
      %v322 = vunpack.c.l.bf16 %v281
      %v323 = vunpack.c.l.bf16 %v282
      %v324 = vunpack.c.l.bf16 %v283
      %v325 = vunpack.c.l.bf16 %v284
      %v326 = vunpack.c.l.bf16 %v285
      %v327 = vunpack.c.l.bf16 %v286
      %vm328 = vcmask 31744
      %329 = vst.msk [vmem:[#allocation2] sm:$0xff] %vm328, %v287
      %330 = vst.msk [vmem:[#allocation2 + $0x8] sm:$0xff] %vm328, %v288
      %331 = vst.msk [vmem:[#allocation2 + $0x10] sm:$0xff] %vm328, %v289
      %332 = vst.msk [vmem:[#allocation2 + $0x18] sm:$0xff] %vm328, %v290
      %333 = vst.msk [vmem:[#allocation2 + $0x20] sm:$0xff] %vm328, %v291
      %334 = vst.msk [vmem:[#allocation2 + $0x28] sm:$0xff] %vm328, %v292
      %335 = vst.msk [vmem:[#allocation2 + $0x30] sm:$0xff] %vm328, %v293
      %336 = vst.msk [vmem:[#allocation2 + $0x38] sm:$0xff] %vm328, %v294
      %337 = vst.msk [vmem:[#allocation2 + $0x40] sm:$0xff] %vm328, %v295
      %338 = vst.msk [vmem:[#allocation2 + $0x48] sm:$0xff] %vm328, %v296
      %339 = vst.msk [vmem:[#allocation2 + $0x50] sm:$0xff] %vm328, %v297
      %340 = vst.msk [vmem:[#allocation2 + $0x58] sm:$0xff] %vm328, %v298
      %341 = vst.msk [vmem:[#allocation2 + $0x60] sm:$0xff] %vm328, %v299
      %342 = vst.msk [vmem:[#allocation2 + $0x68] sm:$0xff] %vm328, %v300
      %343 = vst.msk [vmem:[#allocation2 + $0x70] sm:$0xff] %vm328, %v301
      %344 = vst.msk [vmem:[#allocation2 + $0x78] sm:$0xff] %vm328, %v302
      %345 = vst.msk [vmem:[#allocation2 + $0x80] sm:$0xff] %vm328, %v303
      %346 = vst.msk [vmem:[#allocation2 + $0x88] sm:$0xff] %vm328, %v304
      %347 = vst.msk [vmem:[#allocation2 + $0x90] sm:$0xff] %vm328, %v305
      %348 = vst.msk [vmem:[#allocation2 + $0x98] sm:$0xff] %vm328, %v306
      %349 = vst.msk [vmem:[#allocation2 + $0xa0] sm:$0xff] %vm328, %v307
      %350 = vst.msk [vmem:[#allocation2 + $0xa8] sm:$0xff] %vm328, %v308
      %351 = vst.msk [vmem:[#allocation2 + $0xb0] sm:$0xff] %vm328, %v309
      %352 = vst.msk [vmem:[#allocation2 + $0xb8] sm:$0xff] %vm328, %v310
      %353 = vst.msk [vmem:[#allocation2 + $0xc0] sm:$0xff] %vm328, %v311
      %354 = vst.msk [vmem:[#allocation2 + $0xc8] sm:$0xff] %vm328, %v312
      %355 = vst.msk [vmem:[#allocation2 + $0xd0] sm:$0xff] %vm328, %v313
      %356 = vst.msk [vmem:[#allocation2 + $0xd8] sm:$0xff] %vm328, %v314
      %357 = vst.msk [vmem:[#allocation2 + $0xe0] sm:$0xff] %vm328, %v315
      %358 = vst.msk [vmem:[#allocation2 + $0xe8] sm:$0xff] %vm328, %v316
      %359 = vst.msk [vmem:[#allocation2 + $0xf0] sm:$0xff] %vm328, %v317
      %360 = vst.msk [vmem:[#allocation2 + $0xf8] sm:$0xff] %vm328, %v318
      %361 = vst.msk [vmem:[#allocation2 + $0x100] sm:$0xff] %vm328, %v319
      %362 = vst.msk [vmem:[#allocation2 + $0x108] sm:$0xff] %vm328, %v320
      %363 = vst.msk [vmem:[#allocation2 + $0x110] sm:$0xff] %vm328, %v321
      %364 = vst.msk [vmem:[#allocation2 + $0x118] sm:$0xff] %vm328, %v322
      %365 = vst.msk [vmem:[#allocation2 + $0x120] sm:$0xff] %vm328, %v323
      %366 = vst.msk [vmem:[#allocation2 + $0x128] sm:$0xff] %vm328, %v324
      %367 = vst.msk [vmem:[#allocation2 + $0x130] sm:$0xff] %vm328, %v325
      %368 = vst.msk [vmem:[#allocation2 + $0x138] sm:$0xff] %vm328, %v326
      %369 = vst.msk [vmem:[#allocation2 + $0x140] sm:$0xff] %vm328, %v327
      %vm370 = vcmask 64512
      %371 = vst.msk [vmem:[#allocation3] sm:$0xff] %vm370, 0.0
      %372 = vst.msk [vmem:[#allocation3 + $0x8] sm:$0xff] %vm370, 0.0
      %373 = vst.msk [vmem:[#allocation3 + $0x10] sm:$0xff] %vm370, 0.0
      %374 = vst.msk [vmem:[#allocation3 + $0x18] sm:$0xff] %vm370, 0.0
      %375 = vst.msk [vmem:[#allocation3 + $0x20] sm:$0xff] %vm370, 0.0
      %376 = vst.msk [vmem:[#allocation3 + $0x28] sm:$0xff] %vm370, 0.0
      %377 = vst.msk [vmem:[#allocation3 + $0x30] sm:$0xff] %vm370, 0.0
      %378 = vst.msk [vmem:[#allocation3 + $0x38] sm:$0xff] %vm370, 0.0
      %379 = vst.msk [vmem:[#allocation3 + $0x40] sm:$0xff] %vm370, 0.0
      %380 = vst.msk [vmem:[#allocation3 + $0x48] sm:$0xff] %vm370, 0.0
      %381 = vst.msk [vmem:[#allocation3 + $0x50] sm:$0xff] %vm370, 0.0
      %382 = vst.msk [vmem:[#allocation3 + $0x58] sm:$0xff] %vm370, 0.0
      %383 = vst.msk [vmem:[#allocation3 + $0x60] sm:$0xff] %vm370, 0.0
      %384 = vst.msk [vmem:[#allocation3 + $0x68] sm:$0xff] %vm370, 0.0
      %385 = vst.msk [vmem:[#allocation3 + $0x70] sm:$0xff] %vm370, 0.0
      %386 = vst.msk [vmem:[#allocation3 + $0x78] sm:$0xff] %vm370, 0.0
      %387 = vst.msk [vmem:[#allocation3 + $0x80] sm:$0xff] %vm370, 0.0
      %388 = vst.msk [vmem:[#allocation3 + $0x88] sm:$0xff] %vm370, 0.0
      %389 = vst.msk [vmem:[#allocation3 + $0x90] sm:$0xff] %vm370, 0.0
      %390 = vst.msk [vmem:[#allocation3 + $0x98] sm:$0xff] %vm370, 0.0
      %391 = vst.msk [vmem:[#allocation3 + $0xa0] sm:$0xff] %vm370, 0.0
      %392 = vst.msk [vmem:[#allocation3 + $0xa8] sm:$0xff] %vm370, 0.0
      %393 = vst.msk [vmem:[#allocation3 + $0xb0] sm:$0xff] %vm370, 0.0
      %394 = vst.msk [vmem:[#allocation3 + $0xb8] sm:$0xff] %vm370, 0.0
      %395 = vst.msk [vmem:[#allocation3 + $0xc0] sm:$0xff] %vm370, 0.0
      %396 = vst.msk [vmem:[#allocation3 + $0xc8] sm:$0xff] %vm370, 0.0
      %397 = vst.msk [vmem:[#allocation3 + $0xd0] sm:$0xff] %vm370, 0.0
      %398 = vst.msk [vmem:[#allocation3 + $0xd8] sm:$0xff] %vm370, 0.0
      %399 = vst.msk [vmem:[#allocation3 + $0xe0] sm:$0xff] %vm370, 0.0
      %400 = vst.msk [vmem:[#allocation3 + $0xe8] sm:$0xff] %vm370, 0.0
      %401 = vst.msk [vmem:[#allocation3 + $0xf0] sm:$0xff] %vm370, 0.0
      %402 = vst.msk [vmem:[#allocation3 + $0xf8] sm:$0xff] %vm370, 0.0
      %403 = vst.msk [vmem:[#allocation3 + $0x100] sm:$0xff] %vm370, 0.0
      %404 = vst.msk [vmem:[#allocation3 + $0x108] sm:$0xff] %vm370, 0.0
      %405 = vst.msk [vmem:[#allocation3 + $0x110] sm:$0xff] %vm370, 0.0
      %406 = vst.msk [vmem:[#allocation3 + $0x118] sm:$0xff] %vm370, 0.0
      %v407 = vld [vmem:[#allocation2] sm:$0xff]
      %v408 = vld [vmem:[#allocation2 + $0x8] sm:$0xff]
      %v409 = vld [vmem:[#allocation2 + $0x10] sm:$0xff]
      %v410 = vld [vmem:[#allocation2 + $0x18] sm:$0xff]
      %v411 = vld [vmem:[#allocation2 + $0x20] sm:$0xff]
      %v412 = vld [vmem:[#allocation2 + $0x28] sm:$0xff]
      %v413 = vld [vmem:[#allocation2 + $0x30] sm:$0xff]
      %v414 = vld [vmem:[#allocation2 + $0x38] sm:$0xff]
      %v415 = vld [vmem:[#allocation2 + $0x40] sm:$0xff]
      %v416 = vld [vmem:[#allocation2 + $0x48] sm:$0xff]
      %v417 = vld [vmem:[#allocation2 + $0x50] sm:$0xff]
      %v418 = vld [vmem:[#allocation2 + $0x58] sm:$0xff]
      %v419 = vld [vmem:[#allocation2 + $0x60] sm:$0xff]
      %v420 = vld [vmem:[#allocation2 + $0x68] sm:$0xff]
      %v421 = vld [vmem:[#allocation2 + $0x70] sm:$0xff]
      %v422 = vld [vmem:[#allocation2 + $0x78] sm:$0xff]
      %v423 = vld [vmem:[#allocation2 + $0x80] sm:$0xff]
      %v424 = vld [vmem:[#allocation2 + $0x88] sm:$0xff]
      %v425 = vld [vmem:[#allocation2 + $0x90] sm:$0xff]
      %v426 = vld [vmem:[#allocation2 + $0x98] sm:$0xff]
      %v427 = vld [vmem:[#allocation2 + $0xa0] sm:$0xff]
      %v428 = vld [vmem:[#allocation2 + $0xa8] sm:$0xff]
      %v429 = vld [vmem:[#allocation2 + $0xb0] sm:$0xff]
      %v430 = vld [vmem:[#allocation2 + $0xb8] sm:$0xff]
      %v431 = vld [vmem:[#allocation2 + $0xc0] sm:$0xff]
      %v432 = vld [vmem:[#allocation2 + $0xc8] sm:$0xff]
      %v433 = vld [vmem:[#allocation2 + $0xd0] sm:$0xff]
      %v434 = vld [vmem:[#allocation2 + $0xd8] sm:$0xff]
      %v435 = vld [vmem:[#allocation2 + $0xe0] sm:$0xff]
      %v436 = vld [vmem:[#allocation2 + $0xe8] sm:$0xff]
      %v437 = vld [vmem:[#allocation2 + $0xf0] sm:$0xff]
      %v438 = vld [vmem:[#allocation2 + $0xf8] sm:$0xff]
      %v439 = vld [vmem:[#allocation2 + $0x100] sm:$0xff]
      %v440 = vld [vmem:[#allocation2 + $0x108] sm:$0xff]
      %v441 = vld [vmem:[#allocation2 + $0x110] sm:$0xff]
      %v442 = vld [vmem:[#allocation2 + $0x118] sm:$0xff]
      %v443 = vpack.c.bf16 %v408, %v407
      %v444 = vpack.c.bf16 %v410, %v409
      %v445 = vpack.c.bf16 %v412, %v411
      %v446 = vpack.c.bf16 %v414, %v413
      %v447 = vpack.c.bf16 %v416, %v415
      %v448 = vpack.c.bf16 %v418, %v417
      %v449 = vpack.c.bf16 %v420, %v419
      %v450 = vpack.c.bf16 %v422, %v421
      %v451 = vpack.c.bf16 %v424, %v423
      %v452 = vpack.c.bf16 %v426, %v425
      %v453 = vpack.c.bf16 %v428, %v427
      %v454 = vpack.c.bf16 %v430, %v429
      %v455 = vpack.c.bf16 %v432, %v431
      %v456 = vpack.c.bf16 %v434, %v433
      %v457 = vpack.c.bf16 %v436, %v435
      %v458 = vpack.c.bf16 %v438, %v437
      %v459 = vpack.c.bf16 %v440, %v439
      %v460 = vpack.c.bf16 %v442, %v441
      %v461 = vld [vmem:[#allocation3] sm:$0xff]
      %v462 = vld [vmem:[#allocation3 + $0x8] sm:$0xff]
      %v463 = vld [vmem:[#allocation3 + $0x10] sm:$0xff]
      %v464 = vld [vmem:[#allocation3 + $0x18] sm:$0xff]
      %v465 = vld [vmem:[#allocation3 + $0x20] sm:$0xff]
      %v466 = vld [vmem:[#allocation3 + $0x28] sm:$0xff]
      %v467 = vld [vmem:[#allocation3 + $0x30] sm:$0xff]
      %v468 = vld [vmem:[#allocation3 + $0x38] sm:$0xff]
      %v469 = vld [vmem:[#allocation3 + $0x40] sm:$0xff]
      %v470 = vld [vmem:[#allocation3 + $0x48] sm:$0xff]
      %v471 = vld [vmem:[#allocation3 + $0x50] sm:$0xff]
      %v472 = vld [vmem:[#allocation3 + $0x58] sm:$0xff]
      %v473 = vld [vmem:[#allocation3 + $0x60] sm:$0xff]
      %v474 = vld [vmem:[#allocation3 + $0x68] sm:$0xff]
      %v475 = vld [vmem:[#allocation3 + $0x70] sm:$0xff]
      %v476 = vld [vmem:[#allocation3 + $0x78] sm:$0xff]
      %v477 = vld [vmem:[#allocation3 + $0x80] sm:$0xff]
      %v478 = vld [vmem:[#allocation3 + $0x88] sm:$0xff]
      %v479 = vld [vmem:[#allocation3 + $0x90] sm:$0xff]
      %v480 = vld [vmem:[#allocation3 + $0x98] sm:$0xff]
      %v481 = vld [vmem:[#allocation3 + $0xa0] sm:$0xff]
      %v482 = vld [vmem:[#allocation3 + $0xa8] sm:$0xff]
      %v483 = vld [vmem:[#allocation3 + $0xb0] sm:$0xff]
      %v484 = vld [vmem:[#allocation3 + $0xb8] sm:$0xff]
      %v485 = vld [vmem:[#allocation3 + $0xc0] sm:$0xff]
      %v486 = vld [vmem:[#allocation3 + $0xc8] sm:$0xff]
      %v487 = vld [vmem:[#allocation3 + $0xd0] sm:$0xff]
      %v488 = vld [vmem:[#allocation3 + $0xd8] sm:$0xff]
      %v489 = vld [vmem:[#allocation3 + $0xe0] sm:$0xff]
      %v490 = vld [vmem:[#allocation3 + $0xe8] sm:$0xff]
      %v491 = vld [vmem:[#allocation3 + $0xf0] sm:$0xff]
      %v492 = vld [vmem:[#allocation3 + $0xf8] sm:$0xff]
      %v493 = vld [vmem:[#allocation3 + $0x100] sm:$0xff]
      %v494 = vld [vmem:[#allocation3 + $0x108] sm:$0xff]
      %v495 = vld [vmem:[#allocation3 + $0x110] sm:$0xff]
      %v496 = vld [vmem:[#allocation3 + $0x118] sm:$0xff]
      %v497 = vld [vmem:[%s1] sm:$0x3]
      %v499 = vsel %vm328, %v443, 0
      %v502 = vsel %vm328, %v444, 0
      %v505 = vsel %vm328, %v445, 0
      %v508 = vsel %vm328, %v446, 0
      %v511 = vsel %vm328, %v447, 0
      %v514 = vsel %vm328, %v448, 0
      %v517 = vsel %vm328, %v449, 0
      %v520 = vsel %vm328, %v450, 0
      %v523 = vsel %vm328, %v451, 0
      %v526 = vsel %vm328, %v452, 0
      %v529 = vsel %vm328, %v453, 0
      %v532 = vsel %vm328, %v454, 0
      %v535 = vsel %vm328, %v455, 0
      %v538 = vsel %vm328, %v456, 0
      %v541 = vsel %vm328, %v457, 0
      %v544 = vsel %vm328, %v458, 0
      %v547 = vsel %vm328, %v459, 0
      %v550 = vsel %vm328, %v460, 0
      %vm552 = vcmask 1041408
      %v554 = vsel %vm552, %v497, 0
      %556 = vmatprep.subr.bf16.mxu0 0
      %557 = vmatpush1.bf16.msra.mxu0 %v554
      %558 = vmatprep.subr.bf16.mxu0 0
      %559 = vmatpush1.bf16.msra.mxu0 0
      %560 = vmatprep.subr.bf16.mxu0 0
      %561 = vmatpush1.bf16.msra.mxu0 0
      %562 = vmatprep.subr.bf16.mxu0 0
      %563 = vmatpush1.bf16.msra.mxu0 0
      %564 = vmatprep.subr.bf16.mxu0 0
      %565 = vmatpush1.bf16.msra.mxu0 0
      %566 = vmatprep.subr.bf16.mxu0 0
      %567 = vmatpush1.bf16.msra.mxu0 0
      %568 = vmatprep.subr.bf16.mxu0 0
      %569 = vmatpush1.bf16.msra.mxu0 0
      %570 = vmatprep.subr.bf16.mxu0 0
      %571 = vmatpush1.bf16.msra.mxu0 0
      %572 = vmatprep.subr.bf16.mxu0 0
      %573 = vmatpush1.bf16.msra.mxu0 0
      %574 = vmatprep.subr.bf16.mxu0 0
      %575 = vmatpush1.bf16.msra.mxu0 0
      %576 = vmatprep.subr.bf16.mxu0 0
      %577 = vmatpush1.bf16.msra.mxu0 0
      %578 = vmatprep.subr.bf16.mxu0 0
      %579 = vmatpush1.bf16.msra.mxu0 0
      %580 = vmatprep.subr.bf16.mxu0 0
      %581 = vmatpush1.bf16.msra.mxu0 0
      %582 = vmatprep.subr.bf16.mxu0 0
      %583 = vmatpush1.bf16.msra.mxu0 0
      %584 = vmatprep.subr.bf16.mxu0 0
      %585 = vmatpush1.bf16.msra.mxu0 0
      %586 = vmatprep.subr.bf16.mxu0 0
      %587 = vmatpush1.bf16.msra.mxu0 0
      %588 = vmatprep.mubr.bf16.mxu0 0
      %589 = vmatmul.mubr.bf16.gmra.mrb[0].mxu0 %v499
      %v590 = vpop.f32.mrb[0].mxu0
      %v591 = vadd.f32 0.0, %v590
      %v592 = vpop.f32.mrb[0].mxu0
      %v593 = vpop.f32.mrb[0].mxu0
      %v594 = vadd.f32 0.0, %v593
      %v595 = vpop.f32.mrb[0].mxu0
      %596 = vmatprep.mubr.bf16.mxu0 0
      %597 = vmatmul.mubr.bf16.gmra.mrb[0].mxu0 %v502
      %v598 = vpop.f32.mrb[0].mxu0
      %v599 = vadd.f32 0.0, %v598
      %v600 = vpop.f32.mrb[0].mxu0
      %v601 = vpop.f32.mrb[0].mxu0
      %v602 = vadd.f32 0.0, %v601
      %v603 = vpop.f32.mrb[0].mxu0
      %604 = vmatprep.mubr.bf16.mxu0 0
      %605 = vmatmul.mubr.bf16.gmra.mrb[0].mxu0 %v505
      %v606 = vpop.f32.mrb[0].mxu0
      %v607 = vadd.f32 0.0, %v606
      %v608 = vpop.f32.mrb[0].mxu0
      %v609 = vpop.f32.mrb[0].mxu0
      %v610 = vadd.f32 0.0, %v609
      %v611 = vpop.f32.mrb[0].mxu0
      %612 = vmatprep.mubr.bf16.mxu0 0
      %613 = vmatmul.mubr.bf16.gmra.mrb[0].mxu0 %v508
      %v614 = vpop.f32.mrb[0].mxu0
      %v615 = vadd.f32 0.0, %v614
      %v616 = vpop.f32.mrb[0].mxu0
      %v617 = vpop.f32.mrb[0].mxu0
      %v618 = vadd.f32 0.0, %v617
      %v619 = vpop.f32.mrb[0].mxu0
      %620 = vmatprep.mubr.bf16.mxu0 0
      %621 = vmatmul.mubr.bf16.gmra.mrb[0].mxu0 %v511
      %v622 = vpop.f32.mrb[0].mxu0
      %v623 = vadd.f32 0.0, %v622
      %v624 = vpop.f32.mrb[0].mxu0
      %v625 = vpop.f32.mrb[0].mxu0
      %v626 = vadd.f32 0.0, %v625
      %v627 = vpop.f32.mrb[0].mxu0
      %628 = vmatprep.mubr.bf16.mxu0 0
      %629 = vmatmul.mubr.bf16.gmra.mrb[0].mxu0 %v514
      %v630 = vpop.f32.mrb[0].mxu0
      %v631 = vadd.f32 0.0, %v630
      %v632 = vpop.f32.mrb[0].mxu0
      %v633 = vpop.f32.mrb[0].mxu0
      %v634 = vadd.f32 0.0, %v633
      %v635 = vpop.f32.mrb[0].mxu0
      %636 = vmatprep.mubr.bf16.mxu0 0
      %637 = vmatmul.mubr.bf16.gmra.mrb[0].mxu0 %v517
      %v638 = vpop.f32.mrb[0].mxu0
      %v639 = vadd.f32 0.0, %v638
      %v640 = vpop.f32.mrb[0].mxu0
      %v641 = vpop.f32.mrb[0].mxu0
      %v642 = vadd.f32 0.0, %v641
      %v643 = vpop.f32.mrb[0].mxu0
      %644 = vmatprep.mubr.bf16.mxu0 0
      %645 = vmatmul.mubr.bf16.gmra.mrb[0].mxu0 %v520
      %v646 = vpop.f32.mrb[0].mxu0
      %v647 = vadd.f32 0.0, %v646
      %v648 = vpop.f32.mrb[0].mxu0
      %v649 = vpop.f32.mrb[0].mxu0
      %v650 = vadd.f32 0.0, %v649
      %v651 = vpop.f32.mrb[0].mxu0
      %652 = vmatprep.mubr.bf16.mxu0 0
      %653 = vmatmul.mubr.bf16.gmra.mrb[0].mxu0 %v523
      %v654 = vpop.f32.mrb[0].mxu0
      %v655 = vadd.f32 0.0, %v654
      %v656 = vpop.f32.mrb[0].mxu0
      %v657 = vpop.f32.mrb[0].mxu0
      %v658 = vadd.f32 0.0, %v657
      %v659 = vpop.f32.mrb[0].mxu0
      %660 = vmatprep.mubr.bf16.mxu0 0
      %661 = vmatmul.mubr.bf16.gmra.mrb[0].mxu0 %v526
      %v662 = vpop.f32.mrb[0].mxu0
      %v663 = vadd.f32 0.0, %v662
      %v664 = vpop.f32.mrb[0].mxu0
      %v665 = vpop.f32.mrb[0].mxu0
      %v666 = vadd.f32 0.0, %v665
      %v667 = vpop.f32.mrb[0].mxu0
      %668 = vmatprep.mubr.bf16.mxu0 0
      %669 = vmatmul.mubr.bf16.gmra.mrb[0].mxu0 %v529
      %v670 = vpop.f32.mrb[0].mxu0
      %v671 = vadd.f32 0.0, %v670
      %v672 = vpop.f32.mrb[0].mxu0
      %v673 = vpop.f32.mrb[0].mxu0
      %v674 = vadd.f32 0.0, %v673
      %v675 = vpop.f32.mrb[0].mxu0
      %676 = vmatprep.mubr.bf16.mxu0 0
      %677 = vmatmul.mubr.bf16.gmra.mrb[0].mxu0 %v532
      %v678 = vpop.f32.mrb[0].mxu0
      %v679 = vadd.f32 0.0, %v678
      %v680 = vpop.f32.mrb[0].mxu0
      %v681 = vpop.f32.mrb[0].mxu0
      %v682 = vadd.f32 0.0, %v681
      %v683 = vpop.f32.mrb[0].mxu0
      %684 = vmatprep.mubr.bf16.mxu0 0
      %685 = vmatmul.mubr.bf16.gmra.mrb[0].mxu0 %v535
      %v686 = vpop.f32.mrb[0].mxu0
      %v687 = vadd.f32 0.0, %v686
      %v688 = vpop.f32.mrb[0].mxu0
      %v689 = vpop.f32.mrb[0].mxu0
      %v690 = vadd.f32 0.0, %v689
      %v691 = vpop.f32.mrb[0].mxu0
      %692 = vmatprep.mubr.bf16.mxu0 0
      %693 = vmatmul.mubr.bf16.gmra.mrb[0].mxu0 %v538
      %v694 = vpop.f32.mrb[0].mxu0
      %v695 = vadd.f32 0.0, %v694
      %v696 = vpop.f32.mrb[0].mxu0
      %v697 = vpop.f32.mrb[0].mxu0
      %v698 = vadd.f32 0.0, %v697
      %v699 = vpop.f32.mrb[0].mxu0
      %700 = vmatprep.mubr.bf16.mxu0 0
      %701 = vmatmul.mubr.bf16.gmra.mrb[0].mxu0 %v541
      %v702 = vpop.f32.mrb[0].mxu0
      %v703 = vadd.f32 0.0, %v702
      %v704 = vpop.f32.mrb[0].mxu0
      %v705 = vpop.f32.mrb[0].mxu0
      %v706 = vadd.f32 0.0, %v705
      %v707 = vpop.f32.mrb[0].mxu0
      %708 = vmatprep.mubr.bf16.mxu0 0
      %709 = vmatmul.mubr.bf16.gmra.mrb[0].mxu0 %v544
      %v710 = vpop.f32.mrb[0].mxu0
      %v711 = vadd.f32 0.0, %v710
      %v712 = vpop.f32.mrb[0].mxu0
      %v713 = vpop.f32.mrb[0].mxu0
      %v714 = vadd.f32 0.0, %v713
      %v715 = vpop.f32.mrb[0].mxu0
      %716 = vmatprep.mubr.bf16.mxu0 0
      %717 = vmatmul.mubr.bf16.gmra.mrb[0].mxu0 %v547
      %v718 = vpop.f32.mrb[0].mxu0
      %v719 = vadd.f32 0.0, %v718
      %v720 = vpop.f32.mrb[0].mxu0
      %v721 = vpop.f32.mrb[0].mxu0
      %v722 = vadd.f32 0.0, %v721
      %v723 = vpop.f32.mrb[0].mxu0
      %724 = vmatprep.mubr.bf16.mxu0 0
      %725 = vmatmul.mubr.bf16.gmra.mrb[0].mxu0 %v550
      %v726 = vpop.f32.mrb[0].mxu0
      %v727 = vadd.f32 0.0, %v726
      %v728 = vpop.f32.mrb[0].mxu0
      %v729 = vpop.f32.mrb[0].mxu0
      %v730 = vadd.f32 0.0, %v729
      %v731 = vpop.f32.mrb[0].mxu0
      %732 = vdwg.mxu0
      %v733 = vadd.f32 %v461, %v591
      %v734 = vadd.f32 %v462, %v594
      %v735 = vadd.f32 %v463, %v599
      %v736 = vadd.f32 %v464, %v602
      %v737 = vadd.f32 %v465, %v607
      %v738 = vadd.f32 %v466, %v610
      %v739 = vadd.f32 %v467, %v615
      %v740 = vadd.f32 %v468, %v618
      %v741 = vadd.f32 %v469, %v623
      %v742 = vadd.f32 %v470, %v626
      %v743 = vadd.f32 %v471, %v631
      %v744 = vadd.f32 %v472, %v634
      %v745 = vadd.f32 %v473, %v639
      %v746 = vadd.f32 %v474, %v642
      %v747 = vadd.f32 %v475, %v647
      %v748 = vadd.f32 %v476, %v650
      %v749 = vadd.f32 %v477, %v655
      %v750 = vadd.f32 %v478, %v658
      %v751 = vadd.f32 %v479, %v663
      %v752 = vadd.f32 %v480, %v666
      %v753 = vadd.f32 %v481, %v671
      %v754 = vadd.f32 %v482, %v674
      %v755 = vadd.f32 %v483, %v679
      %v756 = vadd.f32 %v484, %v682
      %v757 = vadd.f32 %v485, %v687
      %v758 = vadd.f32 %v486, %v690
      %v759 = vadd.f32 %v487, %v695
      %v760 = vadd.f32 %v488, %v698
      %v761 = vadd.f32 %v489, %v703
      %v762 = vadd.f32 %v490, %v706
      %v763 = vadd.f32 %v491, %v711
      %v764 = vadd.f32 %v492, %v714
      %v765 = vadd.f32 %v493, %v719
      %v766 = vadd.f32 %v494, %v722
      %v767 = vadd.f32 %v495, %v727
      %v768 = vadd.f32 %v496, %v730
      %769 = vst.msk [vmem:[#allocation3] sm:$0xff] %vm370, %v733
      %770 = vst.msk [vmem:[#allocation3 + $0x8] sm:$0xff] %vm370, %v734
      %771 = vst.msk [vmem:[#allocation3 + $0x10] sm:$0xff] %vm370, %v735
      %772 = vst.msk [vmem:[#allocation3 + $0x18] sm:$0xff] %vm370, %v736
      %773 = vst.msk [vmem:[#allocation3 + $0x20] sm:$0xff] %vm370, %v737
      %774 = vst.msk [vmem:[#allocation3 + $0x28] sm:$0xff] %vm370, %v738
      %775 = vst.msk [vmem:[#allocation3 + $0x30] sm:$0xff] %vm370, %v739
      %776 = vst.msk [vmem:[#allocation3 + $0x38] sm:$0xff] %vm370, %v740
      %777 = vst.msk [vmem:[#allocation3 + $0x40] sm:$0xff] %vm370, %v741
      %778 = vst.msk [vmem:[#allocation3 + $0x48] sm:$0xff] %vm370, %v742
      %779 = vst.msk [vmem:[#allocation3 + $0x50] sm:$0xff] %vm370, %v743
      %780 = vst.msk [vmem:[#allocation3 + $0x58] sm:$0xff] %vm370, %v744
      %781 = vst.msk [vmem:[#allocation3 + $0x60] sm:$0xff] %vm370, %v745
      %782 = vst.msk [vmem:[#allocation3 + $0x68] sm:$0xff] %vm370, %v746
      %783 = vst.msk [vmem:[#allocation3 + $0x70] sm:$0xff] %vm370, %v747
      %784 = vst.msk [vmem:[#allocation3 + $0x78] sm:$0xff] %vm370, %v748
      %785 = vst.msk [vmem:[#allocation3 + $0x80] sm:$0xff] %vm370, %v749
      %786 = vst.msk [vmem:[#allocation3 + $0x88] sm:$0xff] %vm370, %v750
      %787 = vst.msk [vmem:[#allocation3 + $0x90] sm:$0xff] %vm370, %v751
      %788 = vst.msk [vmem:[#allocation3 + $0x98] sm:$0xff] %vm370, %v752
      %789 = vst.msk [vmem:[#allocation3 + $0xa0] sm:$0xff] %vm370, %v753
      %790 = vst.msk [vmem:[#allocation3 + $0xa8] sm:$0xff] %vm370, %v754
      %791 = vst.msk [vmem:[#allocation3 + $0xb0] sm:$0xff] %vm370, %v755
      %792 = vst.msk [vmem:[#allocation3 + $0xb8] sm:$0xff] %vm370, %v756
      %793 = vst.msk [vmem:[#allocation3 + $0xc0] sm:$0xff] %vm370, %v757
      %794 = vst.msk [vmem:[#allocation3 + $0xc8] sm:$0xff] %vm370, %v758
      %795 = vst.msk [vmem:[#allocation3 + $0xd0] sm:$0xff] %vm370, %v759
      %796 = vst.msk [vmem:[#allocation3 + $0xd8] sm:$0xff] %vm370, %v760
      %797 = vst.msk [vmem:[#allocation3 + $0xe0] sm:$0xff] %vm370, %v761
      %798 = vst.msk [vmem:[#allocation3 + $0xe8] sm:$0xff] %vm370, %v762
      %799 = vst.msk [vmem:[#allocation3 + $0xf0] sm:$0xff] %vm370, %v763
      %800 = vst.msk [vmem:[#allocation3 + $0xf8] sm:$0xff] %vm370, %v764
      %801 = vst.msk [vmem:[#allocation3 + $0x100] sm:$0xff] %vm370, %v765
      %802 = vst.msk [vmem:[#allocation3 + $0x108] sm:$0xff] %vm370, %v766
      %803 = vst.msk [vmem:[#allocation3 + $0x110] sm:$0xff] %vm370, %v767
      %804 = vst.msk [vmem:[#allocation3 + $0x118] sm:$0xff] %vm370, %v768
      %v805 = vld [vmem:[#allocation2 + $0x1] sm:$0xff]
      %v806 = vld [vmem:[#allocation2 + $0x9] sm:$0xff]
      %v807 = vld [vmem:[#allocation2 + $0x11] sm:$0xff]
      %v808 = vld [vmem:[#allocation2 + $0x19] sm:$0xff]
      %v809 = vld [vmem:[#allocation2 + $0x21] sm:$0xff]
      %v810 = vld [vmem:[#allocation2 + $0x29] sm:$0xff]
      %v811 = vld [vmem:[#allocation2 + $0x31] sm:$0xff]
      %v812 = vld [vmem:[#allocation2 + $0x39] sm:$0xff]
      %v813 = vld [vmem:[#allocation2 + $0x41] sm:$0xff]
      %v814 = vld [vmem:[#allocation2 + $0x49] sm:$0xff]
      %v815 = vld [vmem:[#allocation2 + $0x51] sm:$0xff]
      %v816 = vld [vmem:[#allocation2 + $0x59] sm:$0xff]
      %v817 = vld [vmem:[#allocation2 + $0x61] sm:$0xff]
      %v818 = vld [vmem:[#allocation2 + $0x69] sm:$0xff]
      %v819 = vld [vmem:[#allocation2 + $0x71] sm:$0xff]
      %v820 = vld [vmem:[#allocation2 + $0x79] sm:$0xff]
      %v821 = vld [vmem:[#allocation2 + $0x81] sm:$0xff]
      %v822 = vld [vmem:[#allocation2 + $0x89] sm:$0xff]
      %v823 = vld [vmem:[#allocation2 + $0x91] sm:$0xff]
      %v824 = vld [vmem:[#allocation2 + $0x99] sm:$0xff]
      %v825 = vld [vmem:[#allocation2 + $0xa1] sm:$0xff]
      %v826 = vld [vmem:[#allocation2 + $0xa9] sm:$0xff]
      %v827 = vld [vmem:[#allocation2 + $0xb1] sm:$0xff]
      %v828 = vld [vmem:[#allocation2 + $0xb9] sm:$0xff]
      %v829 = vld [vmem:[#allocation2 + $0xc1] sm:$0xff]
      %v830 = vld [vmem:[#allocation2 + $0xc9] sm:$0xff]
      %v831 = vld [vmem:[#allocation2 + $0xd1] sm:$0xff]
      %v832 = vld [vmem:[#allocation2 + $0xd9] sm:$0xff]
      %v833 = vld [vmem:[#allocation2 + $0xe1] sm:$0xff]
      %v834 = vld [vmem:[#allocation2 + $0xe9] sm:$0xff]
      %v835 = vld [vmem:[#allocation2 + $0xf1] sm:$0xff]
      %v836 = vld [vmem:[#allocation2 + $0xf9] sm:$0xff]
      %v837 = vld [vmem:[#allocation2 + $0x101] sm:$0xff]
      %v838 = vld [vmem:[#allocation2 + $0x109] sm:$0xff]
      %v839 = vld [vmem:[#allocation2 + $0x111] sm:$0xff]
      %v840 = vld [vmem:[#allocation2 + $0x119] sm:$0xff]
      %v841 = vpack.c.bf16 %v806, %v805
      %v842 = vpack.c.bf16 %v808, %v807
      %v843 = vpack.c.bf16 %v810, %v809
      %v844 = vpack.c.bf16 %v812, %v811
      %v845 = vpack.c.bf16 %v814, %v813
      %v846 = vpack.c.bf16 %v816, %v815
      %v847 = vpack.c.bf16 %v818, %v817
      %v848 = vpack.c.bf16 %v820, %v819
      %v849 = vpack.c.bf16 %v822, %v821
      %v850 = vpack.c.bf16 %v824, %v823
      %v851 = vpack.c.bf16 %v826, %v825
      %v852 = vpack.c.bf16 %v828, %v827
      %v853 = vpack.c.bf16 %v830, %v829
      %v854 = vpack.c.bf16 %v832, %v831
      %v855 = vpack.c.bf16 %v834, %v833
      %v856 = vpack.c.bf16 %v836, %v835
      %v857 = vpack.c.bf16 %v838, %v837
      %v858 = vpack.c.bf16 %v840, %v839
      %v859 = vld [vmem:[#allocation3] sm:$0xff]
      %v860 = vld [vmem:[#allocation3 + $0x8] sm:$0xff]
      %v861 = vld [vmem:[#allocation3 + $0x10] sm:$0xff]
      %v862 = vld [vmem:[#allocation3 + $0x18] sm:$0xff]
      %v863 = vld [vmem:[#allocation3 + $0x20] sm:$0xff]
      %v864 = vld [vmem:[#allocation3 + $0x28] sm:$0xff]
      %v865 = vld [vmem:[#allocation3 + $0x30] sm:$0xff]
      %v866 = vld [vmem:[#allocation3 + $0x38] sm:$0xff]
      %v867 = vld [vmem:[#allocation3 + $0x40] sm:$0xff]
      %v868 = vld [vmem:[#allocation3 + $0x48] sm:$0xff]
      %v869 = vld [vmem:[#allocation3 + $0x50] sm:$0xff]
      %v870 = vld [vmem:[#allocation3 + $0x58] sm:$0xff]
      %v871 = vld [vmem:[#allocation3 + $0x60] sm:$0xff]
      %v872 = vld [vmem:[#allocation3 + $0x68] sm:$0xff]
      %v873 = vld [vmem:[#allocation3 + $0x70] sm:$0xff]
      %v874 = vld [vmem:[#allocation3 + $0x78] sm:$0xff]
      %v875 = vld [vmem:[#allocation3 + $0x80] sm:$0xff]
      %v876 = vld [vmem:[#allocation3 + $0x88] sm:$0xff]
      %v877 = vld [vmem:[#allocation3 + $0x90] sm:$0xff]
      %v878 = vld [vmem:[#allocation3 + $0x98] sm:$0xff]
      %v879 = vld [vmem:[#allocation3 + $0xa0] sm:$0xff]
      %v880 = vld [vmem:[#allocation3 + $0xa8] sm:$0xff]
      %v881 = vld [vmem:[#allocation3 + $0xb0] sm:$0xff]
      %v882 = vld [vmem:[#allocation3 + $0xb8] sm:$0xff]
      %v883 = vld [vmem:[#allocation3 + $0xc0] sm:$0xff]
      %v884 = vld [vmem:[#allocation3 + $0xc8] sm:$0xff]
      %v885 = vld [vmem:[#allocation3 + $0xd0] sm:$0xff]
      %v886 = vld [vmem:[#allocation3 + $0xd8] sm:$0xff]
      %v887 = vld [vmem:[#allocation3 + $0xe0] sm:$0xff]
      %v888 = vld [vmem:[#allocation3 + $0xe8] sm:$0xff]
      %v889 = vld [vmem:[#allocation3 + $0xf0] sm:$0xff]
      %v890 = vld [vmem:[#allocation3 + $0xf8] sm:$0xff]
      %v891 = vld [vmem:[#allocation3 + $0x100] sm:$0xff]
      %v892 = vld [vmem:[#allocation3 + $0x108] sm:$0xff]
      %v893 = vld [vmem:[#allocation3 + $0x110] sm:$0xff]
      %v894 = vld [vmem:[#allocation3 + $0x118] sm:$0xff]
      %s895 = scalar_lea.vmem %s1, 2
      %v896 = vld [vmem:[%s895] sm:$0x3]
      %v898 = vsel %vm328, %v841, 0
      %v901 = vsel %vm328, %v842, 0
      %v904 = vsel %vm328, %v843, 0
      %v907 = vsel %vm328, %v844, 0
      %v910 = vsel %vm328, %v845, 0
      %v913 = vsel %vm328, %v846, 0
      %v916 = vsel %vm328, %v847, 0
      %v919 = vsel %vm328, %v848, 0
      %v922 = vsel %vm328, %v849, 0
      %v925 = vsel %vm328, %v850, 0
      %v928 = vsel %vm328, %v851, 0
      %v931 = vsel %vm328, %v852, 0
      %v934 = vsel %vm328, %v853, 0
      %v937 = vsel %vm328, %v854, 0
      %v940 = vsel %vm328, %v855, 0
      %v943 = vsel %vm328, %v856, 0
      %v946 = vsel %vm328, %v857, 0
      %v949 = vsel %vm328, %v858, 0
      %v952 = vsel %vm552, %v896, 0
      %954 = vmatprep.subr.bf16.mxu0 0
      %955 = vmatpush1.bf16.msra.mxu0 %v952
      %956 = vmatprep.subr.bf16.mxu0 0
      %957 = vmatpush1.bf16.msra.mxu0 0
      %958 = vmatprep.subr.bf16.mxu0 0
      %959 = vmatpush1.bf16.msra.mxu0 0
      %960 = vmatprep.subr.bf16.mxu0 0
      %961 = vmatpush1.bf16.msra.mxu0 0
      %962 = vmatprep.subr.bf16.mxu0 0
      %963 = vmatpush1.bf16.msra.mxu0 0
      %964 = vmatprep.subr.bf16.mxu0 0
      %965 = vmatpush1.bf16.msra.mxu0 0
      %966 = vmatprep.subr.bf16.mxu0 0
      %967 = vmatpush1.bf16.msra.mxu0 0
      %968 = vmatprep.subr.bf16.mxu0 0
      %969 = vmatpush1.bf16.msra.mxu0 0
      %970 = vmatprep.subr.bf16.mxu0 0
      %971 = vmatpush1.bf16.msra.mxu0 0
      %972 = vmatprep.subr.bf16.mxu0 0
      %973 = vmatpush1.bf16.msra.mxu0 0
      %974 = vmatprep.subr.bf16.mxu0 0
      %975 = vmatpush1.bf16.msra.mxu0 0
      %976 = vmatprep.subr.bf16.mxu0 0
      %977 = vmatpush1.bf16.msra.mxu0 0
      %978 = vmatprep.subr.bf16.mxu0 0
      %979 = vmatpush1.bf16.msra.mxu0 0
      %980 = vmatprep.subr.bf16.mxu0 0
      %981 = vmatpush1.bf16.msra.mxu0 0
      %982 = vmatprep.subr.bf16.mxu0 0
      %983 = vmatpush1.bf16.msra.mxu0 0
      %984 = vmatprep.subr.bf16.mxu0 0
      %985 = vmatpush1.bf16.msra.mxu0 0
      %986 = vmatprep.mubr.bf16.mxu0 0
      %987 = vmatmul.mubr.bf16.gmra.mrb[0].mxu0 %v898
      %v988 = vpop.f32.mrb[0].mxu0
      %v989 = vadd.f32 0.0, %v988
      %v990 = vpop.f32.mrb[0].mxu0
      %v991 = vpop.f32.mrb[0].mxu0
      %v992 = vadd.f32 0.0, %v991
      %v993 = vpop.f32.mrb[0].mxu0
      %994 = vmatprep.mubr.bf16.mxu0 0
      %995 = vmatmul.mubr.bf16.gmra.mrb[0].mxu0 %v901
      %v996 = vpop.f32.mrb[0].mxu0
      %v997 = vadd.f32 0.0, %v996
      %v998 = vpop.f32.mrb[0].mxu0
      %v999 = vpop.f32.mrb[0].mxu0
      %v1000 = vadd.f32 0.0, %v999
      %v1001 = vpop.f32.mrb[0].mxu0
      %1002 = vmatprep.mubr.bf16.mxu0 0
      %1003 = vmatmul.mubr.bf16.gmra.mrb[0].mxu0 %v904
      %v1004 = vpop.f32.mrb[0].mxu0
      %v1005 = vadd.f32 0.0, %v1004
      %v1006 = vpop.f32.mrb[0].mxu0
      %v1007 = vpop.f32.mrb[0].mxu0
      %v1008 = vadd.f32 0.0, %v1007
      %v1009 = vpop.f32.mrb[0].mxu0
      %1010 = vmatprep.mubr.bf16.mxu0 0
      %1011 = vmatmul.mubr.bf16.gmra.mrb[0].mxu0 %v907
      %v1012 = vpop.f32.mrb[0].mxu0
      %v1013 = vadd.f32 0.0, %v1012
      %v1014 = vpop.f32.mrb[0].mxu0
      %v1015 = vpop.f32.mrb[0].mxu0
      %v1016 = vadd.f32 0.0, %v1015
      %v1017 = vpop.f32.mrb[0].mxu0
      %1018 = vmatprep.mubr.bf16.mxu0 0
      %1019 = vmatmul.mubr.bf16.gmra.mrb[0].mxu0 %v910
      %v1020 = vpop.f32.mrb[0].mxu0
      %v1021 = vadd.f32 0.0, %v1020
      %v1022 = vpop.f32.mrb[0].mxu0
      %v1023 = vpop.f32.mrb[0].mxu0
      %v1024 = vadd.f32 0.0, %v1023
      %v1025 = vpop.f32.mrb[0].mxu0
      %1026 = vmatprep.mubr.bf16.mxu0 0
      %1027 = vmatmul.mubr.bf16.gmra.mrb[0].mxu0 %v913
      %v1028 = vpop.f32.mrb[0].mxu0
      %v1029 = vadd.f32 0.0, %v1028
      %v1030 = vpop.f32.mrb[0].mxu0
      %v1031 = vpop.f32.mrb[0].mxu0
      %v1032 = vadd.f32 0.0, %v1031
      %v1033 = vpop.f32.mrb[0].mxu0
      %1034 = vmatprep.mubr.bf16.mxu0 0
      %1035 = vmatmul.mubr.bf16.gmra.mrb[0].mxu0 %v916
      %v1036 = vpop.f32.mrb[0].mxu0
      %v1037 = vadd.f32 0.0, %v1036
      %v1038 = vpop.f32.mrb[0].mxu0
      %v1039 = vpop.f32.mrb[0].mxu0
      %v1040 = vadd.f32 0.0, %v1039
      %v1041 = vpop.f32.mrb[0].mxu0
      %1042 = vmatprep.mubr.bf16.mxu0 0
      %1043 = vmatmul.mubr.bf16.gmra.mrb[0].mxu0 %v919
      %v1044 = vpop.f32.mrb[0].mxu0
      %v1045 = vadd.f32 0.0, %v1044
      %v1046 = vpop.f32.mrb[0].mxu0
      %v1047 = vpop.f32.mrb[0].mxu0
      %v1048 = vadd.f32 0.0, %v1047
      %v1049 = vpop.f32.mrb[0].mxu0
      %1050 = vmatprep.mubr.bf16.mxu0 0
      %1051 = vmatmul.mubr.bf16.gmra.mrb[0].mxu0 %v922
      %v1052 = vpop.f32.mrb[0].mxu0
      %v1053 = vadd.f32 0.0, %v1052
      %v1054 = vpop.f32.mrb[0].mxu0
      %v1055 = vpop.f32.mrb[0].mxu0
      %v1056 = vadd.f32 0.0, %v1055
      %v1057 = vpop.f32.mrb[0].mxu0
      %1058 = vmatprep.mubr.bf16.mxu0 0
      %1059 = vmatmul.mubr.bf16.gmra.mrb[0].mxu0 %v925
      %v1060 = vpop.f32.mrb[0].mxu0
      %v1061 = vadd.f32 0.0, %v1060
      %v1062 = vpop.f32.mrb[0].mxu0
      %v1063 = vpop.f32.mrb[0].mxu0
      %v1064 = vadd.f32 0.0, %v1063
      %v1065 = vpop.f32.mrb[0].mxu0
      %1066 = vmatprep.mubr.bf16.mxu0 0
      %1067 = vmatmul.mubr.bf16.gmra.mrb[0].mxu0 %v928
      %v1068 = vpop.f32.mrb[0].mxu0
      %v1069 = vadd.f32 0.0, %v1068
      %v1070 = vpop.f32.mrb[0].mxu0
      %v1071 = vpop.f32.mrb[0].mxu0
      %v1072 = vadd.f32 0.0, %v1071
      %v1073 = vpop.f32.mrb[0].mxu0
      %1074 = vmatprep.mubr.bf16.mxu0 0
      %1075 = vmatmul.mubr.bf16.gmra.mrb[0].mxu0 %v931
      %v1076 = vpop.f32.mrb[0].mxu0
      %v1077 = vadd.f32 0.0, %v1076
      %v1078 = vpop.f32.mrb[0].mxu0
      %v1079 = vpop.f32.mrb[0].mxu0
      %v1080 = vadd.f32 0.0, %v1079
      %v1081 = vpop.f32.mrb[0].mxu0
      %1082 = vmatprep.mubr.bf16.mxu0 0
      %1083 = vmatmul.mubr.bf16.gmra.mrb[0].mxu0 %v934
      %v1084 = vpop.f32.mrb[0].mxu0
      %v1085 = vadd.f32 0.0, %v1084
      %v1086 = vpop.f32.mrb[0].mxu0
      %v1087 = vpop.f32.mrb[0].mxu0
      %v1088 = vadd.f32 0.0, %v1087
      %v1089 = vpop.f32.mrb[0].mxu0
      %1090 = vmatprep.mubr.bf16.mxu0 0
      %1091 = vmatmul.mubr.bf16.gmra.mrb[0].mxu0 %v937
      %v1092 = vpop.f32.mrb[0].mxu0
      %v1093 = vadd.f32 0.0, %v1092
      %v1094 = vpop.f32.mrb[0].mxu0
      %v1095 = vpop.f32.mrb[0].mxu0
      %v1096 = vadd.f32 0.0, %v1095
      %v1097 = vpop.f32.mrb[0].mxu0
      %1098 = vmatprep.mubr.bf16.mxu0 0
      %1099 = vmatmul.mubr.bf16.gmra.mrb[0].mxu0 %v940
      %v1100 = vpop.f32.mrb[0].mxu0
      %v1101 = vadd.f32 0.0, %v1100
      %v1102 = vpop.f32.mrb[0].mxu0
      %v1103 = vpop.f32.mrb[0].mxu0
      %v1104 = vadd.f32 0.0, %v1103
      %v1105 = vpop.f32.mrb[0].mxu0
      %1106 = vmatprep.mubr.bf16.mxu0 0
      %1107 = vmatmul.mubr.bf16.gmra.mrb[0].mxu0 %v943
      %v1108 = vpop.f32.mrb[0].mxu0
      %v1109 = vadd.f32 0.0, %v1108
      %v1110 = vpop.f32.mrb[0].mxu0
      %v1111 = vpop.f32.mrb[0].mxu0
      %v1112 = vadd.f32 0.0, %v1111
      %v1113 = vpop.f32.mrb[0].mxu0
      %1114 = vmatprep.mubr.bf16.mxu0 0
      %1115 = vmatmul.mubr.bf16.gmra.mrb[0].mxu0 %v946
      %v1116 = vpop.f32.mrb[0].mxu0
      %v1117 = vadd.f32 0.0, %v1116
      %v1118 = vpop.f32.mrb[0].mxu0
      %v1119 = vpop.f32.mrb[0].mxu0
      %v1120 = vadd.f32 0.0, %v1119
      %v1121 = vpop.f32.mrb[0].mxu0
      %1122 = vmatprep.mubr.bf16.mxu0 0
      %1123 = vmatmul.mubr.bf16.gmra.mrb[0].mxu0 %v949
      %v1124 = vpop.f32.mrb[0].mxu0
      %v1125 = vadd.f32 0.0, %v1124
      %v1126 = vpop.f32.mrb[0].mxu0
      %v1127 = vpop.f32.mrb[0].mxu0
      %v1128 = vadd.f32 0.0, %v1127
      %v1129 = vpop.f32.mrb[0].mxu0
      %1130 = vdwg.mxu0
      %v1131 = vadd.f32 %v859, %v989
      %v1132 = vadd.f32 %v860, %v992
      %v1133 = vadd.f32 %v861, %v997
      %v1134 = vadd.f32 %v862, %v1000
      %v1135 = vadd.f32 %v863, %v1005
      %v1136 = vadd.f32 %v864, %v1008
      %v1137 = vadd.f32 %v865, %v1013
      %v1138 = vadd.f32 %v866, %v1016
      %v1139 = vadd.f32 %v867, %v1021
      %v1140 = vadd.f32 %v868, %v1024
      %v1141 = vadd.f32 %v869, %v1029
      %v1142 = vadd.f32 %v870, %v1032
      %v1143 = vadd.f32 %v871, %v1037
      %v1144 = vadd.f32 %v872, %v1040
      %v1145 = vadd.f32 %v873, %v1045
      %v1146 = vadd.f32 %v874, %v1048
      %v1147 = vadd.f32 %v875, %v1053
      %v1148 = vadd.f32 %v876, %v1056
      %v1149 = vadd.f32 %v877, %v1061
      %v1150 = vadd.f32 %v878, %v1064
      %v1151 = vadd.f32 %v879, %v1069
      %v1152 = vadd.f32 %v880, %v1072
      %v1153 = vadd.f32 %v881, %v1077
      %v1154 = vadd.f32 %v882, %v1080
      %v1155 = vadd.f32 %v883, %v1085
      %v1156 = vadd.f32 %v884, %v1088
      %v1157 = vadd.f32 %v885, %v1093
      %v1158 = vadd.f32 %v886, %v1096
      %v1159 = vadd.f32 %v887, %v1101
      %v1160 = vadd.f32 %v888, %v1104
      %v1161 = vadd.f32 %v889, %v1109
      %v1162 = vadd.f32 %v890, %v1112
      %v1163 = vadd.f32 %v891, %v1117
      %v1164 = vadd.f32 %v892, %v1120
      %v1165 = vadd.f32 %v893, %v1125
      %v1166 = vadd.f32 %v894, %v1128
      %1167 = vst.msk [vmem:[#allocation3] sm:$0xff] %vm370, %v1131
      %1168 = vst.msk [vmem:[#allocation3 + $0x8] sm:$0xff] %vm370, %v1132
      %1169 = vst.msk [vmem:[#allocation3 + $0x10] sm:$0xff] %vm370, %v1133
      %1170 = vst.msk [vmem:[#allocation3 + $0x18] sm:$0xff] %vm370, %v1134
      %1171 = vst.msk [vmem:[#allocation3 + $0x20] sm:$0xff] %vm370, %v1135
      %1172 = vst.msk [vmem:[#allocation3 + $0x28] sm:$0xff] %vm370, %v1136
      %1173 = vst.msk [vmem:[#allocation3 + $0x30] sm:$0xff] %vm370, %v1137
      %1174 = vst.msk [vmem:[#allocation3 + $0x38] sm:$0xff] %vm370, %v1138
      %1175 = vst.msk [vmem:[#allocation3 + $0x40] sm:$0xff] %vm370, %v1139
      %1176 = vst.msk [vmem:[#allocation3 + $0x48] sm:$0xff] %vm370, %v1140
      %1177 = vst.msk [vmem:[#allocation3 + $0x50] sm:$0xff] %vm370, %v1141
      %1178 = vst.msk [vmem:[#allocation3 + $0x58] sm:$0xff] %vm370, %v1142
      %1179 = vst.msk [vmem:[#allocation3 + $0x60] sm:$0xff] %vm370, %v1143
      %1180 = vst.msk [vmem:[#allocation3 + $0x68] sm:$0xff] %vm370, %v1144
      %1181 = vst.msk [vmem:[#allocation3 + $0x70] sm:$0xff] %vm370, %v1145
      %1182 = vst.msk [vmem:[#allocation3 + $0x78] sm:$0xff] %vm370, %v1146
      %1183 = vst.msk [vmem:[#allocation3 + $0x80] sm:$0xff] %vm370, %v1147
      %1184 = vst.msk [vmem:[#allocation3 + $0x88] sm:$0xff] %vm370, %v1148
      %1185 = vst.msk [vmem:[#allocation3 + $0x90] sm:$0xff] %vm370, %v1149
      %1186 = vst.msk [vmem:[#allocation3 + $0x98] sm:$0xff] %vm370, %v1150
      %1187 = vst.msk [vmem:[#allocation3 + $0xa0] sm:$0xff] %vm370, %v1151
      %1188 = vst.msk [vmem:[#allocation3 + $0xa8] sm:$0xff] %vm370, %v1152
      %1189 = vst.msk [vmem:[#allocation3 + $0xb0] sm:$0xff] %vm370, %v1153
      %1190 = vst.msk [vmem:[#allocation3 + $0xb8] sm:$0xff] %vm370, %v1154
      %1191 = vst.msk [vmem:[#allocation3 + $0xc0] sm:$0xff] %vm370, %v1155
      %1192 = vst.msk [vmem:[#allocation3 + $0xc8] sm:$0xff] %vm370, %v1156
      %1193 = vst.msk [vmem:[#allocation3 + $0xd0] sm:$0xff] %vm370, %v1157
      %1194 = vst.msk [vmem:[#allocation3 + $0xd8] sm:$0xff] %vm370, %v1158
      %1195 = vst.msk [vmem:[#allocation3 + $0xe0] sm:$0xff] %vm370, %v1159
      %1196 = vst.msk [vmem:[#allocation3 + $0xe8] sm:$0xff] %vm370, %v1160
      %1197 = vst.msk [vmem:[#allocation3 + $0xf0] sm:$0xff] %vm370, %v1161
      %1198 = vst.msk [vmem:[#allocation3 + $0xf8] sm:$0xff] %vm370, %v1162
      %1199 = vst.msk [vmem:[#allocation3 + $0x100] sm:$0xff] %vm370, %v1163
      %1200 = vst.msk [vmem:[#allocation3 + $0x108] sm:$0xff] %vm370, %v1164
      %1201 = vst.msk [vmem:[#allocation3 + $0x110] sm:$0xff] %vm370, %v1165
      %1202 = vst.msk [vmem:[#allocation3 + $0x118] sm:$0xff] %vm370, %v1166
      %v1203 = vld [vmem:[#allocation2 + $0x2] sm:$0xff]
      %v1204 = vld [vmem:[#allocation2 + $0xa] sm:$0xff]
      %v1205 = vld [vmem:[#allocation2 + $0x12] sm:$0xff]
      %v1206 = vld [vmem:[#allocation2 + $0x1a] sm:$0xff]
      %v1207 = vld [vmem:[#allocation2 + $0x22] sm:$0xff]
      %v1208 = vld [vmem:[#allocation2 + $0x2a] sm:$0xff]
      %v1209 = vld [vmem:[#allocation2 + $0x32] sm:$0xff]
      %v1210 = vld [vmem:[#allocation2 + $0x3a] sm:$0xff]
      %v1211 = vld [vmem:[#allocation2 + $0x42] sm:$0xff]
      %v1212 = vld [vmem:[#allocation2 + $0x4a] sm:$0xff]
      %v1213 = vld [vmem:[#allocation2 + $0x52] sm:$0xff]
      %v1214 = vld [vmem:[#allocation2 + $0x5a] sm:$0xff]
      %v1215 = vld [vmem:[#allocation2 + $0x62] sm:$0xff]
      %v1216 = vld [vmem:[#allocation2 + $0x6a] sm:$0xff]
      %v1217 = vld [vmem:[#allocation2 + $0x72] sm:$0xff]
      %v1218 = vld [vmem:[#allocation2 + $0x7a] sm:$0xff]
      %v1219 = vld [vmem:[#allocation2 + $0x82] sm:$0xff]
      %v1220 = vld [vmem:[#allocation2 + $0x8a] sm:$0xff]
      %v1221 = vld [vmem:[#allocation2 + $0x92] sm:$0xff]
      %v1222 = vld [vmem:[#allocation2 + $0x9a] sm:$0xff]
      %v1223 = vld [vmem:[#allocation2 + $0xa2] sm:$0xff]
      %v1224 = vld [vmem:[#allocation2 + $0xaa] sm:$0xff]
      %v1225 = vld [vmem:[#allocation2 + $0xb2] sm:$0xff]
      %v1226 = vld [vmem:[#allocation2 + $0xba] sm:$0xff]
      %v1227 = vld [vmem:[#allocation2 + $0xc2] sm:$0xff]
      %v1228 = vld [vmem:[#allocation2 + $0xca] sm:$0xff]
      %v1229 = vld [vmem:[#allocation2 + $0xd2] sm:$0xff]
      %v1230 = vld [vmem:[#allocation2 + $0xda] sm:$0xff]
      %v1231 = vld [vmem:[#allocation2 + $0xe2] sm:$0xff]
      %v1232 = vld [vmem:[#allocation2 + $0xea] sm:$0xff]
      %v1233 = vld [vmem:[#allocation2 + $0xf2] sm:$0xff]
      %v1234 = vld [vmem:[#allocation2 + $0xfa] sm:$0xff]
      %v1235 = vld [vmem:[#allocation2 + $0x102] sm:$0xff]
      %v1236 = vld [vmem:[#allocation2 + $0x10a] sm:$0xff]
      %v1237 = vld [vmem:[#allocation2 + $0x112] sm:$0xff]
      %v1238 = vld [vmem:[#allocation2 + $0x11a] sm:$0xff]
      %v1239 = vpack.c.bf16 %v1204, %v1203
      %v1240 = vpack.c.bf16 %v1206, %v1205
      %v1241 = vpack.c.bf16 %v1208, %v1207
      %v1242 = vpack.c.bf16 %v1210, %v1209
      %v1243 = vpack.c.bf16 %v1212, %v1211
      %v1244 = vpack.c.bf16 %v1214, %v1213
      %v1245 = vpack.c.bf16 %v1216, %v1215
      %v1246 = vpack.c.bf16 %v1218, %v1217
      %v1247 = vpack.c.bf16 %v1220, %v1219
      %v1248 = vpack.c.bf16 %v1222, %v1221
      %v1249 = vpack.c.bf16 %v1224, %v1223
      %v1250 = vpack.c.bf16 %v1226, %v1225
      %v1251 = vpack.c.bf16 %v1228, %v1227
      %v1252 = vpack.c.bf16 %v1230, %v1229
      %v1253 = vpack.c.bf16 %v1232, %v1231
      %v1254 = vpack.c.bf16 %v1234, %v1233
      %v1255 = vpack.c.bf16 %v1236, %v1235
      %v1256 = vpack.c.bf16 %v1238, %v1237
      %v1257 = vld [vmem:[#allocation3] sm:$0xff]
      %v1258 = vld [vmem:[#allocation3 + $0x8] sm:$0xff]
      %v1259 = vld [vmem:[#allocation3 + $0x10] sm:$0xff]
      %v1260 = vld [vmem:[#allocation3 + $0x18] sm:$0xff]
      %v1261 = vld [vmem:[#allocation3 + $0x20] sm:$0xff]
      %v1262 = vld [vmem:[#allocation3 + $0x28] sm:$0xff]
      %v1263 = vld [vmem:[#allocation3 + $0x30] sm:$0xff]
      %v1264 = vld [vmem:[#allocation3 + $0x38] sm:$0xff]
      %v1265 = vld [vmem:[#allocation3 + $0x40] sm:$0xff]
      %v1266 = vld [vmem:[#allocation3 + $0x48] sm:$0xff]
      %v1267 = vld [vmem:[#allocation3 + $0x50] sm:$0xff]
      %v1268 = vld [vmem:[#allocation3 + $0x58] sm:$0xff]
      %v1269 = vld [vmem:[#allocation3 + $0x60] sm:$0xff]
      %v1270 = vld [vmem:[#allocation3 + $0x68] sm:$0xff]
      %v1271 = vld [vmem:[#allocation3 + $0x70] sm:$0xff]
      %v1272 = vld [vmem:[#allocation3 + $0x78] sm:$0xff]
      %v1273 = vld [vmem:[#allocation3 + $0x80] sm:$0xff]
      %v1274 = vld [vmem:[#allocation3 + $0x88] sm:$0xff]
      %v1275 = vld [vmem:[#allocation3 + $0x90] sm:$0xff]
      %v1276 = vld [vmem:[#allocation3 + $0x98] sm:$0xff]
      %v1277 = vld [vmem:[#allocation3 + $0xa0] sm:$0xff]
      %v1278 = vld [vmem:[#allocation3 + $0xa8] sm:$0xff]
      %v1279 = vld [vmem:[#allocation3 + $0xb0] sm:$0xff]
      %v1280 = vld [vmem:[#allocation3 + $0xb8] sm:$0xff]
      %v1281 = vld [vmem:[#allocation3 + $0xc0] sm:$0xff]
      %v1282 = vld [vmem:[#allocation3 + $0xc8] sm:$0xff]
      %v1283 = vld [vmem:[#allocation3 + $0xd0] sm:$0xff]
      %v1284 = vld [vmem:[#allocation3 + $0xd8] sm:$0xff]
      %v1285 = vld [vmem:[#allocation3 + $0xe0] sm:$0xff]
      %v1286 = vld [vmem:[#allocation3 + $0xe8] sm:$0xff]
      %v1287 = vld [vmem:[#allocation3 + $0xf0] sm:$0xff]
      %v1288 = vld [vmem:[#allocation3 + $0xf8] sm:$0xff]
      %v1289 = vld [vmem:[#allocation3 + $0x100] sm:$0xff]
      %v1290 = vld [vmem:[#allocation3 + $0x108] sm:$0xff]
      %v1291 = vld [vmem:[#allocation3 + $0x110] sm:$0xff]
      %v1292 = vld [vmem:[#allocation3 + $0x118] sm:$0xff]
      %s1293 = scalar_lea.vmem %s1, 4
      %v1294 = vld [vmem:[%s1293] sm:$0x3]
      %v1296 = vsel %vm328, %v1239, 0
      %v1299 = vsel %vm328, %v1240, 0
      %v1302 = vsel %vm328, %v1241, 0
      %v1305 = vsel %vm328, %v1242, 0
      %v1308 = vsel %vm328, %v1243, 0
      %v1311 = vsel %vm328, %v1244, 0
      %v1314 = vsel %vm328, %v1245, 0
      %v1317 = vsel %vm328, %v1246, 0
      %v1320 = vsel %vm328, %v1247, 0
      %v1323 = vsel %vm328, %v1248, 0
      %v1326 = vsel %vm328, %v1249, 0
      %v1329 = vsel %vm328, %v1250, 0
      %v1332 = vsel %vm328, %v1251, 0
      %v1335 = vsel %vm328, %v1252, 0
      %v1338 = vsel %vm328, %v1253, 0
      %v1341 = vsel %vm328, %v1254, 0
      %v1344 = vsel %vm328, %v1255, 0
      %v1347 = vsel %vm328, %v1256, 0
      %v1350 = vsel %vm552, %v1294, 0
      %1352 = vmatprep.subr.bf16.mxu0 0
      %1353 = vmatpush1.bf16.msra.mxu0 %v1350
      %1354 = vmatprep.subr.bf16.mxu0 0
      %1355 = vmatpush1.bf16.msra.mxu0 0
      %1356 = vmatprep.subr.bf16.mxu0 0
      %1357 = vmatpush1.bf16.msra.mxu0 0
      %1358 = vmatprep.subr.bf16.mxu0 0
      %1359 = vmatpush1.bf16.msra.mxu0 0
      %1360 = vmatprep.subr.bf16.mxu0 0
      %1361 = vmatpush1.bf16.msra.mxu0 0
      %1362 = vmatprep.subr.bf16.mxu0 0
      %1363 = vmatpush1.bf16.msra.mxu0 0
      %1364 = vmatprep.subr.bf16.mxu0 0
      %1365 = vmatpush1.bf16.msra.mxu0 0
      %1366 = vmatprep.subr.bf16.mxu0 0
      %1367 = vmatpush1.bf16.msra.mxu0 0
      %1368 = vmatprep.subr.bf16.mxu0 0
      %1369 = vmatpush1.bf16.msra.mxu0 0
      %1370 = vmatprep.subr.bf16.mxu0 0
      %1371 = vmatpush1.bf16.msra.mxu0 0
      %1372 = vmatprep.subr.bf16.mxu0 0
      %1373 = vmatpush1.bf16.msra.mxu0 0
      %1374 = vmatprep.subr.bf16.mxu0 0
      %1375 = vmatpush1.bf16.msra.mxu0 0
      %1376 = vmatprep.subr.bf16.mxu0 0
      %1377 = vmatpush1.bf16.msra.mxu0 0
      %1378 = vmatprep.subr.bf16.mxu0 0
      %1379 = vmatpush1.bf16.msra.mxu0 0
      %1380 = vmatprep.subr.bf16.mxu0 0
      %1381 = vmatpush1.bf16.msra.mxu0 0
      %1382 = vmatprep.subr.bf16.mxu0 0
      %1383 = vmatpush1.bf16.msra.mxu0 0
      %1384 = vmatprep.mubr.bf16.mxu0 0
      %1385 = vmatmul.mubr.bf16.gmra.mrb[0].mxu0 %v1296
      %v1386 = vpop.f32.mrb[0].mxu0
      %v1387 = vadd.f32 0.0, %v1386
      %v1388 = vpop.f32.mrb[0].mxu0
      %v1389 = vpop.f32.mrb[0].mxu0
      %v1390 = vadd.f32 0.0, %v1389
      %v1391 = vpop.f32.mrb[0].mxu0
      %1392 = vmatprep.mubr.bf16.mxu0 0
      %1393 = vmatmul.mubr.bf16.gmra.mrb[0].mxu0 %v1299
      %v1394 = vpop.f32.mrb[0].mxu0
      %v1395 = vadd.f32 0.0, %v1394
      %v1396 = vpop.f32.mrb[0].mxu0
      %v1397 = vpop.f32.mrb[0].mxu0
      %v1398 = vadd.f32 0.0, %v1397
      %v1399 = vpop.f32.mrb[0].mxu0
      %1400 = vmatprep.mubr.bf16.mxu0 0
      %1401 = vmatmul.mubr.bf16.gmra.mrb[0].mxu0 %v1302
      %v1402 = vpop.f32.mrb[0].mxu0
      %v1403 = vadd.f32 0.0, %v1402
      %v1404 = vpop.f32.mrb[0].mxu0
      %v1405 = vpop.f32.mrb[0].mxu0
      %v1406 = vadd.f32 0.0, %v1405
      %v1407 = vpop.f32.mrb[0].mxu0
      %1408 = vmatprep.mubr.bf16.mxu0 0
      %1409 = vmatmul.mubr.bf16.gmra.mrb[0].mxu0 %v1305
      %v1410 = vpop.f32.mrb[0].mxu0
      %v1411 = vadd.f32 0.0, %v1410
      %v1412 = vpop.f32.mrb[0].mxu0
      %v1413 = vpop.f32.mrb[0].mxu0
      %v1414 = vadd.f32 0.0, %v1413
      %v1415 = vpop.f32.mrb[0].mxu0
      %1416 = vmatprep.mubr.bf16.mxu0 0
      %1417 = vmatmul.mubr.bf16.gmra.mrb[0].mxu0 %v1308
      %v1418 = vpop.f32.mrb[0].mxu0
      %v1419 = vadd.f32 0.0, %v1418
      %v1420 = vpop.f32.mrb[0].mxu0
      %v1421 = vpop.f32.mrb[0].mxu0
      %v1422 = vadd.f32 0.0, %v1421
      %v1423 = vpop.f32.mrb[0].mxu0
      %1424 = vmatprep.mubr.bf16.mxu0 0
      %1425 = vmatmul.mubr.bf16.gmra.mrb[0].mxu0 %v1311
      %v1426 = vpop.f32.mrb[0].mxu0
      %v1427 = vadd.f32 0.0, %v1426
      %v1428 = vpop.f32.mrb[0].mxu0
      %v1429 = vpop.f32.mrb[0].mxu0
      %v1430 = vadd.f32 0.0, %v1429
      %v1431 = vpop.f32.mrb[0].mxu0
      %1432 = vmatprep.mubr.bf16.mxu0 0
      %1433 = vmatmul.mubr.bf16.gmra.mrb[0].mxu0 %v1314
      %v1434 = vpop.f32.mrb[0].mxu0
      %v1435 = vadd.f32 0.0, %v1434
      %v1436 = vpop.f32.mrb[0].mxu0
      %v1437 = vpop.f32.mrb[0].mxu0
      %v1438 = vadd.f32 0.0, %v1437
      %v1439 = vpop.f32.mrb[0].mxu0
      %1440 = vmatprep.mubr.bf16.mxu0 0
      %1441 = vmatmul.mubr.bf16.gmra.mrb[0].mxu0 %v1317
      %v1442 = vpop.f32.mrb[0].mxu0
      %v1443 = vadd.f32 0.0, %v1442
      %v1444 = vpop.f32.mrb[0].mxu0
      %v1445 = vpop.f32.mrb[0].mxu0
      %v1446 = vadd.f32 0.0, %v1445
      %v1447 = vpop.f32.mrb[0].mxu0
      %1448 = vmatprep.mubr.bf16.mxu0 0
      %1449 = vmatmul.mubr.bf16.gmra.mrb[0].mxu0 %v1320
      %v1450 = vpop.f32.mrb[0].mxu0
      %v1451 = vadd.f32 0.0, %v1450
      %v1452 = vpop.f32.mrb[0].mxu0
      %v1453 = vpop.f32.mrb[0].mxu0
      %v1454 = vadd.f32 0.0, %v1453
      %v1455 = vpop.f32.mrb[0].mxu0
      %1456 = vmatprep.mubr.bf16.mxu0 0
      %1457 = vmatmul.mubr.bf16.gmra.mrb[0].mxu0 %v1323
      %v1458 = vpop.f32.mrb[0].mxu0
      %v1459 = vadd.f32 0.0, %v1458
      %v1460 = vpop.f32.mrb[0].mxu0
      %v1461 = vpop.f32.mrb[0].mxu0
      %v1462 = vadd.f32 0.0, %v1461
      %v1463 = vpop.f32.mrb[0].mxu0
      %1464 = vmatprep.mubr.bf16.mxu0 0
      %1465 = vmatmul.mubr.bf16.gmra.mrb[0].mxu0 %v1326
      %v1466 = vpop.f32.mrb[0].mxu0
      %v1467 = vadd.f32 0.0, %v1466
      %v1468 = vpop.f32.mrb[0].mxu0
      %v1469 = vpop.f32.mrb[0].mxu0
      %v1470 = vadd.f32 0.0, %v1469
      %v1471 = vpop.f32.mrb[0].mxu0
      %1472 = vmatprep.mubr.bf16.mxu0 0
      %1473 = vmatmul.mubr.bf16.gmra.mrb[0].mxu0 %v1329
      %v1474 = vpop.f32.mrb[0].mxu0
      %v1475 = vadd.f32 0.0, %v1474
      %v1476 = vpop.f32.mrb[0].mxu0
      %v1477 = vpop.f32.mrb[0].mxu0
      %v1478 = vadd.f32 0.0, %v1477
      %v1479 = vpop.f32.mrb[0].mxu0
      %1480 = vmatprep.mubr.bf16.mxu0 0
      %1481 = vmatmul.mubr.bf16.gmra.mrb[0].mxu0 %v1332
      %v1482 = vpop.f32.mrb[0].mxu0
      %v1483 = vadd.f32 0.0, %v1482
      %v1484 = vpop.f32.mrb[0].mxu0
      %v1485 = vpop.f32.mrb[0].mxu0
      %v1486 = vadd.f32 0.0, %v1485
      %v1487 = vpop.f32.mrb[0].mxu0
      %1488 = vmatprep.mubr.bf16.mxu0 0
      %1489 = vmatmul.mubr.bf16.gmra.mrb[0].mxu0 %v1335
      %v1490 = vpop.f32.mrb[0].mxu0
      %v1491 = vadd.f32 0.0, %v1490
      %v1492 = vpop.f32.mrb[0].mxu0
      %v1493 = vpop.f32.mrb[0].mxu0
      %v1494 = vadd.f32 0.0, %v1493
      %v1495 = vpop.f32.mrb[0].mxu0
      %1496 = vmatprep.mubr.bf16.mxu0 0
      %1497 = vmatmul.mubr.bf16.gmra.mrb[0].mxu0 %v1338
      %v1498 = vpop.f32.mrb[0].mxu0
      %v1499 = vadd.f32 0.0, %v1498
      %v1500 = vpop.f32.mrb[0].mxu0
      %v1501 = vpop.f32.mrb[0].mxu0
      %v1502 = vadd.f32 0.0, %v1501
      %v1503 = vpop.f32.mrb[0].mxu0
      %1504 = vmatprep.mubr.bf16.mxu0 0
      %1505 = vmatmul.mubr.bf16.gmra.mrb[0].mxu0 %v1341
      %v1506 = vpop.f32.mrb[0].mxu0
      %v1507 = vadd.f32 0.0, %v1506
      %v1508 = vpop.f32.mrb[0].mxu0
      %v1509 = vpop.f32.mrb[0].mxu0
      %v1510 = vadd.f32 0.0, %v1509
      %v1511 = vpop.f32.mrb[0].mxu0
      %1512 = vmatprep.mubr.bf16.mxu0 0
      %1513 = vmatmul.mubr.bf16.gmra.mrb[0].mxu0 %v1344
      %v1514 = vpop.f32.mrb[0].mxu0
      %v1515 = vadd.f32 0.0, %v1514
      %v1516 = vpop.f32.mrb[0].mxu0
      %v1517 = vpop.f32.mrb[0].mxu0
      %v1518 = vadd.f32 0.0, %v1517
      %v1519 = vpop.f32.mrb[0].mxu0
      %1520 = vmatprep.mubr.bf16.mxu0 0
      %1521 = vmatmul.mubr.bf16.gmra.mrb[0].mxu0 %v1347
      %v1522 = vpop.f32.mrb[0].mxu0
      %v1523 = vadd.f32 0.0, %v1522
      %v1524 = vpop.f32.mrb[0].mxu0
      %v1525 = vpop.f32.mrb[0].mxu0
      %v1526 = vadd.f32 0.0, %v1525
      %v1527 = vpop.f32.mrb[0].mxu0
      %1528 = vdwg.mxu0
      %v1529 = vadd.f32 %v1257, %v1387
      %v1530 = vadd.f32 %v1258, %v1390
      %v1531 = vadd.f32 %v1259, %v1395
      %v1532 = vadd.f32 %v1260, %v1398
      %v1533 = vadd.f32 %v1261, %v1403
      %v1534 = vadd.f32 %v1262, %v1406
      %v1535 = vadd.f32 %v1263, %v1411
      %v1536 = vadd.f32 %v1264, %v1414
      %v1537 = vadd.f32 %v1265, %v1419
      %v1538 = vadd.f32 %v1266, %v1422
      %v1539 = vadd.f32 %v1267, %v1427
      %v1540 = vadd.f32 %v1268, %v1430
      %v1541 = vadd.f32 %v1269, %v1435
      %v1542 = vadd.f32 %v1270, %v1438
      %v1543 = vadd.f32 %v1271, %v1443
      %v1544 = vadd.f32 %v1272, %v1446
      %v1545 = vadd.f32 %v1273, %v1451
      %v1546 = vadd.f32 %v1274, %v1454
      %v1547 = vadd.f32 %v1275, %v1459
      %v1548 = vadd.f32 %v1276, %v1462
      %v1549 = vadd.f32 %v1277, %v1467
      %v1550 = vadd.f32 %v1278, %v1470
      %v1551 = vadd.f32 %v1279, %v1475
      %v1552 = vadd.f32 %v1280, %v1478
      %v1553 = vadd.f32 %v1281, %v1483
      %v1554 = vadd.f32 %v1282, %v1486
      %v1555 = vadd.f32 %v1283, %v1491
      %v1556 = vadd.f32 %v1284, %v1494
      %v1557 = vadd.f32 %v1285, %v1499
      %v1558 = vadd.f32 %v1286, %v1502
      %v1559 = vadd.f32 %v1287, %v1507
      %v1560 = vadd.f32 %v1288, %v1510
      %v1561 = vadd.f32 %v1289, %v1515
      %v1562 = vadd.f32 %v1290, %v1518
      %v1563 = vadd.f32 %v1291, %v1523
      %v1564 = vadd.f32 %v1292, %v1526
      %1565 = vst.msk [vmem:[#allocation3] sm:$0xff] %vm370, %v1529
      %1566 = vst.msk [vmem:[#allocation3 + $0x8] sm:$0xff] %vm370, %v1530
      %1567 = vst.msk [vmem:[#allocation3 + $0x10] sm:$0xff] %vm370, %v1531
      %1568 = vst.msk [vmem:[#allocation3 + $0x18] sm:$0xff] %vm370, %v1532
      %1569 = vst.msk [vmem:[#allocation3 + $0x20] sm:$0xff] %vm370, %v1533
      %1570 = vst.msk [vmem:[#allocation3 + $0x28] sm:$0xff] %vm370, %v1534
      %1571 = vst.msk [vmem:[#allocation3 + $0x30] sm:$0xff] %vm370, %v1535
      %1572 = vst.msk [vmem:[#allocation3 + $0x38] sm:$0xff] %vm370, %v1536
      %1573 = vst.msk [vmem:[#allocation3 + $0x40] sm:$0xff] %vm370, %v1537
      %1574 = vst.msk [vmem:[#allocation3 + $0x48] sm:$0xff] %vm370, %v1538
      %1575 = vst.msk [vmem:[#allocation3 + $0x50] sm:$0xff] %vm370, %v1539
      %1576 = vst.msk [vmem:[#allocation3 + $0x58] sm:$0xff] %vm370, %v1540
      %1577 = vst.msk [vmem:[#allocation3 + $0x60] sm:$0xff] %vm370, %v1541
      %1578 = vst.msk [vmem:[#allocation3 + $0x68] sm:$0xff] %vm370, %v1542
      %1579 = vst.msk [vmem:[#allocation3 + $0x70] sm:$0xff] %vm370, %v1543
      %1580 = vst.msk [vmem:[#allocation3 + $0x78] sm:$0xff] %vm370, %v1544
      %1581 = vst.msk [vmem:[#allocation3 + $0x80] sm:$0xff] %vm370, %v1545
      %1582 = vst.msk [vmem:[#allocation3 + $0x88] sm:$0xff] %vm370, %v1546
      %1583 = vst.msk [vmem:[#allocation3 + $0x90] sm:$0xff] %vm370, %v1547
      %1584 = vst.msk [vmem:[#allocation3 + $0x98] sm:$0xff] %vm370, %v1548
      %1585 = vst.msk [vmem:[#allocation3 + $0xa0] sm:$0xff] %vm370, %v1549
      %1586 = vst.msk [vmem:[#allocation3 + $0xa8] sm:$0xff] %vm370, %v1550
      %1587 = vst.msk [vmem:[#allocation3 + $0xb0] sm:$0xff] %vm370, %v1551
      %1588 = vst.msk [vmem:[#allocation3 + $0xb8] sm:$0xff] %vm370, %v1552
      %1589 = vst.msk [vmem:[#allocation3 + $0xc0] sm:$0xff] %vm370, %v1553
      %1590 = vst.msk [vmem:[#allocation3 + $0xc8] sm:$0xff] %vm370, %v1554
      %1591 = vst.msk [vmem:[#allocation3 + $0xd0] sm:$0xff] %vm370, %v1555
      %1592 = vst.msk [vmem:[#allocation3 + $0xd8] sm:$0xff] %vm370, %v1556
      %1593 = vst.msk [vmem:[#allocation3 + $0xe0] sm:$0xff] %vm370, %v1557
      %1594 = vst.msk [vmem:[#allocation3 + $0xe8] sm:$0xff] %vm370, %v1558
      %1595 = vst.msk [vmem:[#allocation3 + $0xf0] sm:$0xff] %vm370, %v1559
      %1596 = vst.msk [vmem:[#allocation3 + $0xf8] sm:$0xff] %vm370, %v1560
      %1597 = vst.msk [vmem:[#allocation3 + $0x100] sm:$0xff] %vm370, %v1561
      %1598 = vst.msk [vmem:[#allocation3 + $0x108] sm:$0xff] %vm370, %v1562
      %1599 = vst.msk [vmem:[#allocation3 + $0x110] sm:$0xff] %vm370, %v1563
      %1600 = vst.msk [vmem:[#allocation3 + $0x118] sm:$0xff] %vm370, %v1564
      %v1601 = vld [vmem:[#allocation2 + $0x12] sm:$0xff]
      %v1602 = vld [vmem:[#allocation2 + $0x1a] sm:$0xff]
      %v1603 = vld [vmem:[#allocation2 + $0x22] sm:$0xff]
      %v1604 = vld [vmem:[#allocation2 + $0x2a] sm:$0xff]
      %v1605 = vld [vmem:[#allocation2 + $0x32] sm:$0xff]
      %v1606 = vld [vmem:[#allocation2 + $0x3a] sm:$0xff]
      %v1607 = vld [vmem:[#allocation2 + $0x42] sm:$0xff]
      %v1608 = vld [vmem:[#allocation2 + $0x4a] sm:$0xff]
      %v1609 = vld [vmem:[#allocation2 + $0x52] sm:$0xff]
      %v1610 = vld [vmem:[#allocation2 + $0x5a] sm:$0xff]
      %v1611 = vld [vmem:[#allocation2 + $0x62] sm:$0xff]
      %v1612 = vld [vmem:[#allocation2 + $0x6a] sm:$0xff]
      %v1613 = vld [vmem:[#allocation2 + $0x72] sm:$0xff]
      %v1614 = vld [vmem:[#allocation2 + $0x7a] sm:$0xff]
      %v1615 = vld [vmem:[#allocation2 + $0x82] sm:$0xff]
      %v1616 = vld [vmem:[#allocation2 + $0x8a] sm:$0xff]
      %v1617 = vld [vmem:[#allocation2 + $0x92] sm:$0xff]
      %v1618 = vld [vmem:[#allocation2 + $0x9a] sm:$0xff]
      %v1619 = vld [vmem:[#allocation2 + $0xa2] sm:$0xff]
      %v1620 = vld [vmem:[#allocation2 + $0xaa] sm:$0xff]
      %v1621 = vld [vmem:[#allocation2 + $0xb2] sm:$0xff]
      %v1622 = vld [vmem:[#allocation2 + $0xba] sm:$0xff]
      %v1623 = vld [vmem:[#allocation2 + $0xc2] sm:$0xff]
      %v1624 = vld [vmem:[#allocation2 + $0xca] sm:$0xff]
      %v1625 = vld [vmem:[#allocation2 + $0xd2] sm:$0xff]
      %v1626 = vld [vmem:[#allocation2 + $0xda] sm:$0xff]
      %v1627 = vld [vmem:[#allocation2 + $0xe2] sm:$0xff]
      %v1628 = vld [vmem:[#allocation2 + $0xea] sm:$0xff]
      %v1629 = vld [vmem:[#allocation2 + $0xf2] sm:$0xff]
      %v1630 = vld [vmem:[#allocation2 + $0xfa] sm:$0xff]
      %v1631 = vld [vmem:[#allocation2 + $0x102] sm:$0xff]
      %v1632 = vld [vmem:[#allocation2 + $0x10a] sm:$0xff]
      %v1633 = vld [vmem:[#allocation2 + $0x112] sm:$0xff]
      %v1634 = vld [vmem:[#allocation2 + $0x11a] sm:$0xff]
      %v1635 = vld [vmem:[#allocation2 + $0x122] sm:$0xff]
      %v1636 = vld [vmem:[#allocation2 + $0x12a] sm:$0xff]
      %v1637 = vpack.c.bf16 %v1602, %v1601
      %v1638 = vpack.c.bf16 %v1604, %v1603
      %v1639 = vpack.c.bf16 %v1606, %v1605
      %v1640 = vpack.c.bf16 %v1608, %v1607
      %v1641 = vpack.c.bf16 %v1610, %v1609
      %v1642 = vpack.c.bf16 %v1612, %v1611
      %v1643 = vpack.c.bf16 %v1614, %v1613
      %v1644 = vpack.c.bf16 %v1616, %v1615
      %v1645 = vpack.c.bf16 %v1618, %v1617
      %v1646 = vpack.c.bf16 %v1620, %v1619
      %v1647 = vpack.c.bf16 %v1622, %v1621
      %v1648 = vpack.c.bf16 %v1624, %v1623
      %v1649 = vpack.c.bf16 %v1626, %v1625
      %v1650 = vpack.c.bf16 %v1628, %v1627
      %v1651 = vpack.c.bf16 %v1630, %v1629
      %v1652 = vpack.c.bf16 %v1632, %v1631
      %v1653 = vpack.c.bf16 %v1634, %v1633
      %v1654 = vpack.c.bf16 %v1636, %v1635
      %v1655 = vld [vmem:[#allocation3] sm:$0xff]
      %v1656 = vld [vmem:[#allocation3 + $0x8] sm:$0xff]
      %v1657 = vld [vmem:[#allocation3 + $0x10] sm:$0xff]
      %v1658 = vld [vmem:[#allocation3 + $0x18] sm:$0xff]
      %v1659 = vld [vmem:[#allocation3 + $0x20] sm:$0xff]
      %v1660 = vld [vmem:[#allocation3 + $0x28] sm:$0xff]
      %v1661 = vld [vmem:[#allocation3 + $0x30] sm:$0xff]
      %v1662 = vld [vmem:[#allocation3 + $0x38] sm:$0xff]
      %v1663 = vld [vmem:[#allocation3 + $0x40] sm:$0xff]
      %v1664 = vld [vmem:[#allocation3 + $0x48] sm:$0xff]
      %v1665 = vld [vmem:[#allocation3 + $0x50] sm:$0xff]
      %v1666 = vld [vmem:[#allocation3 + $0x58] sm:$0xff]
      %v1667 = vld [vmem:[#allocation3 + $0x60] sm:$0xff]
      %v1668 = vld [vmem:[#allocation3 + $0x68] sm:$0xff]
      %v1669 = vld [vmem:[#allocation3 + $0x70] sm:$0xff]
      %v1670 = vld [vmem:[#allocation3 + $0x78] sm:$0xff]
      %v1671 = vld [vmem:[#allocation3 + $0x80] sm:$0xff]
      %v1672 = vld [vmem:[#allocation3 + $0x88] sm:$0xff]
      %v1673 = vld [vmem:[#allocation3 + $0x90] sm:$0xff]
      %v1674 = vld [vmem:[#allocation3 + $0x98] sm:$0xff]
      %v1675 = vld [vmem:[#allocation3 + $0xa0] sm:$0xff]
      %v1676 = vld [vmem:[#allocation3 + $0xa8] sm:$0xff]
      %v1677 = vld [vmem:[#allocation3 + $0xb0] sm:$0xff]
      %v1678 = vld [vmem:[#allocation3 + $0xb8] sm:$0xff]
      %v1679 = vld [vmem:[#allocation3 + $0xc0] sm:$0xff]
      %v1680 = vld [vmem:[#allocation3 + $0xc8] sm:$0xff]
      %v1681 = vld [vmem:[#allocation3 + $0xd0] sm:$0xff]
      %v1682 = vld [vmem:[#allocation3 + $0xd8] sm:$0xff]
      %v1683 = vld [vmem:[#allocation3 + $0xe0] sm:$0xff]
      %v1684 = vld [vmem:[#allocation3 + $0xe8] sm:$0xff]
      %v1685 = vld [vmem:[#allocation3 + $0xf0] sm:$0xff]
      %v1686 = vld [vmem:[#allocation3 + $0xf8] sm:$0xff]
      %v1687 = vld [vmem:[#allocation3 + $0x100] sm:$0xff]
      %v1688 = vld [vmem:[#allocation3 + $0x108] sm:$0xff]
      %v1689 = vld [vmem:[#allocation3 + $0x110] sm:$0xff]
      %v1690 = vld [vmem:[#allocation3 + $0x118] sm:$0xff]
      %s1691 = scalar_lea.vmem %s1, 6
      %v1692 = vld [vmem:[%s1691] sm:$0x3]
      %v1694 = vsel %vm328, %v1637, 0
      %v1697 = vsel %vm328, %v1638, 0
      %v1700 = vsel %vm328, %v1639, 0
      %v1703 = vsel %vm328, %v1640, 0
      %v1706 = vsel %vm328, %v1641, 0
      %v1709 = vsel %vm328, %v1642, 0
      %v1712 = vsel %vm328, %v1643, 0
      %v1715 = vsel %vm328, %v1644, 0
      %v1718 = vsel %vm328, %v1645, 0
      %v1721 = vsel %vm328, %v1646, 0
      %v1724 = vsel %vm328, %v1647, 0
      %v1727 = vsel %vm328, %v1648, 0
      %v1730 = vsel %vm328, %v1649, 0
      %v1733 = vsel %vm328, %v1650, 0
      %v1736 = vsel %vm328, %v1651, 0
      %v1739 = vsel %vm328, %v1652, 0
      %v1742 = vsel %vm328, %v1653, 0
      %v1745 = vsel %vm328, %v1654, 0
      %v1748 = vsel %vm552, %v1692, 0
      %1750 = vmatprep.subr.bf16.mxu0 0
      %1751 = vmatpush1.bf16.msra.mxu0 %v1748
      %1752 = vmatprep.subr.bf16.mxu0 0
      %1753 = vmatpush1.bf16.msra.mxu0 0
      %1754 = vmatprep.subr.bf16.mxu0 0
      %1755 = vmatpush1.bf16.msra.mxu0 0
      %1756 = vmatprep.subr.bf16.mxu0 0
      %1757 = vmatpush1.bf16.msra.mxu0 0
      %1758 = vmatprep.subr.bf16.mxu0 0
      %1759 = vmatpush1.bf16.msra.mxu0 0
      %1760 = vmatprep.subr.bf16.mxu0 0
      %1761 = vmatpush1.bf16.msra.mxu0 0
      %1762 = vmatprep.subr.bf16.mxu0 0
      %1763 = vmatpush1.bf16.msra.mxu0 0
      %1764 = vmatprep.subr.bf16.mxu0 0
      %1765 = vmatpush1.bf16.msra.mxu0 0
      %1766 = vmatprep.subr.bf16.mxu0 0
      %1767 = vmatpush1.bf16.msra.mxu0 0
      %1768 = vmatprep.subr.bf16.mxu0 0
      %1769 = vmatpush1.bf16.msra.mxu0 0
      %1770 = vmatprep.subr.bf16.mxu0 0
      %1771 = vmatpush1.bf16.msra.mxu0 0
      %1772 = vmatprep.subr.bf16.mxu0 0
      %1773 = vmatpush1.bf16.msra.mxu0 0
      %1774 = vmatprep.subr.bf16.mxu0 0
      %1775 = vmatpush1.bf16.msra.mxu0 0
      %1776 = vmatprep.subr.bf16.mxu0 0
      %1777 = vmatpush1.bf16.msra.mxu0 0
      %1778 = vmatprep.subr.bf16.mxu0 0
      %1779 = vmatpush1.bf16.msra.mxu0 0
      %1780 = vmatprep.subr.bf16.mxu0 0
      %1781 = vmatpush1.bf16.msra.mxu0 0
      %1782 = vmatprep.mubr.bf16.mxu0 0
      %1783 = vmatmul.mubr.bf16.gmra.mrb[0].mxu0 %v1694
      %v1784 = vpop.f32.mrb[0].mxu0
      %v1785 = vadd.f32 0.0, %v1784
      %v1786 = vpop.f32.mrb[0].mxu0
      %v1787 = vpop.f32.mrb[0].mxu0
      %v1788 = vadd.f32 0.0, %v1787
      %v1789 = vpop.f32.mrb[0].mxu0
      %1790 = vmatprep.mubr.bf16.mxu0 0
      %1791 = vmatmul.mubr.bf16.gmra.mrb[0].mxu0 %v1697
      %v1792 = vpop.f32.mrb[0].mxu0
      %v1793 = vadd.f32 0.0, %v1792
      %v1794 = vpop.f32.mrb[0].mxu0
      %v1795 = vpop.f32.mrb[0].mxu0
      %v1796 = vadd.f32 0.0, %v1795
      %v1797 = vpop.f32.mrb[0].mxu0
      %1798 = vmatprep.mubr.bf16.mxu0 0
      %1799 = vmatmul.mubr.bf16.gmra.mrb[0].mxu0 %v1700
      %v1800 = vpop.f32.mrb[0].mxu0
      %v1801 = vadd.f32 0.0, %v1800
      %v1802 = vpop.f32.mrb[0].mxu0
      %v1803 = vpop.f32.mrb[0].mxu0
      %v1804 = vadd.f32 0.0, %v1803
      %v1805 = vpop.f32.mrb[0].mxu0
      %1806 = vmatprep.mubr.bf16.mxu0 0
      %1807 = vmatmul.mubr.bf16.gmra.mrb[0].mxu0 %v1703
      %v1808 = vpop.f32.mrb[0].mxu0
      %v1809 = vadd.f32 0.0, %v1808
      %v1810 = vpop.f32.mrb[0].mxu0
      %v1811 = vpop.f32.mrb[0].mxu0
      %v1812 = vadd.f32 0.0, %v1811
      %v1813 = vpop.f32.mrb[0].mxu0
      %1814 = vmatprep.mubr.bf16.mxu0 0
      %1815 = vmatmul.mubr.bf16.gmra.mrb[0].mxu0 %v1706
      %v1816 = vpop.f32.mrb[0].mxu0
      %v1817 = vadd.f32 0.0, %v1816
      %v1818 = vpop.f32.mrb[0].mxu0
      %v1819 = vpop.f32.mrb[0].mxu0
      %v1820 = vadd.f32 0.0, %v1819
      %v1821 = vpop.f32.mrb[0].mxu0
      %1822 = vmatprep.mubr.bf16.mxu0 0
      %1823 = vmatmul.mubr.bf16.gmra.mrb[0].mxu0 %v1709
      %v1824 = vpop.f32.mrb[0].mxu0
      %v1825 = vadd.f32 0.0, %v1824
      %v1826 = vpop.f32.mrb[0].mxu0
      %v1827 = vpop.f32.mrb[0].mxu0
      %v1828 = vadd.f32 0.0, %v1827
      %v1829 = vpop.f32.mrb[0].mxu0
      %1830 = vmatprep.mubr.bf16.mxu0 0
      %1831 = vmatmul.mubr.bf16.gmra.mrb[0].mxu0 %v1712
      %v1832 = vpop.f32.mrb[0].mxu0
      %v1833 = vadd.f32 0.0, %v1832
      %v1834 = vpop.f32.mrb[0].mxu0
      %v1835 = vpop.f32.mrb[0].mxu0
      %v1836 = vadd.f32 0.0, %v1835
      %v1837 = vpop.f32.mrb[0].mxu0
      %1838 = vmatprep.mubr.bf16.mxu0 0
      %1839 = vmatmul.mubr.bf16.gmra.mrb[0].mxu0 %v1715
      %v1840 = vpop.f32.mrb[0].mxu0
      %v1841 = vadd.f32 0.0, %v1840
      %v1842 = vpop.f32.mrb[0].mxu0
      %v1843 = vpop.f32.mrb[0].mxu0
      %v1844 = vadd.f32 0.0, %v1843
      %v1845 = vpop.f32.mrb[0].mxu0
      %1846 = vmatprep.mubr.bf16.mxu0 0
      %1847 = vmatmul.mubr.bf16.gmra.mrb[0].mxu0 %v1718
      %v1848 = vpop.f32.mrb[0].mxu0
      %v1849 = vadd.f32 0.0, %v1848
      %v1850 = vpop.f32.mrb[0].mxu0
      %v1851 = vpop.f32.mrb[0].mxu0
      %v1852 = vadd.f32 0.0, %v1851
      %v1853 = vpop.f32.mrb[0].mxu0
      %1854 = vmatprep.mubr.bf16.mxu0 0
      %1855 = vmatmul.mubr.bf16.gmra.mrb[0].mxu0 %v1721
      %v1856 = vpop.f32.mrb[0].mxu0
      %v1857 = vadd.f32 0.0, %v1856
      %v1858 = vpop.f32.mrb[0].mxu0
      %v1859 = vpop.f32.mrb[0].mxu0
      %v1860 = vadd.f32 0.0, %v1859
      %v1861 = vpop.f32.mrb[0].mxu0
      %1862 = vmatprep.mubr.bf16.mxu0 0
      %1863 = vmatmul.mubr.bf16.gmra.mrb[0].mxu0 %v1724
      %v1864 = vpop.f32.mrb[0].mxu0
      %v1865 = vadd.f32 0.0, %v1864
      %v1866 = vpop.f32.mrb[0].mxu0
      %v1867 = vpop.f32.mrb[0].mxu0
      %v1868 = vadd.f32 0.0, %v1867
      %v1869 = vpop.f32.mrb[0].mxu0
      %1870 = vmatprep.mubr.bf16.mxu0 0
      %1871 = vmatmul.mubr.bf16.gmra.mrb[0].mxu0 %v1727
      %v1872 = vpop.f32.mrb[0].mxu0
      %v1873 = vadd.f32 0.0, %v1872
      %v1874 = vpop.f32.mrb[0].mxu0
      %v1875 = vpop.f32.mrb[0].mxu0
      %v1876 = vadd.f32 0.0, %v1875
      %v1877 = vpop.f32.mrb[0].mxu0
      %1878 = vmatprep.mubr.bf16.mxu0 0
      %1879 = vmatmul.mubr.bf16.gmra.mrb[0].mxu0 %v1730
      %v1880 = vpop.f32.mrb[0].mxu0
      %v1881 = vadd.f32 0.0, %v1880
      %v1882 = vpop.f32.mrb[0].mxu0
      %v1883 = vpop.f32.mrb[0].mxu0
      %v1884 = vadd.f32 0.0, %v1883
      %v1885 = vpop.f32.mrb[0].mxu0
      %1886 = vmatprep.mubr.bf16.mxu0 0
      %1887 = vmatmul.mubr.bf16.gmra.mrb[0].mxu0 %v1733
      %v1888 = vpop.f32.mrb[0].mxu0
      %v1889 = vadd.f32 0.0, %v1888
      %v1890 = vpop.f32.mrb[0].mxu0
      %v1891 = vpop.f32.mrb[0].mxu0
      %v1892 = vadd.f32 0.0, %v1891
      %v1893 = vpop.f32.mrb[0].mxu0
      %1894 = vmatprep.mubr.bf16.mxu0 0
      %1895 = vmatmul.mubr.bf16.gmra.mrb[0].mxu0 %v1736
      %v1896 = vpop.f32.mrb[0].mxu0
      %v1897 = vadd.f32 0.0, %v1896
      %v1898 = vpop.f32.mrb[0].mxu0
      %v1899 = vpop.f32.mrb[0].mxu0
      %v1900 = vadd.f32 0.0, %v1899
      %v1901 = vpop.f32.mrb[0].mxu0
      %1902 = vmatprep.mubr.bf16.mxu0 0
      %1903 = vmatmul.mubr.bf16.gmra.mrb[0].mxu0 %v1739
      %v1904 = vpop.f32.mrb[0].mxu0
      %v1905 = vadd.f32 0.0, %v1904
      %v1906 = vpop.f32.mrb[0].mxu0
      %v1907 = vpop.f32.mrb[0].mxu0
      %v1908 = vadd.f32 0.0, %v1907
      %v1909 = vpop.f32.mrb[0].mxu0
      %1910 = vmatprep.mubr.bf16.mxu0 0
      %1911 = vmatmul.mubr.bf16.gmra.mrb[0].mxu0 %v1742
      %v1912 = vpop.f32.mrb[0].mxu0
      %v1913 = vadd.f32 0.0, %v1912
      %v1914 = vpop.f32.mrb[0].mxu0
      %v1915 = vpop.f32.mrb[0].mxu0
      %v1916 = vadd.f32 0.0, %v1915
      %v1917 = vpop.f32.mrb[0].mxu0
      %1918 = vmatprep.mubr.bf16.mxu0 0
      %1919 = vmatmul.mubr.bf16.gmra.mrb[0].mxu0 %v1745
      %v1920 = vpop.f32.mrb[0].mxu0
      %v1921 = vadd.f32 0.0, %v1920
      %v1922 = vpop.f32.mrb[0].mxu0
      %v1923 = vpop.f32.mrb[0].mxu0
      %v1924 = vadd.f32 0.0, %v1923
      %v1925 = vpop.f32.mrb[0].mxu0
      %1926 = vdwg.mxu0
      %v1927 = vadd.f32 %v1655, %v1785
      %v1928 = vadd.f32 %v1656, %v1788
      %v1929 = vadd.f32 %v1657, %v1793
      %v1930 = vadd.f32 %v1658, %v1796
      %v1931 = vadd.f32 %v1659, %v1801
      %v1932 = vadd.f32 %v1660, %v1804
      %v1933 = vadd.f32 %v1661, %v1809
      %v1934 = vadd.f32 %v1662, %v1812
      %v1935 = vadd.f32 %v1663, %v1817
      %v1936 = vadd.f32 %v1664, %v1820
      %v1937 = vadd.f32 %v1665, %v1825
      %v1938 = vadd.f32 %v1666, %v1828
      %v1939 = vadd.f32 %v1667, %v1833
      %v1940 = vadd.f32 %v1668, %v1836
      %v1941 = vadd.f32 %v1669, %v1841
      %v1942 = vadd.f32 %v1670, %v1844
      %v1943 = vadd.f32 %v1671, %v1849
      %v1944 = vadd.f32 %v1672, %v1852
      %v1945 = vadd.f32 %v1673, %v1857
      %v1946 = vadd.f32 %v1674, %v1860
      %v1947 = vadd.f32 %v1675, %v1865
      %v1948 = vadd.f32 %v1676, %v1868
      %v1949 = vadd.f32 %v1677, %v1873
      %v1950 = vadd.f32 %v1678, %v1876
      %v1951 = vadd.f32 %v1679, %v1881
      %v1952 = vadd.f32 %v1680, %v1884
      %v1953 = vadd.f32 %v1681, %v1889
      %v1954 = vadd.f32 %v1682, %v1892
      %v1955 = vadd.f32 %v1683, %v1897
      %v1956 = vadd.f32 %v1684, %v1900
      %v1957 = vadd.f32 %v1685, %v1905
      %v1958 = vadd.f32 %v1686, %v1908
      %v1959 = vadd.f32 %v1687, %v1913
      %v1960 = vadd.f32 %v1688, %v1916
      %v1961 = vadd.f32 %v1689, %v1921
      %v1962 = vadd.f32 %v1690, %v1924
      %1963 = vst.msk [vmem:[#allocation3] sm:$0xff] %vm370, %v1927
      %1964 = vst.msk [vmem:[#allocation3 + $0x8] sm:$0xff] %vm370, %v1928
      %1965 = vst.msk [vmem:[#allocation3 + $0x10] sm:$0xff] %vm370, %v1929
      %1966 = vst.msk [vmem:[#allocation3 + $0x18] sm:$0xff] %vm370, %v1930
      %1967 = vst.msk [vmem:[#allocation3 + $0x20] sm:$0xff] %vm370, %v1931
      %1968 = vst.msk [vmem:[#allocation3 + $0x28] sm:$0xff] %vm370, %v1932
      %1969 = vst.msk [vmem:[#allocation3 + $0x30] sm:$0xff] %vm370, %v1933
      %1970 = vst.msk [vmem:[#allocation3 + $0x38] sm:$0xff] %vm370, %v1934
      %1971 = vst.msk [vmem:[#allocation3 + $0x40] sm:$0xff] %vm370, %v1935
      %1972 = vst.msk [vmem:[#allocation3 + $0x48] sm:$0xff] %vm370, %v1936
      %1973 = vst.msk [vmem:[#allocation3 + $0x50] sm:$0xff] %vm370, %v1937
      %1974 = vst.msk [vmem:[#allocation3 + $0x58] sm:$0xff] %vm370, %v1938
      %1975 = vst.msk [vmem:[#allocation3 + $0x60] sm:$0xff] %vm370, %v1939
      %1976 = vst.msk [vmem:[#allocation3 + $0x68] sm:$0xff] %vm370, %v1940
      %1977 = vst.msk [vmem:[#allocation3 + $0x70] sm:$0xff] %vm370, %v1941
      %1978 = vst.msk [vmem:[#allocation3 + $0x78] sm:$0xff] %vm370, %v1942
      %1979 = vst.msk [vmem:[#allocation3 + $0x80] sm:$0xff] %vm370, %v1943
      %1980 = vst.msk [vmem:[#allocation3 + $0x88] sm:$0xff] %vm370, %v1944
      %1981 = vst.msk [vmem:[#allocation3 + $0x90] sm:$0xff] %vm370, %v1945
      %1982 = vst.msk [vmem:[#allocation3 + $0x98] sm:$0xff] %vm370, %v1946
      %1983 = vst.msk [vmem:[#allocation3 + $0xa0] sm:$0xff] %vm370, %v1947
      %1984 = vst.msk [vmem:[#allocation3 + $0xa8] sm:$0xff] %vm370, %v1948
      %1985 = vst.msk [vmem:[#allocation3 + $0xb0] sm:$0xff] %vm370, %v1949
      %1986 = vst.msk [vmem:[#allocation3 + $0xb8] sm:$0xff] %vm370, %v1950
      %1987 = vst.msk [vmem:[#allocation3 + $0xc0] sm:$0xff] %vm370, %v1951
      %1988 = vst.msk [vmem:[#allocation3 + $0xc8] sm:$0xff] %vm370, %v1952
      %1989 = vst.msk [vmem:[#allocation3 + $0xd0] sm:$0xff] %vm370, %v1953
      %1990 = vst.msk [vmem:[#allocation3 + $0xd8] sm:$0xff] %vm370, %v1954
      %1991 = vst.msk [vmem:[#allocation3 + $0xe0] sm:$0xff] %vm370, %v1955
      %1992 = vst.msk [vmem:[#allocation3 + $0xe8] sm:$0xff] %vm370, %v1956
      %1993 = vst.msk [vmem:[#allocation3 + $0xf0] sm:$0xff] %vm370, %v1957
      %1994 = vst.msk [vmem:[#allocation3 + $0xf8] sm:$0xff] %vm370, %v1958
      %1995 = vst.msk [vmem:[#allocation3 + $0x100] sm:$0xff] %vm370, %v1959
      %1996 = vst.msk [vmem:[#allocation3 + $0x108] sm:$0xff] %vm370, %v1960
      %1997 = vst.msk [vmem:[#allocation3 + $0x110] sm:$0xff] %vm370, %v1961
      %1998 = vst.msk [vmem:[#allocation3 + $0x118] sm:$0xff] %vm370, %v1962
      %v1999 = vld [vmem:[#allocation2 + $0x13] sm:$0xff]
      %v2000 = vld [vmem:[#allocation2 + $0x1b] sm:$0xff]
      %v2001 = vld [vmem:[#allocation2 + $0x23] sm:$0xff]
      %v2002 = vld [vmem:[#allocation2 + $0x2b] sm:$0xff]
      %v2003 = vld [vmem:[#allocation2 + $0x33] sm:$0xff]
      %v2004 = vld [vmem:[#allocation2 + $0x3b] sm:$0xff]
      %v2005 = vld [vmem:[#allocation2 + $0x43] sm:$0xff]
      %v2006 = vld [vmem:[#allocation2 + $0x4b] sm:$0xff]
      %v2007 = vld [vmem:[#allocation2 + $0x53] sm:$0xff]
      %v2008 = vld [vmem:[#allocation2 + $0x5b] sm:$0xff]
      %v2009 = vld [vmem:[#allocation2 + $0x63] sm:$0xff]
      %v2010 = vld [vmem:[#allocation2 + $0x6b] sm:$0xff]
      %v2011 = vld [vmem:[#allocation2 + $0x73] sm:$0xff]
      %v2012 = vld [vmem:[#allocation2 + $0x7b] sm:$0xff]
      %v2013 = vld [vmem:[#allocation2 + $0x83] sm:$0xff]
      %v2014 = vld [vmem:[#allocation2 + $0x8b] sm:$0xff]
      %v2015 = vld [vmem:[#allocation2 + $0x93] sm:$0xff]
      %v2016 = vld [vmem:[#allocation2 + $0x9b] sm:$0xff]
      %v2017 = vld [vmem:[#allocation2 + $0xa3] sm:$0xff]
      %v2018 = vld [vmem:[#allocation2 + $0xab] sm:$0xff]
      %v2019 = vld [vmem:[#allocation2 + $0xb3] sm:$0xff]
      %v2020 = vld [vmem:[#allocation2 + $0xbb] sm:$0xff]
      %v2021 = vld [vmem:[#allocation2 + $0xc3] sm:$0xff]
      %v2022 = vld [vmem:[#allocation2 + $0xcb] sm:$0xff]
      %v2023 = vld [vmem:[#allocation2 + $0xd3] sm:$0xff]
      %v2024 = vld [vmem:[#allocation2 + $0xdb] sm:$0xff]
      %v2025 = vld [vmem:[#allocation2 + $0xe3] sm:$0xff]
      %v2026 = vld [vmem:[#allocation2 + $0xeb] sm:$0xff]
      %v2027 = vld [vmem:[#allocation2 + $0xf3] sm:$0xff]
      %v2028 = vld [vmem:[#allocation2 + $0xfb] sm:$0xff]
      %v2029 = vld [vmem:[#allocation2 + $0x103] sm:$0xff]
      %v2030 = vld [vmem:[#allocation2 + $0x10b] sm:$0xff]
      %v2031 = vld [vmem:[#allocation2 + $0x113] sm:$0xff]
      %v2032 = vld [vmem:[#allocation2 + $0x11b] sm:$0xff]
      %v2033 = vld [vmem:[#allocation2 + $0x123] sm:$0xff]
      %v2034 = vld [vmem:[#allocation2 + $0x12b] sm:$0xff]
      %v2035 = vpack.c.bf16 %v2000, %v1999
      %v2036 = vpack.c.bf16 %v2002, %v2001
      %v2037 = vpack.c.bf16 %v2004, %v2003
      %v2038 = vpack.c.bf16 %v2006, %v2005
      %v2039 = vpack.c.bf16 %v2008, %v2007
      %v2040 = vpack.c.bf16 %v2010, %v2009
      %v2041 = vpack.c.bf16 %v2012, %v2011
      %v2042 = vpack.c.bf16 %v2014, %v2013
      %v2043 = vpack.c.bf16 %v2016, %v2015
      %v2044 = vpack.c.bf16 %v2018, %v2017
      %v2045 = vpack.c.bf16 %v2020, %v2019
      %v2046 = vpack.c.bf16 %v2022, %v2021
      %v2047 = vpack.c.bf16 %v2024, %v2023
      %v2048 = vpack.c.bf16 %v2026, %v2025
      %v2049 = vpack.c.bf16 %v2028, %v2027
      %v2050 = vpack.c.bf16 %v2030, %v2029
      %v2051 = vpack.c.bf16 %v2032, %v2031
      %v2052 = vpack.c.bf16 %v2034, %v2033
      %v2053 = vld [vmem:[#allocation3] sm:$0xff]
      %v2054 = vld [vmem:[#allocation3 + $0x8] sm:$0xff]
      %v2055 = vld [vmem:[#allocation3 + $0x10] sm:$0xff]
      %v2056 = vld [vmem:[#allocation3 + $0x18] sm:$0xff]
      %v2057 = vld [vmem:[#allocation3 + $0x20] sm:$0xff]
      %v2058 = vld [vmem:[#allocation3 + $0x28] sm:$0xff]
      %v2059 = vld [vmem:[#allocation3 + $0x30] sm:$0xff]
      %v2060 = vld [vmem:[#allocation3 + $0x38] sm:$0xff]
      %v2061 = vld [vmem:[#allocation3 + $0x40] sm:$0xff]
      %v2062 = vld [vmem:[#allocation3 + $0x48] sm:$0xff]
      %v2063 = vld [vmem:[#allocation3 + $0x50] sm:$0xff]
      %v2064 = vld [vmem:[#allocation3 + $0x58] sm:$0xff]
      %v2065 = vld [vmem:[#allocation3 + $0x60] sm:$0xff]
      %v2066 = vld [vmem:[#allocation3 + $0x68] sm:$0xff]
      %v2067 = vld [vmem:[#allocation3 + $0x70] sm:$0xff]
      %v2068 = vld [vmem:[#allocation3 + $0x78] sm:$0xff]
      %v2069 = vld [vmem:[#allocation3 + $0x80] sm:$0xff]
      %v2070 = vld [vmem:[#allocation3 + $0x88] sm:$0xff]
      %v2071 = vld [vmem:[#allocation3 + $0x90] sm:$0xff]
      %v2072 = vld [vmem:[#allocation3 + $0x98] sm:$0xff]
      %v2073 = vld [vmem:[#allocation3 + $0xa0] sm:$0xff]
      %v2074 = vld [vmem:[#allocation3 + $0xa8] sm:$0xff]
      %v2075 = vld [vmem:[#allocation3 + $0xb0] sm:$0xff]
      %v2076 = vld [vmem:[#allocation3 + $0xb8] sm:$0xff]
      %v2077 = vld [vmem:[#allocation3 + $0xc0] sm:$0xff]
      %v2078 = vld [vmem:[#allocation3 + $0xc8] sm:$0xff]
      %v2079 = vld [vmem:[#allocation3 + $0xd0] sm:$0xff]
      %v2080 = vld [vmem:[#allocation3 + $0xd8] sm:$0xff]
      %v2081 = vld [vmem:[#allocation3 + $0xe0] sm:$0xff]
      %v2082 = vld [vmem:[#allocation3 + $0xe8] sm:$0xff]
      %v2083 = vld [vmem:[#allocation3 + $0xf0] sm:$0xff]
      %v2084 = vld [vmem:[#allocation3 + $0xf8] sm:$0xff]
      %v2085 = vld [vmem:[#allocation3 + $0x100] sm:$0xff]
      %v2086 = vld [vmem:[#allocation3 + $0x108] sm:$0xff]
      %v2087 = vld [vmem:[#allocation3 + $0x110] sm:$0xff]
      %v2088 = vld [vmem:[#allocation3 + $0x118] sm:$0xff]
      %s2089 = scalar_lea.vmem %s1, 8
      %v2090 = vld [vmem:[%s2089] sm:$0x3]
      %v2092 = vsel %vm328, %v2035, 0
      %v2095 = vsel %vm328, %v2036, 0
      %v2098 = vsel %vm328, %v2037, 0
      %v2101 = vsel %vm328, %v2038, 0
      %v2104 = vsel %vm328, %v2039, 0
      %v2107 = vsel %vm328, %v2040, 0
      %v2110 = vsel %vm328, %v2041, 0
      %v2113 = vsel %vm328, %v2042, 0
      %v2116 = vsel %vm328, %v2043, 0
      %v2119 = vsel %vm328, %v2044, 0
      %v2122 = vsel %vm328, %v2045, 0
      %v2125 = vsel %vm328, %v2046, 0
      %v2128 = vsel %vm328, %v2047, 0
      %v2131 = vsel %vm328, %v2048, 0
      %v2134 = vsel %vm328, %v2049, 0
      %v2137 = vsel %vm328, %v2050, 0
      %v2140 = vsel %vm328, %v2051, 0
      %v2143 = vsel %vm328, %v2052, 0
      %v2146 = vsel %vm552, %v2090, 0
      %2148 = vmatprep.subr.bf16.mxu0 0
      %2149 = vmatpush1.bf16.msra.mxu0 %v2146
      %2150 = vmatprep.subr.bf16.mxu0 0
      %2151 = vmatpush1.bf16.msra.mxu0 0
      %2152 = vmatprep.subr.bf16.mxu0 0
      %2153 = vmatpush1.bf16.msra.mxu0 0
      %2154 = vmatprep.subr.bf16.mxu0 0
      %2155 = vmatpush1.bf16.msra.mxu0 0
      %2156 = vmatprep.subr.bf16.mxu0 0
      %2157 = vmatpush1.bf16.msra.mxu0 0
      %2158 = vmatprep.subr.bf16.mxu0 0
      %2159 = vmatpush1.bf16.msra.mxu0 0
      %2160 = vmatprep.subr.bf16.mxu0 0
      %2161 = vmatpush1.bf16.msra.mxu0 0
      %2162 = vmatprep.subr.bf16.mxu0 0
      %2163 = vmatpush1.bf16.msra.mxu0 0
      %2164 = vmatprep.subr.bf16.mxu0 0
      %2165 = vmatpush1.bf16.msra.mxu0 0
      %2166 = vmatprep.subr.bf16.mxu0 0
      %2167 = vmatpush1.bf16.msra.mxu0 0
      %2168 = vmatprep.subr.bf16.mxu0 0
      %2169 = vmatpush1.bf16.msra.mxu0 0
      %2170 = vmatprep.subr.bf16.mxu0 0
      %2171 = vmatpush1.bf16.msra.mxu0 0
      %2172 = vmatprep.subr.bf16.mxu0 0
      %2173 = vmatpush1.bf16.msra.mxu0 0
      %2174 = vmatprep.subr.bf16.mxu0 0
      %2175 = vmatpush1.bf16.msra.mxu0 0
      %2176 = vmatprep.subr.bf16.mxu0 0
      %2177 = vmatpush1.bf16.msra.mxu0 0
      %2178 = vmatprep.subr.bf16.mxu0 0
      %2179 = vmatpush1.bf16.msra.mxu0 0
      %2180 = vmatprep.mubr.bf16.mxu0 0
      %2181 = vmatmul.mubr.bf16.gmra.mrb[0].mxu0 %v2092
      %v2182 = vpop.f32.mrb[0].mxu0
      %v2183 = vadd.f32 0.0, %v2182
      %v2184 = vpop.f32.mrb[0].mxu0
      %v2185 = vpop.f32.mrb[0].mxu0
      %v2186 = vadd.f32 0.0, %v2185
      %v2187 = vpop.f32.mrb[0].mxu0
      %2188 = vmatprep.mubr.bf16.mxu0 0
      %2189 = vmatmul.mubr.bf16.gmra.mrb[0].mxu0 %v2095
      %v2190 = vpop.f32.mrb[0].mxu0
      %v2191 = vadd.f32 0.0, %v2190
      %v2192 = vpop.f32.mrb[0].mxu0
      %v2193 = vpop.f32.mrb[0].mxu0
      %v2194 = vadd.f32 0.0, %v2193
      %v2195 = vpop.f32.mrb[0].mxu0
      %2196 = vmatprep.mubr.bf16.mxu0 0
      %2197 = vmatmul.mubr.bf16.gmra.mrb[0].mxu0 %v2098
      %v2198 = vpop.f32.mrb[0].mxu0
      %v2199 = vadd.f32 0.0, %v2198
      %v2200 = vpop.f32.mrb[0].mxu0
      %v2201 = vpop.f32.mrb[0].mxu0
      %v2202 = vadd.f32 0.0, %v2201
      %v2203 = vpop.f32.mrb[0].mxu0
      %2204 = vmatprep.mubr.bf16.mxu0 0
      %2205 = vmatmul.mubr.bf16.gmra.mrb[0].mxu0 %v2101
      %v2206 = vpop.f32.mrb[0].mxu0
      %v2207 = vadd.f32 0.0, %v2206
      %v2208 = vpop.f32.mrb[0].mxu0
      %v2209 = vpop.f32.mrb[0].mxu0
      %v2210 = vadd.f32 0.0, %v2209
      %v2211 = vpop.f32.mrb[0].mxu0
      %2212 = vmatprep.mubr.bf16.mxu0 0
      %2213 = vmatmul.mubr.bf16.gmra.mrb[0].mxu0 %v2104
      %v2214 = vpop.f32.mrb[0].mxu0
      %v2215 = vadd.f32 0.0, %v2214
      %v2216 = vpop.f32.mrb[0].mxu0
      %v2217 = vpop.f32.mrb[0].mxu0
      %v2218 = vadd.f32 0.0, %v2217
      %v2219 = vpop.f32.mrb[0].mxu0
      %2220 = vmatprep.mubr.bf16.mxu0 0
      %2221 = vmatmul.mubr.bf16.gmra.mrb[0].mxu0 %v2107
      %v2222 = vpop.f32.mrb[0].mxu0
      %v2223 = vadd.f32 0.0, %v2222
      %v2224 = vpop.f32.mrb[0].mxu0
      %v2225 = vpop.f32.mrb[0].mxu0
      %v2226 = vadd.f32 0.0, %v2225
      %v2227 = vpop.f32.mrb[0].mxu0
      %2228 = vmatprep.mubr.bf16.mxu0 0
      %2229 = vmatmul.mubr.bf16.gmra.mrb[0].mxu0 %v2110
      %v2230 = vpop.f32.mrb[0].mxu0
      %v2231 = vadd.f32 0.0, %v2230
      %v2232 = vpop.f32.mrb[0].mxu0
      %v2233 = vpop.f32.mrb[0].mxu0
      %v2234 = vadd.f32 0.0, %v2233
      %v2235 = vpop.f32.mrb[0].mxu0
      %2236 = vmatprep.mubr.bf16.mxu0 0
      %2237 = vmatmul.mubr.bf16.gmra.mrb[0].mxu0 %v2113
      %v2238 = vpop.f32.mrb[0].mxu0
      %v2239 = vadd.f32 0.0, %v2238
      %v2240 = vpop.f32.mrb[0].mxu0
      %v2241 = vpop.f32.mrb[0].mxu0
      %v2242 = vadd.f32 0.0, %v2241
      %v2243 = vpop.f32.mrb[0].mxu0
      %2244 = vmatprep.mubr.bf16.mxu0 0
      %2245 = vmatmul.mubr.bf16.gmra.mrb[0].mxu0 %v2116
      %v2246 = vpop.f32.mrb[0].mxu0
      %v2247 = vadd.f32 0.0, %v2246
      %v2248 = vpop.f32.mrb[0].mxu0
      %v2249 = vpop.f32.mrb[0].mxu0
      %v2250 = vadd.f32 0.0, %v2249
      %v2251 = vpop.f32.mrb[0].mxu0
      %2252 = vmatprep.mubr.bf16.mxu0 0
      %2253 = vmatmul.mubr.bf16.gmra.mrb[0].mxu0 %v2119
      %v2254 = vpop.f32.mrb[0].mxu0
      %v2255 = vadd.f32 0.0, %v2254
      %v2256 = vpop.f32.mrb[0].mxu0
      %v2257 = vpop.f32.mrb[0].mxu0
      %v2258 = vadd.f32 0.0, %v2257
      %v2259 = vpop.f32.mrb[0].mxu0
      %2260 = vmatprep.mubr.bf16.mxu0 0
      %2261 = vmatmul.mubr.bf16.gmra.mrb[0].mxu0 %v2122
      %v2262 = vpop.f32.mrb[0].mxu0
      %v2263 = vadd.f32 0.0, %v2262
      %v2264 = vpop.f32.mrb[0].mxu0
      %v2265 = vpop.f32.mrb[0].mxu0
      %v2266 = vadd.f32 0.0, %v2265
      %v2267 = vpop.f32.mrb[0].mxu0
      %2268 = vmatprep.mubr.bf16.mxu0 0
      %2269 = vmatmul.mubr.bf16.gmra.mrb[0].mxu0 %v2125
      %v2270 = vpop.f32.mrb[0].mxu0
      %v2271 = vadd.f32 0.0, %v2270
      %v2272 = vpop.f32.mrb[0].mxu0
      %v2273 = vpop.f32.mrb[0].mxu0
      %v2274 = vadd.f32 0.0, %v2273
      %v2275 = vpop.f32.mrb[0].mxu0
      %2276 = vmatprep.mubr.bf16.mxu0 0
      %2277 = vmatmul.mubr.bf16.gmra.mrb[0].mxu0 %v2128
      %v2278 = vpop.f32.mrb[0].mxu0
      %v2279 = vadd.f32 0.0, %v2278
      %v2280 = vpop.f32.mrb[0].mxu0
      %v2281 = vpop.f32.mrb[0].mxu0
      %v2282 = vadd.f32 0.0, %v2281
      %v2283 = vpop.f32.mrb[0].mxu0
      %2284 = vmatprep.mubr.bf16.mxu0 0
      %2285 = vmatmul.mubr.bf16.gmra.mrb[0].mxu0 %v2131
      %v2286 = vpop.f32.mrb[0].mxu0
      %v2287 = vadd.f32 0.0, %v2286
      %v2288 = vpop.f32.mrb[0].mxu0
      %v2289 = vpop.f32.mrb[0].mxu0
      %v2290 = vadd.f32 0.0, %v2289
      %v2291 = vpop.f32.mrb[0].mxu0
      %2292 = vmatprep.mubr.bf16.mxu0 0
      %2293 = vmatmul.mubr.bf16.gmra.mrb[0].mxu0 %v2134
      %v2294 = vpop.f32.mrb[0].mxu0
      %v2295 = vadd.f32 0.0, %v2294
      %v2296 = vpop.f32.mrb[0].mxu0
      %v2297 = vpop.f32.mrb[0].mxu0
      %v2298 = vadd.f32 0.0, %v2297
      %v2299 = vpop.f32.mrb[0].mxu0
      %2300 = vmatprep.mubr.bf16.mxu0 0
      %2301 = vmatmul.mubr.bf16.gmra.mrb[0].mxu0 %v2137
      %v2302 = vpop.f32.mrb[0].mxu0
      %v2303 = vadd.f32 0.0, %v2302
      %v2304 = vpop.f32.mrb[0].mxu0
      %v2305 = vpop.f32.mrb[0].mxu0
      %v2306 = vadd.f32 0.0, %v2305
      %v2307 = vpop.f32.mrb[0].mxu0
      %2308 = vmatprep.mubr.bf16.mxu0 0
      %2309 = vmatmul.mubr.bf16.gmra.mrb[0].mxu0 %v2140
      %v2310 = vpop.f32.mrb[0].mxu0
      %v2311 = vadd.f32 0.0, %v2310
      %v2312 = vpop.f32.mrb[0].mxu0
      %v2313 = vpop.f32.mrb[0].mxu0
      %v2314 = vadd.f32 0.0, %v2313
      %v2315 = vpop.f32.mrb[0].mxu0
      %2316 = vmatprep.mubr.bf16.mxu0 0
      %2317 = vmatmul.mubr.bf16.gmra.mrb[0].mxu0 %v2143
      %v2318 = vpop.f32.mrb[0].mxu0
      %v2319 = vadd.f32 0.0, %v2318
      %v2320 = vpop.f32.mrb[0].mxu0
      %v2321 = vpop.f32.mrb[0].mxu0
      %v2322 = vadd.f32 0.0, %v2321
      %v2323 = vpop.f32.mrb[0].mxu0
      %2324 = vdwg.mxu0
      %v2325 = vadd.f32 %v2053, %v2183
      %v2326 = vadd.f32 %v2054, %v2186
      %v2327 = vadd.f32 %v2055, %v2191
      %v2328 = vadd.f32 %v2056, %v2194
      %v2329 = vadd.f32 %v2057, %v2199
      %v2330 = vadd.f32 %v2058, %v2202
      %v2331 = vadd.f32 %v2059, %v2207
      %v2332 = vadd.f32 %v2060, %v2210
      %v2333 = vadd.f32 %v2061, %v2215
      %v2334 = vadd.f32 %v2062, %v2218
      %v2335 = vadd.f32 %v2063, %v2223
      %v2336 = vadd.f32 %v2064, %v2226
      %v2337 = vadd.f32 %v2065, %v2231
      %v2338 = vadd.f32 %v2066, %v2234
      %v2339 = vadd.f32 %v2067, %v2239
      %v2340 = vadd.f32 %v2068, %v2242
      %v2341 = vadd.f32 %v2069, %v2247
      %v2342 = vadd.f32 %v2070, %v2250
      %v2343 = vadd.f32 %v2071, %v2255
      %v2344 = vadd.f32 %v2072, %v2258
      %v2345 = vadd.f32 %v2073, %v2263
      %v2346 = vadd.f32 %v2074, %v2266
      %v2347 = vadd.f32 %v2075, %v2271
      %v2348 = vadd.f32 %v2076, %v2274
      %v2349 = vadd.f32 %v2077, %v2279
      %v2350 = vadd.f32 %v2078, %v2282
      %v2351 = vadd.f32 %v2079, %v2287
      %v2352 = vadd.f32 %v2080, %v2290
      %v2353 = vadd.f32 %v2081, %v2295
      %v2354 = vadd.f32 %v2082, %v2298
      %v2355 = vadd.f32 %v2083, %v2303
      %v2356 = vadd.f32 %v2084, %v2306
      %v2357 = vadd.f32 %v2085, %v2311
      %v2358 = vadd.f32 %v2086, %v2314
      %v2359 = vadd.f32 %v2087, %v2319
      %v2360 = vadd.f32 %v2088, %v2322
      %2361 = vst.msk [vmem:[#allocation3] sm:$0xff] %vm370, %v2325
      %2362 = vst.msk [vmem:[#allocation3 + $0x8] sm:$0xff] %vm370, %v2326
      %2363 = vst.msk [vmem:[#allocation3 + $0x10] sm:$0xff] %vm370, %v2327
      %2364 = vst.msk [vmem:[#allocation3 + $0x18] sm:$0xff] %vm370, %v2328
      %2365 = vst.msk [vmem:[#allocation3 + $0x20] sm:$0xff] %vm370, %v2329
      %2366 = vst.msk [vmem:[#allocation3 + $0x28] sm:$0xff] %vm370, %v2330
      %2367 = vst.msk [vmem:[#allocation3 + $0x30] sm:$0xff] %vm370, %v2331
      %2368 = vst.msk [vmem:[#allocation3 + $0x38] sm:$0xff] %vm370, %v2332
      %2369 = vst.msk [vmem:[#allocation3 + $0x40] sm:$0xff] %vm370, %v2333
      %2370 = vst.msk [vmem:[#allocation3 + $0x48] sm:$0xff] %vm370, %v2334
      %2371 = vst.msk [vmem:[#allocation3 + $0x50] sm:$0xff] %vm370, %v2335
      %2372 = vst.msk [vmem:[#allocation3 + $0x58] sm:$0xff] %vm370, %v2336
      %2373 = vst.msk [vmem:[#allocation3 + $0x60] sm:$0xff] %vm370, %v2337
      %2374 = vst.msk [vmem:[#allocation3 + $0x68] sm:$0xff] %vm370, %v2338
      %2375 = vst.msk [vmem:[#allocation3 + $0x70] sm:$0xff] %vm370, %v2339
      %2376 = vst.msk [vmem:[#allocation3 + $0x78] sm:$0xff] %vm370, %v2340
      %2377 = vst.msk [vmem:[#allocation3 + $0x80] sm:$0xff] %vm370, %v2341
      %2378 = vst.msk [vmem:[#allocation3 + $0x88] sm:$0xff] %vm370, %v2342
      %2379 = vst.msk [vmem:[#allocation3 + $0x90] sm:$0xff] %vm370, %v2343
      %2380 = vst.msk [vmem:[#allocation3 + $0x98] sm:$0xff] %vm370, %v2344
      %2381 = vst.msk [vmem:[#allocation3 + $0xa0] sm:$0xff] %vm370, %v2345
      %2382 = vst.msk [vmem:[#allocation3 + $0xa8] sm:$0xff] %vm370, %v2346
      %2383 = vst.msk [vmem:[#allocation3 + $0xb0] sm:$0xff] %vm370, %v2347
      %2384 = vst.msk [vmem:[#allocation3 + $0xb8] sm:$0xff] %vm370, %v2348
      %2385 = vst.msk [vmem:[#allocation3 + $0xc0] sm:$0xff] %vm370, %v2349
      %2386 = vst.msk [vmem:[#allocation3 + $0xc8] sm:$0xff] %vm370, %v2350
      %2387 = vst.msk [vmem:[#allocation3 + $0xd0] sm:$0xff] %vm370, %v2351
      %2388 = vst.msk [vmem:[#allocation3 + $0xd8] sm:$0xff] %vm370, %v2352
      %2389 = vst.msk [vmem:[#allocation3 + $0xe0] sm:$0xff] %vm370, %v2353
      %2390 = vst.msk [vmem:[#allocation3 + $0xe8] sm:$0xff] %vm370, %v2354
      %2391 = vst.msk [vmem:[#allocation3 + $0xf0] sm:$0xff] %vm370, %v2355
      %2392 = vst.msk [vmem:[#allocation3 + $0xf8] sm:$0xff] %vm370, %v2356
      %2393 = vst.msk [vmem:[#allocation3 + $0x100] sm:$0xff] %vm370, %v2357
      %2394 = vst.msk [vmem:[#allocation3 + $0x108] sm:$0xff] %vm370, %v2358
      %2395 = vst.msk [vmem:[#allocation3 + $0x110] sm:$0xff] %vm370, %v2359
      %2396 = vst.msk [vmem:[#allocation3 + $0x118] sm:$0xff] %vm370, %v2360
      %v2397 = vld [vmem:[#allocation2 + $0x14] sm:$0xff]
      %v2398 = vld [vmem:[#allocation2 + $0x1c] sm:$0xff]
      %v2399 = vld [vmem:[#allocation2 + $0x24] sm:$0xff]
      %v2400 = vld [vmem:[#allocation2 + $0x2c] sm:$0xff]
      %v2401 = vld [vmem:[#allocation2 + $0x34] sm:$0xff]
      %v2402 = vld [vmem:[#allocation2 + $0x3c] sm:$0xff]
      %v2403 = vld [vmem:[#allocation2 + $0x44] sm:$0xff]
      %v2404 = vld [vmem:[#allocation2 + $0x4c] sm:$0xff]
      %v2405 = vld [vmem:[#allocation2 + $0x54] sm:$0xff]
      %v2406 = vld [vmem:[#allocation2 + $0x5c] sm:$0xff]
      %v2407 = vld [vmem:[#allocation2 + $0x64] sm:$0xff]
      %v2408 = vld [vmem:[#allocation2 + $0x6c] sm:$0xff]
      %v2409 = vld [vmem:[#allocation2 + $0x74] sm:$0xff]
      %v2410 = vld [vmem:[#allocation2 + $0x7c] sm:$0xff]
      %v2411 = vld [vmem:[#allocation2 + $0x84] sm:$0xff]
      %v2412 = vld [vmem:[#allocation2 + $0x8c] sm:$0xff]
      %v2413 = vld [vmem:[#allocation2 + $0x94] sm:$0xff]
      %v2414 = vld [vmem:[#allocation2 + $0x9c] sm:$0xff]
      %v2415 = vld [vmem:[#allocation2 + $0xa4] sm:$0xff]
      %v2416 = vld [vmem:[#allocation2 + $0xac] sm:$0xff]
      %v2417 = vld [vmem:[#allocation2 + $0xb4] sm:$0xff]
      %v2418 = vld [vmem:[#allocation2 + $0xbc] sm:$0xff]
      %v2419 = vld [vmem:[#allocation2 + $0xc4] sm:$0xff]
      %v2420 = vld [vmem:[#allocation2 + $0xcc] sm:$0xff]
      %v2421 = vld [vmem:[#allocation2 + $0xd4] sm:$0xff]
      %v2422 = vld [vmem:[#allocation2 + $0xdc] sm:$0xff]
      %v2423 = vld [vmem:[#allocation2 + $0xe4] sm:$0xff]
      %v2424 = vld [vmem:[#allocation2 + $0xec] sm:$0xff]
      %v2425 = vld [vmem:[#allocation2 + $0xf4] sm:$0xff]
      %v2426 = vld [vmem:[#allocation2 + $0xfc] sm:$0xff]
      %v2427 = vld [vmem:[#allocation2 + $0x104] sm:$0xff]
      %v2428 = vld [vmem:[#allocation2 + $0x10c] sm:$0xff]
      %v2429 = vld [vmem:[#allocation2 + $0x114] sm:$0xff]
      %v2430 = vld [vmem:[#allocation2 + $0x11c] sm:$0xff]
      %v2431 = vld [vmem:[#allocation2 + $0x124] sm:$0xff]
      %v2432 = vld [vmem:[#allocation2 + $0x12c] sm:$0xff]
      %v2433 = vpack.c.bf16 %v2398, %v2397
      %v2434 = vpack.c.bf16 %v2400, %v2399
      %v2435 = vpack.c.bf16 %v2402, %v2401
      %v2436 = vpack.c.bf16 %v2404, %v2403
      %v2437 = vpack.c.bf16 %v2406, %v2405
      %v2438 = vpack.c.bf16 %v2408, %v2407
      %v2439 = vpack.c.bf16 %v2410, %v2409
      %v2440 = vpack.c.bf16 %v2412, %v2411
      %v2441 = vpack.c.bf16 %v2414, %v2413
      %v2442 = vpack.c.bf16 %v2416, %v2415
      %v2443 = vpack.c.bf16 %v2418, %v2417
      %v2444 = vpack.c.bf16 %v2420, %v2419
      %v2445 = vpack.c.bf16 %v2422, %v2421
      %v2446 = vpack.c.bf16 %v2424, %v2423
      %v2447 = vpack.c.bf16 %v2426, %v2425
      %v2448 = vpack.c.bf16 %v2428, %v2427
      %v2449 = vpack.c.bf16 %v2430, %v2429
      %v2450 = vpack.c.bf16 %v2432, %v2431
      %v2451 = vld [vmem:[#allocation3] sm:$0xff]
      %v2452 = vld [vmem:[#allocation3 + $0x8] sm:$0xff]
      %v2453 = vld [vmem:[#allocation3 + $0x10] sm:$0xff]
      %v2454 = vld [vmem:[#allocation3 + $0x18] sm:$0xff]
      %v2455 = vld [vmem:[#allocation3 + $0x20] sm:$0xff]
      %v2456 = vld [vmem:[#allocation3 + $0x28] sm:$0xff]
      %v2457 = vld [vmem:[#allocation3 + $0x30] sm:$0xff]
      %v2458 = vld [vmem:[#allocation3 + $0x38] sm:$0xff]
      %v2459 = vld [vmem:[#allocation3 + $0x40] sm:$0xff]
      %v2460 = vld [vmem:[#allocation3 + $0x48] sm:$0xff]
      %v2461 = vld [vmem:[#allocation3 + $0x50] sm:$0xff]
      %v2462 = vld [vmem:[#allocation3 + $0x58] sm:$0xff]
      %v2463 = vld [vmem:[#allocation3 + $0x60] sm:$0xff]
      %v2464 = vld [vmem:[#allocation3 + $0x68] sm:$0xff]
      %v2465 = vld [vmem:[#allocation3 + $0x70] sm:$0xff]
      %v2466 = vld [vmem:[#allocation3 + $0x78] sm:$0xff]
      %v2467 = vld [vmem:[#allocation3 + $0x80] sm:$0xff]
      %v2468 = vld [vmem:[#allocation3 + $0x88] sm:$0xff]
      %v2469 = vld [vmem:[#allocation3 + $0x90] sm:$0xff]
      %v2470 = vld [vmem:[#allocation3 + $0x98] sm:$0xff]
      %v2471 = vld [vmem:[#allocation3 + $0xa0] sm:$0xff]
      %v2472 = vld [vmem:[#allocation3 + $0xa8] sm:$0xff]
      %v2473 = vld [vmem:[#allocation3 + $0xb0] sm:$0xff]
      %v2474 = vld [vmem:[#allocation3 + $0xb8] sm:$0xff]
      %v2475 = vld [vmem:[#allocation3 + $0xc0] sm:$0xff]
      %v2476 = vld [vmem:[#allocation3 + $0xc8] sm:$0xff]
      %v2477 = vld [vmem:[#allocation3 + $0xd0] sm:$0xff]
      %v2478 = vld [vmem:[#allocation3 + $0xd8] sm:$0xff]
      %v2479 = vld [vmem:[#allocation3 + $0xe0] sm:$0xff]
      %v2480 = vld [vmem:[#allocation3 + $0xe8] sm:$0xff]
      %v2481 = vld [vmem:[#allocation3 + $0xf0] sm:$0xff]
      %v2482 = vld [vmem:[#allocation3 + $0xf8] sm:$0xff]
      %v2483 = vld [vmem:[#allocation3 + $0x100] sm:$0xff]
      %v2484 = vld [vmem:[#allocation3 + $0x108] sm:$0xff]
      %v2485 = vld [vmem:[#allocation3 + $0x110] sm:$0xff]
      %v2486 = vld [vmem:[#allocation3 + $0x118] sm:$0xff]
      %s2487 = scalar_lea.vmem %s1, 10
      %v2488 = vld [vmem:[%s2487] sm:$0x3]
      %v2490 = vsel %vm328, %v2433, 0
      %v2493 = vsel %vm328, %v2434, 0
      %v2496 = vsel %vm328, %v2435, 0
      %v2499 = vsel %vm328, %v2436, 0
      %v2502 = vsel %vm328, %v2437, 0
      %v2505 = vsel %vm328, %v2438, 0
      %v2508 = vsel %vm328, %v2439, 0
      %v2511 = vsel %vm328, %v2440, 0
      %v2514 = vsel %vm328, %v2441, 0
      %v2517 = vsel %vm328, %v2442, 0
      %v2520 = vsel %vm328, %v2443, 0
      %v2523 = vsel %vm328, %v2444, 0
      %v2526 = vsel %vm328, %v2445, 0
      %v2529 = vsel %vm328, %v2446, 0
      %v2532 = vsel %vm328, %v2447, 0
      %v2535 = vsel %vm328, %v2448, 0
      %v2538 = vsel %vm328, %v2449, 0
      %v2541 = vsel %vm328, %v2450, 0
      %v2544 = vsel %vm552, %v2488, 0
      %2546 = vmatprep.subr.bf16.mxu0 0
      %2547 = vmatpush1.bf16.msra.mxu0 %v2544
      %2548 = vmatprep.subr.bf16.mxu0 0
      %2549 = vmatpush1.bf16.msra.mxu0 0
      %2550 = vmatprep.subr.bf16.mxu0 0
      %2551 = vmatpush1.bf16.msra.mxu0 0
      %2552 = vmatprep.subr.bf16.mxu0 0
      %2553 = vmatpush1.bf16.msra.mxu0 0
      %2554 = vmatprep.subr.bf16.mxu0 0
      %2555 = vmatpush1.bf16.msra.mxu0 0
      %2556 = vmatprep.subr.bf16.mxu0 0
      %2557 = vmatpush1.bf16.msra.mxu0 0
      %2558 = vmatprep.subr.bf16.mxu0 0
      %2559 = vmatpush1.bf16.msra.mxu0 0
      %2560 = vmatprep.subr.bf16.mxu0 0
      %2561 = vmatpush1.bf16.msra.mxu0 0
      %2562 = vmatprep.subr.bf16.mxu0 0
      %2563 = vmatpush1.bf16.msra.mxu0 0
      %2564 = vmatprep.subr.bf16.mxu0 0
      %2565 = vmatpush1.bf16.msra.mxu0 0
      %2566 = vmatprep.subr.bf16.mxu0 0
      %2567 = vmatpush1.bf16.msra.mxu0 0
      %2568 = vmatprep.subr.bf16.mxu0 0
      %2569 = vmatpush1.bf16.msra.mxu0 0
      %2570 = vmatprep.subr.bf16.mxu0 0
      %2571 = vmatpush1.bf16.msra.mxu0 0
      %2572 = vmatprep.subr.bf16.mxu0 0
      %2573 = vmatpush1.bf16.msra.mxu0 0
      %2574 = vmatprep.subr.bf16.mxu0 0
      %2575 = vmatpush1.bf16.msra.mxu0 0
      %2576 = vmatprep.subr.bf16.mxu0 0
      %2577 = vmatpush1.bf16.msra.mxu0 0
      %2578 = vmatprep.mubr.bf16.mxu0 0
      %2579 = vmatmul.mubr.bf16.gmra.mrb[0].mxu0 %v2490
      %v2580 = vpop.f32.mrb[0].mxu0
      %v2581 = vadd.f32 0.0, %v2580
      %v2582 = vpop.f32.mrb[0].mxu0
      %v2583 = vpop.f32.mrb[0].mxu0
      %v2584 = vadd.f32 0.0, %v2583
      %v2585 = vpop.f32.mrb[0].mxu0
      %2586 = vmatprep.mubr.bf16.mxu0 0
      %2587 = vmatmul.mubr.bf16.gmra.mrb[0].mxu0 %v2493
      %v2588 = vpop.f32.mrb[0].mxu0
      %v2589 = vadd.f32 0.0, %v2588
      %v2590 = vpop.f32.mrb[0].mxu0
      %v2591 = vpop.f32.mrb[0].mxu0
      %v2592 = vadd.f32 0.0, %v2591
      %v2593 = vpop.f32.mrb[0].mxu0
      %2594 = vmatprep.mubr.bf16.mxu0 0
      %2595 = vmatmul.mubr.bf16.gmra.mrb[0].mxu0 %v2496
      %v2596 = vpop.f32.mrb[0].mxu0
      %v2597 = vadd.f32 0.0, %v2596
      %v2598 = vpop.f32.mrb[0].mxu0
      %v2599 = vpop.f32.mrb[0].mxu0
      %v2600 = vadd.f32 0.0, %v2599
      %v2601 = vpop.f32.mrb[0].mxu0
      %2602 = vmatprep.mubr.bf16.mxu0 0
      %2603 = vmatmul.mubr.bf16.gmra.mrb[0].mxu0 %v2499
      %v2604 = vpop.f32.mrb[0].mxu0
      %v2605 = vadd.f32 0.0, %v2604
      %v2606 = vpop.f32.mrb[0].mxu0
      %v2607 = vpop.f32.mrb[0].mxu0
      %v2608 = vadd.f32 0.0, %v2607
      %v2609 = vpop.f32.mrb[0].mxu0
      %2610 = vmatprep.mubr.bf16.mxu0 0
      %2611 = vmatmul.mubr.bf16.gmra.mrb[0].mxu0 %v2502
      %v2612 = vpop.f32.mrb[0].mxu0
      %v2613 = vadd.f32 0.0, %v2612
      %v2614 = vpop.f32.mrb[0].mxu0
      %v2615 = vpop.f32.mrb[0].mxu0
      %v2616 = vadd.f32 0.0, %v2615
      %v2617 = vpop.f32.mrb[0].mxu0
      %2618 = vmatprep.mubr.bf16.mxu0 0
      %2619 = vmatmul.mubr.bf16.gmra.mrb[0].mxu0 %v2505
      %v2620 = vpop.f32.mrb[0].mxu0
      %v2621 = vadd.f32 0.0, %v2620
      %v2622 = vpop.f32.mrb[0].mxu0
      %v2623 = vpop.f32.mrb[0].mxu0
      %v2624 = vadd.f32 0.0, %v2623
      %v2625 = vpop.f32.mrb[0].mxu0
      %2626 = vmatprep.mubr.bf16.mxu0 0
      %2627 = vmatmul.mubr.bf16.gmra.mrb[0].mxu0 %v2508
      %v2628 = vpop.f32.mrb[0].mxu0
      %v2629 = vadd.f32 0.0, %v2628
      %v2630 = vpop.f32.mrb[0].mxu0
      %v2631 = vpop.f32.mrb[0].mxu0
      %v2632 = vadd.f32 0.0, %v2631
      %v2633 = vpop.f32.mrb[0].mxu0
      %2634 = vmatprep.mubr.bf16.mxu0 0
      %2635 = vmatmul.mubr.bf16.gmra.mrb[0].mxu0 %v2511
      %v2636 = vpop.f32.mrb[0].mxu0
      %v2637 = vadd.f32 0.0, %v2636
      %v2638 = vpop.f32.mrb[0].mxu0
      %v2639 = vpop.f32.mrb[0].mxu0
      %v2640 = vadd.f32 0.0, %v2639
      %v2641 = vpop.f32.mrb[0].mxu0
      %2642 = vmatprep.mubr.bf16.mxu0 0
      %2643 = vmatmul.mubr.bf16.gmra.mrb[0].mxu0 %v2514
      %v2644 = vpop.f32.mrb[0].mxu0
      %v2645 = vadd.f32 0.0, %v2644
      %v2646 = vpop.f32.mrb[0].mxu0
      %v2647 = vpop.f32.mrb[0].mxu0
      %v2648 = vadd.f32 0.0, %v2647
      %v2649 = vpop.f32.mrb[0].mxu0
      %2650 = vmatprep.mubr.bf16.mxu0 0
      %2651 = vmatmul.mubr.bf16.gmra.mrb[0].mxu0 %v2517
      %v2652 = vpop.f32.mrb[0].mxu0
      %v2653 = vadd.f32 0.0, %v2652
      %v2654 = vpop.f32.mrb[0].mxu0
      %v2655 = vpop.f32.mrb[0].mxu0
      %v2656 = vadd.f32 0.0, %v2655
      %v2657 = vpop.f32.mrb[0].mxu0
      %2658 = vmatprep.mubr.bf16.mxu0 0
      %2659 = vmatmul.mubr.bf16.gmra.mrb[0].mxu0 %v2520
      %v2660 = vpop.f32.mrb[0].mxu0
      %v2661 = vadd.f32 0.0, %v2660
      %v2662 = vpop.f32.mrb[0].mxu0
      %v2663 = vpop.f32.mrb[0].mxu0
      %v2664 = vadd.f32 0.0, %v2663
      %v2665 = vpop.f32.mrb[0].mxu0
      %2666 = vmatprep.mubr.bf16.mxu0 0
      %2667 = vmatmul.mubr.bf16.gmra.mrb[0].mxu0 %v2523
      %v2668 = vpop.f32.mrb[0].mxu0
      %v2669 = vadd.f32 0.0, %v2668
      %v2670 = vpop.f32.mrb[0].mxu0
      %v2671 = vpop.f32.mrb[0].mxu0
      %v2672 = vadd.f32 0.0, %v2671
      %v2673 = vpop.f32.mrb[0].mxu0
      %2674 = vmatprep.mubr.bf16.mxu0 0
      %2675 = vmatmul.mubr.bf16.gmra.mrb[0].mxu0 %v2526
      %v2676 = vpop.f32.mrb[0].mxu0
      %v2677 = vadd.f32 0.0, %v2676
      %v2678 = vpop.f32.mrb[0].mxu0
      %v2679 = vpop.f32.mrb[0].mxu0
      %v2680 = vadd.f32 0.0, %v2679
      %v2681 = vpop.f32.mrb[0].mxu0
      %2682 = vmatprep.mubr.bf16.mxu0 0
      %2683 = vmatmul.mubr.bf16.gmra.mrb[0].mxu0 %v2529
      %v2684 = vpop.f32.mrb[0].mxu0
      %v2685 = vadd.f32 0.0, %v2684
      %v2686 = vpop.f32.mrb[0].mxu0
      %v2687 = vpop.f32.mrb[0].mxu0
      %v2688 = vadd.f32 0.0, %v2687
      %v2689 = vpop.f32.mrb[0].mxu0
      %2690 = vmatprep.mubr.bf16.mxu0 0
      %2691 = vmatmul.mubr.bf16.gmra.mrb[0].mxu0 %v2532
      %v2692 = vpop.f32.mrb[0].mxu0
      %v2693 = vadd.f32 0.0, %v2692
      %v2694 = vpop.f32.mrb[0].mxu0
      %v2695 = vpop.f32.mrb[0].mxu0
      %v2696 = vadd.f32 0.0, %v2695
      %v2697 = vpop.f32.mrb[0].mxu0
      %2698 = vmatprep.mubr.bf16.mxu0 0
      %2699 = vmatmul.mubr.bf16.gmra.mrb[0].mxu0 %v2535
      %v2700 = vpop.f32.mrb[0].mxu0
      %v2701 = vadd.f32 0.0, %v2700
      %v2702 = vpop.f32.mrb[0].mxu0
      %v2703 = vpop.f32.mrb[0].mxu0
      %v2704 = vadd.f32 0.0, %v2703
      %v2705 = vpop.f32.mrb[0].mxu0
      %2706 = vmatprep.mubr.bf16.mxu0 0
      %2707 = vmatmul.mubr.bf16.gmra.mrb[0].mxu0 %v2538
      %v2708 = vpop.f32.mrb[0].mxu0
      %v2709 = vadd.f32 0.0, %v2708
      %v2710 = vpop.f32.mrb[0].mxu0
      %v2711 = vpop.f32.mrb[0].mxu0
      %v2712 = vadd.f32 0.0, %v2711
      %v2713 = vpop.f32.mrb[0].mxu0
      %2714 = vmatprep.mubr.bf16.mxu0 0
      %2715 = vmatmul.mubr.bf16.gmra.mrb[0].mxu0 %v2541
      %v2716 = vpop.f32.mrb[0].mxu0
      %v2717 = vadd.f32 0.0, %v2716
      %v2718 = vpop.f32.mrb[0].mxu0
      %v2719 = vpop.f32.mrb[0].mxu0
      %v2720 = vadd.f32 0.0, %v2719
      %v2721 = vpop.f32.mrb[0].mxu0
      %2722 = vdwg.mxu0
      %v2723 = vadd.f32 %v2451, %v2581
      %v2724 = vadd.f32 %v2452, %v2584
      %v2725 = vadd.f32 %v2453, %v2589
      %v2726 = vadd.f32 %v2454, %v2592
      %v2727 = vadd.f32 %v2455, %v2597
      %v2728 = vadd.f32 %v2456, %v2600
      %v2729 = vadd.f32 %v2457, %v2605
      %v2730 = vadd.f32 %v2458, %v2608
      %v2731 = vadd.f32 %v2459, %v2613
      %v2732 = vadd.f32 %v2460, %v2616
      %v2733 = vadd.f32 %v2461, %v2621
      %v2734 = vadd.f32 %v2462, %v2624
      %v2735 = vadd.f32 %v2463, %v2629
      %v2736 = vadd.f32 %v2464, %v2632
      %v2737 = vadd.f32 %v2465, %v2637
      %v2738 = vadd.f32 %v2466, %v2640
      %v2739 = vadd.f32 %v2467, %v2645
      %v2740 = vadd.f32 %v2468, %v2648
      %v2741 = vadd.f32 %v2469, %v2653
      %v2742 = vadd.f32 %v2470, %v2656
      %v2743 = vadd.f32 %v2471, %v2661
      %v2744 = vadd.f32 %v2472, %v2664
      %v2745 = vadd.f32 %v2473, %v2669
      %v2746 = vadd.f32 %v2474, %v2672
      %v2747 = vadd.f32 %v2475, %v2677
      %v2748 = vadd.f32 %v2476, %v2680
      %v2749 = vadd.f32 %v2477, %v2685
      %v2750 = vadd.f32 %v2478, %v2688
      %v2751 = vadd.f32 %v2479, %v2693
      %v2752 = vadd.f32 %v2480, %v2696
      %v2753 = vadd.f32 %v2481, %v2701
      %v2754 = vadd.f32 %v2482, %v2704
      %v2755 = vadd.f32 %v2483, %v2709
      %v2756 = vadd.f32 %v2484, %v2712
      %v2757 = vadd.f32 %v2485, %v2717
      %v2758 = vadd.f32 %v2486, %v2720
      %2759 = vst.msk [vmem:[#allocation3] sm:$0xff] %vm370, %v2723
      %2760 = vst.msk [vmem:[#allocation3 + $0x8] sm:$0xff] %vm370, %v2724
      %2761 = vst.msk [vmem:[#allocation3 + $0x10] sm:$0xff] %vm370, %v2725
      %2762 = vst.msk [vmem:[#allocation3 + $0x18] sm:$0xff] %vm370, %v2726
      %2763 = vst.msk [vmem:[#allocation3 + $0x20] sm:$0xff] %vm370, %v2727
      %2764 = vst.msk [vmem:[#allocation3 + $0x28] sm:$0xff] %vm370, %v2728
      %2765 = vst.msk [vmem:[#allocation3 + $0x30] sm:$0xff] %vm370, %v2729
      %2766 = vst.msk [vmem:[#allocation3 + $0x38] sm:$0xff] %vm370, %v2730
      %2767 = vst.msk [vmem:[#allocation3 + $0x40] sm:$0xff] %vm370, %v2731
      %2768 = vst.msk [vmem:[#allocation3 + $0x48] sm:$0xff] %vm370, %v2732
      %2769 = vst.msk [vmem:[#allocation3 + $0x50] sm:$0xff] %vm370, %v2733
      %2770 = vst.msk [vmem:[#allocation3 + $0x58] sm:$0xff] %vm370, %v2734
      %2771 = vst.msk [vmem:[#allocation3 + $0x60] sm:$0xff] %vm370, %v2735
      %2772 = vst.msk [vmem:[#allocation3 + $0x68] sm:$0xff] %vm370, %v2736
      %2773 = vst.msk [vmem:[#allocation3 + $0x70] sm:$0xff] %vm370, %v2737
      %2774 = vst.msk [vmem:[#allocation3 + $0x78] sm:$0xff] %vm370, %v2738
      %2775 = vst.msk [vmem:[#allocation3 + $0x80] sm:$0xff] %vm370, %v2739
      %2776 = vst.msk [vmem:[#allocation3 + $0x88] sm:$0xff] %vm370, %v2740
      %2777 = vst.msk [vmem:[#allocation3 + $0x90] sm:$0xff] %vm370, %v2741
      %2778 = vst.msk [vmem:[#allocation3 + $0x98] sm:$0xff] %vm370, %v2742
      %2779 = vst.msk [vmem:[#allocation3 + $0xa0] sm:$0xff] %vm370, %v2743
      %2780 = vst.msk [vmem:[#allocation3 + $0xa8] sm:$0xff] %vm370, %v2744
      %2781 = vst.msk [vmem:[#allocation3 + $0xb0] sm:$0xff] %vm370, %v2745
      %2782 = vst.msk [vmem:[#allocation3 + $0xb8] sm:$0xff] %vm370, %v2746
      %2783 = vst.msk [vmem:[#allocation3 + $0xc0] sm:$0xff] %vm370, %v2747
      %2784 = vst.msk [vmem:[#allocation3 + $0xc8] sm:$0xff] %vm370, %v2748
      %2785 = vst.msk [vmem:[#allocation3 + $0xd0] sm:$0xff] %vm370, %v2749
      %2786 = vst.msk [vmem:[#allocation3 + $0xd8] sm:$0xff] %vm370, %v2750
      %2787 = vst.msk [vmem:[#allocation3 + $0xe0] sm:$0xff] %vm370, %v2751
      %2788 = vst.msk [vmem:[#allocation3 + $0xe8] sm:$0xff] %vm370, %v2752
      %2789 = vst.msk [vmem:[#allocation3 + $0xf0] sm:$0xff] %vm370, %v2753
      %2790 = vst.msk [vmem:[#allocation3 + $0xf8] sm:$0xff] %vm370, %v2754
      %2791 = vst.msk [vmem:[#allocation3 + $0x100] sm:$0xff] %vm370, %v2755
      %2792 = vst.msk [vmem:[#allocation3 + $0x108] sm:$0xff] %vm370, %v2756
      %2793 = vst.msk [vmem:[#allocation3 + $0x110] sm:$0xff] %vm370, %v2757
      %2794 = vst.msk [vmem:[#allocation3 + $0x118] sm:$0xff] %vm370, %v2758
      %v2795 = vld [vmem:[#allocation2 + $0x24] sm:$0xff]
      %v2796 = vld [vmem:[#allocation2 + $0x2c] sm:$0xff]
      %v2797 = vld [vmem:[#allocation2 + $0x34] sm:$0xff]
      %v2798 = vld [vmem:[#allocation2 + $0x3c] sm:$0xff]
      %v2799 = vld [vmem:[#allocation2 + $0x44] sm:$0xff]
      %v2800 = vld [vmem:[#allocation2 + $0x4c] sm:$0xff]
      %v2801 = vld [vmem:[#allocation2 + $0x54] sm:$0xff]
      %v2802 = vld [vmem:[#allocation2 + $0x5c] sm:$0xff]
      %v2803 = vld [vmem:[#allocation2 + $0x64] sm:$0xff]
      %v2804 = vld [vmem:[#allocation2 + $0x6c] sm:$0xff]
      %v2805 = vld [vmem:[#allocation2 + $0x74] sm:$0xff]
      %v2806 = vld [vmem:[#allocation2 + $0x7c] sm:$0xff]
      %v2807 = vld [vmem:[#allocation2 + $0x84] sm:$0xff]
      %v2808 = vld [vmem:[#allocation2 + $0x8c] sm:$0xff]
      %v2809 = vld [vmem:[#allocation2 + $0x94] sm:$0xff]
      %v2810 = vld [vmem:[#allocation2 + $0x9c] sm:$0xff]
      %v2811 = vld [vmem:[#allocation2 + $0xa4] sm:$0xff]
      %v2812 = vld [vmem:[#allocation2 + $0xac] sm:$0xff]
      %v2813 = vld [vmem:[#allocation2 + $0xb4] sm:$0xff]
      %v2814 = vld [vmem:[#allocation2 + $0xbc] sm:$0xff]
      %v2815 = vld [vmem:[#allocation2 + $0xc4] sm:$0xff]
      %v2816 = vld [vmem:[#allocation2 + $0xcc] sm:$0xff]
      %v2817 = vld [vmem:[#allocation2 + $0xd4] sm:$0xff]
      %v2818 = vld [vmem:[#allocation2 + $0xdc] sm:$0xff]
      %v2819 = vld [vmem:[#allocation2 + $0xe4] sm:$0xff]
      %v2820 = vld [vmem:[#allocation2 + $0xec] sm:$0xff]
      %v2821 = vld [vmem:[#allocation2 + $0xf4] sm:$0xff]
      %v2822 = vld [vmem:[#allocation2 + $0xfc] sm:$0xff]
      %v2823 = vld [vmem:[#allocation2 + $0x104] sm:$0xff]
      %v2824 = vld [vmem:[#allocation2 + $0x10c] sm:$0xff]
      %v2825 = vld [vmem:[#allocation2 + $0x114] sm:$0xff]
      %v2826 = vld [vmem:[#allocation2 + $0x11c] sm:$0xff]
      %v2827 = vld [vmem:[#allocation2 + $0x124] sm:$0xff]
      %v2828 = vld [vmem:[#allocation2 + $0x12c] sm:$0xff]
      %v2829 = vld [vmem:[#allocation2 + $0x134] sm:$0xff]
      %v2830 = vld [vmem:[#allocation2 + $0x13c] sm:$0xff]
      %v2831 = vpack.c.bf16 %v2796, %v2795
      %v2832 = vpack.c.bf16 %v2798, %v2797
      %v2833 = vpack.c.bf16 %v2800, %v2799
      %v2834 = vpack.c.bf16 %v2802, %v2801
      %v2835 = vpack.c.bf16 %v2804, %v2803
      %v2836 = vpack.c.bf16 %v2806, %v2805
      %v2837 = vpack.c.bf16 %v2808, %v2807
      %v2838 = vpack.c.bf16 %v2810, %v2809
      %v2839 = vpack.c.bf16 %v2812, %v2811
      %v2840 = vpack.c.bf16 %v2814, %v2813
      %v2841 = vpack.c.bf16 %v2816, %v2815
      %v2842 = vpack.c.bf16 %v2818, %v2817
      %v2843 = vpack.c.bf16 %v2820, %v2819
      %v2844 = vpack.c.bf16 %v2822, %v2821
      %v2845 = vpack.c.bf16 %v2824, %v2823
      %v2846 = vpack.c.bf16 %v2826, %v2825
      %v2847 = vpack.c.bf16 %v2828, %v2827
      %v2848 = vpack.c.bf16 %v2830, %v2829
      %v2849 = vld [vmem:[#allocation3] sm:$0xff]
      %v2850 = vld [vmem:[#allocation3 + $0x8] sm:$0xff]
      %v2851 = vld [vmem:[#allocation3 + $0x10] sm:$0xff]
      %v2852 = vld [vmem:[#allocation3 + $0x18] sm:$0xff]
      %v2853 = vld [vmem:[#allocation3 + $0x20] sm:$0xff]
      %v2854 = vld [vmem:[#allocation3 + $0x28] sm:$0xff]
      %v2855 = vld [vmem:[#allocation3 + $0x30] sm:$0xff]
      %v2856 = vld [vmem:[#allocation3 + $0x38] sm:$0xff]
      %v2857 = vld [vmem:[#allocation3 + $0x40] sm:$0xff]
      %v2858 = vld [vmem:[#allocation3 + $0x48] sm:$0xff]
      %v2859 = vld [vmem:[#allocation3 + $0x50] sm:$0xff]
      %v2860 = vld [vmem:[#allocation3 + $0x58] sm:$0xff]
      %v2861 = vld [vmem:[#allocation3 + $0x60] sm:$0xff]
      %v2862 = vld [vmem:[#allocation3 + $0x68] sm:$0xff]
      %v2863 = vld [vmem:[#allocation3 + $0x70] sm:$0xff]
      %v2864 = vld [vmem:[#allocation3 + $0x78] sm:$0xff]
      %v2865 = vld [vmem:[#allocation3 + $0x80] sm:$0xff]
      %v2866 = vld [vmem:[#allocation3 + $0x88] sm:$0xff]
      %v2867 = vld [vmem:[#allocation3 + $0x90] sm:$0xff]
      %v2868 = vld [vmem:[#allocation3 + $0x98] sm:$0xff]
      %v2869 = vld [vmem:[#allocation3 + $0xa0] sm:$0xff]
      %v2870 = vld [vmem:[#allocation3 + $0xa8] sm:$0xff]
      %v2871 = vld [vmem:[#allocation3 + $0xb0] sm:$0xff]
      %v2872 = vld [vmem:[#allocation3 + $0xb8] sm:$0xff]
      %v2873 = vld [vmem:[#allocation3 + $0xc0] sm:$0xff]
      %v2874 = vld [vmem:[#allocation3 + $0xc8] sm:$0xff]
      %v2875 = vld [vmem:[#allocation3 + $0xd0] sm:$0xff]
      %v2876 = vld [vmem:[#allocation3 + $0xd8] sm:$0xff]
      %v2877 = vld [vmem:[#allocation3 + $0xe0] sm:$0xff]
      %v2878 = vld [vmem:[#allocation3 + $0xe8] sm:$0xff]
      %v2879 = vld [vmem:[#allocation3 + $0xf0] sm:$0xff]
      %v2880 = vld [vmem:[#allocation3 + $0xf8] sm:$0xff]
      %v2881 = vld [vmem:[#allocation3 + $0x100] sm:$0xff]
      %v2882 = vld [vmem:[#allocation3 + $0x108] sm:$0xff]
      %v2883 = vld [vmem:[#allocation3 + $0x110] sm:$0xff]
      %v2884 = vld [vmem:[#allocation3 + $0x118] sm:$0xff]
      %s2885 = scalar_lea.vmem %s1, 12
      %v2886 = vld [vmem:[%s2885] sm:$0x3]
      %v2888 = vsel %vm328, %v2831, 0
      %v2891 = vsel %vm328, %v2832, 0
      %v2894 = vsel %vm328, %v2833, 0
      %v2897 = vsel %vm328, %v2834, 0
      %v2900 = vsel %vm328, %v2835, 0
      %v2903 = vsel %vm328, %v2836, 0
      %v2906 = vsel %vm328, %v2837, 0
      %v2909 = vsel %vm328, %v2838, 0
      %v2912 = vsel %vm328, %v2839, 0
      %v2915 = vsel %vm328, %v2840, 0
      %v2918 = vsel %vm328, %v2841, 0
      %v2921 = vsel %vm328, %v2842, 0
      %v2924 = vsel %vm328, %v2843, 0
      %v2927 = vsel %vm328, %v2844, 0
      %v2930 = vsel %vm328, %v2845, 0
      %v2933 = vsel %vm328, %v2846, 0
      %v2936 = vsel %vm328, %v2847, 0
      %v2939 = vsel %vm328, %v2848, 0
      %v2942 = vsel %vm552, %v2886, 0
      %2944 = vmatprep.subr.bf16.mxu0 0
      %2945 = vmatpush1.bf16.msra.mxu0 %v2942
      %2946 = vmatprep.subr.bf16.mxu0 0
      %2947 = vmatpush1.bf16.msra.mxu0 0
      %2948 = vmatprep.subr.bf16.mxu0 0
      %2949 = vmatpush1.bf16.msra.mxu0 0
      %2950 = vmatprep.subr.bf16.mxu0 0
      %2951 = vmatpush1.bf16.msra.mxu0 0
      %2952 = vmatprep.subr.bf16.mxu0 0
      %2953 = vmatpush1.bf16.msra.mxu0 0
      %2954 = vmatprep.subr.bf16.mxu0 0
      %2955 = vmatpush1.bf16.msra.mxu0 0
      %2956 = vmatprep.subr.bf16.mxu0 0
      %2957 = vmatpush1.bf16.msra.mxu0 0
      %2958 = vmatprep.subr.bf16.mxu0 0
      %2959 = vmatpush1.bf16.msra.mxu0 0
      %2960 = vmatprep.subr.bf16.mxu0 0
      %2961 = vmatpush1.bf16.msra.mxu0 0
      %2962 = vmatprep.subr.bf16.mxu0 0
      %2963 = vmatpush1.bf16.msra.mxu0 0
      %2964 = vmatprep.subr.bf16.mxu0 0
      %2965 = vmatpush1.bf16.msra.mxu0 0
      %2966 = vmatprep.subr.bf16.mxu0 0
      %2967 = vmatpush1.bf16.msra.mxu0 0
      %2968 = vmatprep.subr.bf16.mxu0 0
      %2969 = vmatpush1.bf16.msra.mxu0 0
      %2970 = vmatprep.subr.bf16.mxu0 0
      %2971 = vmatpush1.bf16.msra.mxu0 0
      %2972 = vmatprep.subr.bf16.mxu0 0
      %2973 = vmatpush1.bf16.msra.mxu0 0
      %2974 = vmatprep.subr.bf16.mxu0 0
      %2975 = vmatpush1.bf16.msra.mxu0 0
      %2976 = vmatprep.mubr.bf16.mxu0 0
      %2977 = vmatmul.mubr.bf16.gmra.mrb[0].mxu0 %v2888
      %v2978 = vpop.f32.mrb[0].mxu0
      %v2979 = vadd.f32 0.0, %v2978
      %v2980 = vpop.f32.mrb[0].mxu0
      %v2981 = vpop.f32.mrb[0].mxu0
      %v2982 = vadd.f32 0.0, %v2981
      %v2983 = vpop.f32.mrb[0].mxu0
      %2984 = vmatprep.mubr.bf16.mxu0 0
      %2985 = vmatmul.mubr.bf16.gmra.mrb[0].mxu0 %v2891
      %v2986 = vpop.f32.mrb[0].mxu0
      %v2987 = vadd.f32 0.0, %v2986
      %v2988 = vpop.f32.mrb[0].mxu0
      %v2989 = vpop.f32.mrb[0].mxu0
      %v2990 = vadd.f32 0.0, %v2989
      %v2991 = vpop.f32.mrb[0].mxu0
      %2992 = vmatprep.mubr.bf16.mxu0 0
      %2993 = vmatmul.mubr.bf16.gmra.mrb[0].mxu0 %v2894
      %v2994 = vpop.f32.mrb[0].mxu0
      %v2995 = vadd.f32 0.0, %v2994
      %v2996 = vpop.f32.mrb[0].mxu0
      %v2997 = vpop.f32.mrb[0].mxu0
      %v2998 = vadd.f32 0.0, %v2997
      %v2999 = vpop.f32.mrb[0].mxu0
      %3000 = vmatprep.mubr.bf16.mxu0 0
      %3001 = vmatmul.mubr.bf16.gmra.mrb[0].mxu0 %v2897
      %v3002 = vpop.f32.mrb[0].mxu0
      %v3003 = vadd.f32 0.0, %v3002
      %v3004 = vpop.f32.mrb[0].mxu0
      %v3005 = vpop.f32.mrb[0].mxu0
      %v3006 = vadd.f32 0.0, %v3005
      %v3007 = vpop.f32.mrb[0].mxu0
      %3008 = vmatprep.mubr.bf16.mxu0 0
      %3009 = vmatmul.mubr.bf16.gmra.mrb[0].mxu0 %v2900
      %v3010 = vpop.f32.mrb[0].mxu0
      %v3011 = vadd.f32 0.0, %v3010
      %v3012 = vpop.f32.mrb[0].mxu0
      %v3013 = vpop.f32.mrb[0].mxu0
      %v3014 = vadd.f32 0.0, %v3013
      %v3015 = vpop.f32.mrb[0].mxu0
      %3016 = vmatprep.mubr.bf16.mxu0 0
      %3017 = vmatmul.mubr.bf16.gmra.mrb[0].mxu0 %v2903
      %v3018 = vpop.f32.mrb[0].mxu0
      %v3019 = vadd.f32 0.0, %v3018
      %v3020 = vpop.f32.mrb[0].mxu0
      %v3021 = vpop.f32.mrb[0].mxu0
      %v3022 = vadd.f32 0.0, %v3021
      %v3023 = vpop.f32.mrb[0].mxu0
      %3024 = vmatprep.mubr.bf16.mxu0 0
      %3025 = vmatmul.mubr.bf16.gmra.mrb[0].mxu0 %v2906
      %v3026 = vpop.f32.mrb[0].mxu0
      %v3027 = vadd.f32 0.0, %v3026
      %v3028 = vpop.f32.mrb[0].mxu0
      %v3029 = vpop.f32.mrb[0].mxu0
      %v3030 = vadd.f32 0.0, %v3029
      %v3031 = vpop.f32.mrb[0].mxu0
      %3032 = vmatprep.mubr.bf16.mxu0 0
      %3033 = vmatmul.mubr.bf16.gmra.mrb[0].mxu0 %v2909
      %v3034 = vpop.f32.mrb[0].mxu0
      %v3035 = vadd.f32 0.0, %v3034
      %v3036 = vpop.f32.mrb[0].mxu0
      %v3037 = vpop.f32.mrb[0].mxu0
      %v3038 = vadd.f32 0.0, %v3037
      %v3039 = vpop.f32.mrb[0].mxu0
      %3040 = vmatprep.mubr.bf16.mxu0 0
      %3041 = vmatmul.mubr.bf16.gmra.mrb[0].mxu0 %v2912
      %v3042 = vpop.f32.mrb[0].mxu0
      %v3043 = vadd.f32 0.0, %v3042
      %v3044 = vpop.f32.mrb[0].mxu0
      %v3045 = vpop.f32.mrb[0].mxu0
      %v3046 = vadd.f32 0.0, %v3045
      %v3047 = vpop.f32.mrb[0].mxu0
      %3048 = vmatprep.mubr.bf16.mxu0 0
      %3049 = vmatmul.mubr.bf16.gmra.mrb[0].mxu0 %v2915
      %v3050 = vpop.f32.mrb[0].mxu0
      %v3051 = vadd.f32 0.0, %v3050
      %v3052 = vpop.f32.mrb[0].mxu0
      %v3053 = vpop.f32.mrb[0].mxu0
      %v3054 = vadd.f32 0.0, %v3053
      %v3055 = vpop.f32.mrb[0].mxu0
      %3056 = vmatprep.mubr.bf16.mxu0 0
      %3057 = vmatmul.mubr.bf16.gmra.mrb[0].mxu0 %v2918
      %v3058 = vpop.f32.mrb[0].mxu0
      %v3059 = vadd.f32 0.0, %v3058
      %v3060 = vpop.f32.mrb[0].mxu0
      %v3061 = vpop.f32.mrb[0].mxu0
      %v3062 = vadd.f32 0.0, %v3061
      %v3063 = vpop.f32.mrb[0].mxu0
      %3064 = vmatprep.mubr.bf16.mxu0 0
      %3065 = vmatmul.mubr.bf16.gmra.mrb[0].mxu0 %v2921
      %v3066 = vpop.f32.mrb[0].mxu0
      %v3067 = vadd.f32 0.0, %v3066
      %v3068 = vpop.f32.mrb[0].mxu0
      %v3069 = vpop.f32.mrb[0].mxu0
      %v3070 = vadd.f32 0.0, %v3069
      %v3071 = vpop.f32.mrb[0].mxu0
      %3072 = vmatprep.mubr.bf16.mxu0 0
      %3073 = vmatmul.mubr.bf16.gmra.mrb[0].mxu0 %v2924
      %v3074 = vpop.f32.mrb[0].mxu0
      %v3075 = vadd.f32 0.0, %v3074
      %v3076 = vpop.f32.mrb[0].mxu0
      %v3077 = vpop.f32.mrb[0].mxu0
      %v3078 = vadd.f32 0.0, %v3077
      %v3079 = vpop.f32.mrb[0].mxu0
      %3080 = vmatprep.mubr.bf16.mxu0 0
      %3081 = vmatmul.mubr.bf16.gmra.mrb[0].mxu0 %v2927
      %v3082 = vpop.f32.mrb[0].mxu0
      %v3083 = vadd.f32 0.0, %v3082
      %v3084 = vpop.f32.mrb[0].mxu0
      %v3085 = vpop.f32.mrb[0].mxu0
      %v3086 = vadd.f32 0.0, %v3085
      %v3087 = vpop.f32.mrb[0].mxu0
      %3088 = vmatprep.mubr.bf16.mxu0 0
      %3089 = vmatmul.mubr.bf16.gmra.mrb[0].mxu0 %v2930
      %v3090 = vpop.f32.mrb[0].mxu0
      %v3091 = vadd.f32 0.0, %v3090
      %v3092 = vpop.f32.mrb[0].mxu0
      %v3093 = vpop.f32.mrb[0].mxu0
      %v3094 = vadd.f32 0.0, %v3093
      %v3095 = vpop.f32.mrb[0].mxu0
      %3096 = vmatprep.mubr.bf16.mxu0 0
      %3097 = vmatmul.mubr.bf16.gmra.mrb[0].mxu0 %v2933
      %v3098 = vpop.f32.mrb[0].mxu0
      %v3099 = vadd.f32 0.0, %v3098
      %v3100 = vpop.f32.mrb[0].mxu0
      %v3101 = vpop.f32.mrb[0].mxu0
      %v3102 = vadd.f32 0.0, %v3101
      %v3103 = vpop.f32.mrb[0].mxu0
      %3104 = vmatprep.mubr.bf16.mxu0 0
      %3105 = vmatmul.mubr.bf16.gmra.mrb[0].mxu0 %v2936
      %v3106 = vpop.f32.mrb[0].mxu0
      %v3107 = vadd.f32 0.0, %v3106
      %v3108 = vpop.f32.mrb[0].mxu0
      %v3109 = vpop.f32.mrb[0].mxu0
      %v3110 = vadd.f32 0.0, %v3109
      %v3111 = vpop.f32.mrb[0].mxu0
      %3112 = vmatprep.mubr.bf16.mxu0 0
      %3113 = vmatmul.mubr.bf16.gmra.mrb[0].mxu0 %v2939
      %v3114 = vpop.f32.mrb[0].mxu0
      %v3115 = vadd.f32 0.0, %v3114
      %v3116 = vpop.f32.mrb[0].mxu0
      %v3117 = vpop.f32.mrb[0].mxu0
      %v3118 = vadd.f32 0.0, %v3117
      %v3119 = vpop.f32.mrb[0].mxu0
      %3120 = vdwg.mxu0
      %v3121 = vadd.f32 %v2849, %v2979
      %v3122 = vadd.f32 %v2850, %v2982
      %v3123 = vadd.f32 %v2851, %v2987
      %v3124 = vadd.f32 %v2852, %v2990
      %v3125 = vadd.f32 %v2853, %v2995
      %v3126 = vadd.f32 %v2854, %v2998
      %v3127 = vadd.f32 %v2855, %v3003
      %v3128 = vadd.f32 %v2856, %v3006
      %v3129 = vadd.f32 %v2857, %v3011
      %v3130 = vadd.f32 %v2858, %v3014
      %v3131 = vadd.f32 %v2859, %v3019
      %v3132 = vadd.f32 %v2860, %v3022
      %v3133 = vadd.f32 %v2861, %v3027
      %v3134 = vadd.f32 %v2862, %v3030
      %v3135 = vadd.f32 %v2863, %v3035
      %v3136 = vadd.f32 %v2864, %v3038
      %v3137 = vadd.f32 %v2865, %v3043
      %v3138 = vadd.f32 %v2866, %v3046
      %v3139 = vadd.f32 %v2867, %v3051
      %v3140 = vadd.f32 %v2868, %v3054
      %v3141 = vadd.f32 %v2869, %v3059
      %v3142 = vadd.f32 %v2870, %v3062
      %v3143 = vadd.f32 %v2871, %v3067
      %v3144 = vadd.f32 %v2872, %v3070
      %v3145 = vadd.f32 %v2873, %v3075
      %v3146 = vadd.f32 %v2874, %v3078
      %v3147 = vadd.f32 %v2875, %v3083
      %v3148 = vadd.f32 %v2876, %v3086
      %v3149 = vadd.f32 %v2877, %v3091
      %v3150 = vadd.f32 %v2878, %v3094
      %v3151 = vadd.f32 %v2879, %v3099
      %v3152 = vadd.f32 %v2880, %v3102
      %v3153 = vadd.f32 %v2881, %v3107
      %v3154 = vadd.f32 %v2882, %v3110
      %v3155 = vadd.f32 %v2883, %v3115
      %v3156 = vadd.f32 %v2884, %v3118
      %3157 = vst.msk [vmem:[#allocation3] sm:$0xff] %vm370, %v3121
      %3158 = vst.msk [vmem:[#allocation3 + $0x8] sm:$0xff] %vm370, %v3122
      %3159 = vst.msk [vmem:[#allocation3 + $0x10] sm:$0xff] %vm370, %v3123
      %3160 = vst.msk [vmem:[#allocation3 + $0x18] sm:$0xff] %vm370, %v3124
      %3161 = vst.msk [vmem:[#allocation3 + $0x20] sm:$0xff] %vm370, %v3125
      %3162 = vst.msk [vmem:[#allocation3 + $0x28] sm:$0xff] %vm370, %v3126
      %3163 = vst.msk [vmem:[#allocation3 + $0x30] sm:$0xff] %vm370, %v3127
      %3164 = vst.msk [vmem:[#allocation3 + $0x38] sm:$0xff] %vm370, %v3128
      %3165 = vst.msk [vmem:[#allocation3 + $0x40] sm:$0xff] %vm370, %v3129
      %3166 = vst.msk [vmem:[#allocation3 + $0x48] sm:$0xff] %vm370, %v3130
      %3167 = vst.msk [vmem:[#allocation3 + $0x50] sm:$0xff] %vm370, %v3131
      %3168 = vst.msk [vmem:[#allocation3 + $0x58] sm:$0xff] %vm370, %v3132
      %3169 = vst.msk [vmem:[#allocation3 + $0x60] sm:$0xff] %vm370, %v3133
      %3170 = vst.msk [vmem:[#allocation3 + $0x68] sm:$0xff] %vm370, %v3134
      %3171 = vst.msk [vmem:[#allocation3 + $0x70] sm:$0xff] %vm370, %v3135
      %3172 = vst.msk [vmem:[#allocation3 + $0x78] sm:$0xff] %vm370, %v3136
      %3173 = vst.msk [vmem:[#allocation3 + $0x80] sm:$0xff] %vm370, %v3137
      %3174 = vst.msk [vmem:[#allocation3 + $0x88] sm:$0xff] %vm370, %v3138
      %3175 = vst.msk [vmem:[#allocation3 + $0x90] sm:$0xff] %vm370, %v3139
      %3176 = vst.msk [vmem:[#allocation3 + $0x98] sm:$0xff] %vm370, %v3140
      %3177 = vst.msk [vmem:[#allocation3 + $0xa0] sm:$0xff] %vm370, %v3141
      %3178 = vst.msk [vmem:[#allocation3 + $0xa8] sm:$0xff] %vm370, %v3142
      %3179 = vst.msk [vmem:[#allocation3 + $0xb0] sm:$0xff] %vm370, %v3143
      %3180 = vst.msk [vmem:[#allocation3 + $0xb8] sm:$0xff] %vm370, %v3144
      %3181 = vst.msk [vmem:[#allocation3 + $0xc0] sm:$0xff] %vm370, %v3145
      %3182 = vst.msk [vmem:[#allocation3 + $0xc8] sm:$0xff] %vm370, %v3146
      %3183 = vst.msk [vmem:[#allocation3 + $0xd0] sm:$0xff] %vm370, %v3147
      %3184 = vst.msk [vmem:[#allocation3 + $0xd8] sm:$0xff] %vm370, %v3148
      %3185 = vst.msk [vmem:[#allocation3 + $0xe0] sm:$0xff] %vm370, %v3149
      %3186 = vst.msk [vmem:[#allocation3 + $0xe8] sm:$0xff] %vm370, %v3150
      %3187 = vst.msk [vmem:[#allocation3 + $0xf0] sm:$0xff] %vm370, %v3151
      %3188 = vst.msk [vmem:[#allocation3 + $0xf8] sm:$0xff] %vm370, %v3152
      %3189 = vst.msk [vmem:[#allocation3 + $0x100] sm:$0xff] %vm370, %v3153
      %3190 = vst.msk [vmem:[#allocation3 + $0x108] sm:$0xff] %vm370, %v3154
      %3191 = vst.msk [vmem:[#allocation3 + $0x110] sm:$0xff] %vm370, %v3155
      %3192 = vst.msk [vmem:[#allocation3 + $0x118] sm:$0xff] %vm370, %v3156
      %v3193 = vld [vmem:[#allocation2 + $0x25] sm:$0xff]
      %v3194 = vld [vmem:[#allocation2 + $0x2d] sm:$0xff]
      %v3195 = vld [vmem:[#allocation2 + $0x35] sm:$0xff]
      %v3196 = vld [vmem:[#allocation2 + $0x3d] sm:$0xff]
      %v3197 = vld [vmem:[#allocation2 + $0x45] sm:$0xff]
      %v3198 = vld [vmem:[#allocation2 + $0x4d] sm:$0xff]
      %v3199 = vld [vmem:[#allocation2 + $0x55] sm:$0xff]
      %v3200 = vld [vmem:[#allocation2 + $0x5d] sm:$0xff]
      %v3201 = vld [vmem:[#allocation2 + $0x65] sm:$0xff]
      %v3202 = vld [vmem:[#allocation2 + $0x6d] sm:$0xff]
      %v3203 = vld [vmem:[#allocation2 + $0x75] sm:$0xff]
      %v3204 = vld [vmem:[#allocation2 + $0x7d] sm:$0xff]
      %v3205 = vld [vmem:[#allocation2 + $0x85] sm:$0xff]
      %v3206 = vld [vmem:[#allocation2 + $0x8d] sm:$0xff]
      %v3207 = vld [vmem:[#allocation2 + $0x95] sm:$0xff]
      %v3208 = vld [vmem:[#allocation2 + $0x9d] sm:$0xff]
      %v3209 = vld [vmem:[#allocation2 + $0xa5] sm:$0xff]
      %v3210 = vld [vmem:[#allocation2 + $0xad] sm:$0xff]
      %v3211 = vld [vmem:[#allocation2 + $0xb5] sm:$0xff]
      %v3212 = vld [vmem:[#allocation2 + $0xbd] sm:$0xff]
      %v3213 = vld [vmem:[#allocation2 + $0xc5] sm:$0xff]
      %v3214 = vld [vmem:[#allocation2 + $0xcd] sm:$0xff]
      %v3215 = vld [vmem:[#allocation2 + $0xd5] sm:$0xff]
      %v3216 = vld [vmem:[#allocation2 + $0xdd] sm:$0xff]
      %v3217 = vld [vmem:[#allocation2 + $0xe5] sm:$0xff]
      %v3218 = vld [vmem:[#allocation2 + $0xed] sm:$0xff]
      %v3219 = vld [vmem:[#allocation2 + $0xf5] sm:$0xff]
      %v3220 = vld [vmem:[#allocation2 + $0xfd] sm:$0xff]
      %v3221 = vld [vmem:[#allocation2 + $0x105] sm:$0xff]
      %v3222 = vld [vmem:[#allocation2 + $0x10d] sm:$0xff]
      %v3223 = vld [vmem:[#allocation2 + $0x115] sm:$0xff]
      %v3224 = vld [vmem:[#allocation2 + $0x11d] sm:$0xff]
      %v3225 = vld [vmem:[#allocation2 + $0x125] sm:$0xff]
      %v3226 = vld [vmem:[#allocation2 + $0x12d] sm:$0xff]
      %v3227 = vld [vmem:[#allocation2 + $0x135] sm:$0xff]
      %v3228 = vld [vmem:[#allocation2 + $0x13d] sm:$0xff]
      %v3229 = vpack.c.bf16 %v3194, %v3193
      %v3230 = vpack.c.bf16 %v3196, %v3195
      %v3231 = vpack.c.bf16 %v3198, %v3197
      %v3232 = vpack.c.bf16 %v3200, %v3199
      %v3233 = vpack.c.bf16 %v3202, %v3201
      %v3234 = vpack.c.bf16 %v3204, %v3203
      %v3235 = vpack.c.bf16 %v3206, %v3205
      %v3236 = vpack.c.bf16 %v3208, %v3207
      %v3237 = vpack.c.bf16 %v3210, %v3209
      %v3238 = vpack.c.bf16 %v3212, %v3211
      %v3239 = vpack.c.bf16 %v3214, %v3213
      %v3240 = vpack.c.bf16 %v3216, %v3215
      %v3241 = vpack.c.bf16 %v3218, %v3217
      %v3242 = vpack.c.bf16 %v3220, %v3219
      %v3243 = vpack.c.bf16 %v3222, %v3221
      %v3244 = vpack.c.bf16 %v3224, %v3223
      %v3245 = vpack.c.bf16 %v3226, %v3225
      %v3246 = vpack.c.bf16 %v3228, %v3227
      %v3247 = vld [vmem:[#allocation3] sm:$0xff]
      %v3248 = vld [vmem:[#allocation3 + $0x8] sm:$0xff]
      %v3249 = vld [vmem:[#allocation3 + $0x10] sm:$0xff]
      %v3250 = vld [vmem:[#allocation3 + $0x18] sm:$0xff]
      %v3251 = vld [vmem:[#allocation3 + $0x20] sm:$0xff]
      %v3252 = vld [vmem:[#allocation3 + $0x28] sm:$0xff]
      %v3253 = vld [vmem:[#allocation3 + $0x30] sm:$0xff]
      %v3254 = vld [vmem:[#allocation3 + $0x38] sm:$0xff]
      %v3255 = vld [vmem:[#allocation3 + $0x40] sm:$0xff]
      %v3256 = vld [vmem:[#allocation3 + $0x48] sm:$0xff]
      %v3257 = vld [vmem:[#allocation3 + $0x50] sm:$0xff]
      %v3258 = vld [vmem:[#allocation3 + $0x58] sm:$0xff]
      %v3259 = vld [vmem:[#allocation3 + $0x60] sm:$0xff]
      %v3260 = vld [vmem:[#allocation3 + $0x68] sm:$0xff]
      %v3261 = vld [vmem:[#allocation3 + $0x70] sm:$0xff]
      %v3262 = vld [vmem:[#allocation3 + $0x78] sm:$0xff]
      %v3263 = vld [vmem:[#allocation3 + $0x80] sm:$0xff]
      %v3264 = vld [vmem:[#allocation3 + $0x88] sm:$0xff]
      %v3265 = vld [vmem:[#allocation3 + $0x90] sm:$0xff]
      %v3266 = vld [vmem:[#allocation3 + $0x98] sm:$0xff]
      %v3267 = vld [vmem:[#allocation3 + $0xa0] sm:$0xff]
      %v3268 = vld [vmem:[#allocation3 + $0xa8] sm:$0xff]
      %v3269 = vld [vmem:[#allocation3 + $0xb0] sm:$0xff]
      %v3270 = vld [vmem:[#allocation3 + $0xb8] sm:$0xff]
      %v3271 = vld [vmem:[#allocation3 + $0xc0] sm:$0xff]
      %v3272 = vld [vmem:[#allocation3 + $0xc8] sm:$0xff]
      %v3273 = vld [vmem:[#allocation3 + $0xd0] sm:$0xff]
      %v3274 = vld [vmem:[#allocation3 + $0xd8] sm:$0xff]
      %v3275 = vld [vmem:[#allocation3 + $0xe0] sm:$0xff]
      %v3276 = vld [vmem:[#allocation3 + $0xe8] sm:$0xff]
      %v3277 = vld [vmem:[#allocation3 + $0xf0] sm:$0xff]
      %v3278 = vld [vmem:[#allocation3 + $0xf8] sm:$0xff]
      %v3279 = vld [vmem:[#allocation3 + $0x100] sm:$0xff]
      %v3280 = vld [vmem:[#allocation3 + $0x108] sm:$0xff]
      %v3281 = vld [vmem:[#allocation3 + $0x110] sm:$0xff]
      %v3282 = vld [vmem:[#allocation3 + $0x118] sm:$0xff]
      %s3283 = scalar_lea.vmem %s1, 14
      %v3284 = vld [vmem:[%s3283] sm:$0x3]
      %v3286 = vsel %vm328, %v3229, 0
      %v3289 = vsel %vm328, %v3230, 0
      %v3292 = vsel %vm328, %v3231, 0
      %v3295 = vsel %vm328, %v3232, 0
      %v3298 = vsel %vm328, %v3233, 0
      %v3301 = vsel %vm328, %v3234, 0
      %v3304 = vsel %vm328, %v3235, 0
      %v3307 = vsel %vm328, %v3236, 0
      %v3310 = vsel %vm328, %v3237, 0
      %v3313 = vsel %vm328, %v3238, 0
      %v3316 = vsel %vm328, %v3239, 0
      %v3319 = vsel %vm328, %v3240, 0
      %v3322 = vsel %vm328, %v3241, 0
      %v3325 = vsel %vm328, %v3242, 0
      %v3328 = vsel %vm328, %v3243, 0
      %v3331 = vsel %vm328, %v3244, 0
      %v3334 = vsel %vm328, %v3245, 0
      %v3337 = vsel %vm328, %v3246, 0
      %v3340 = vsel %vm552, %v3284, 0
      %3342 = vmatprep.subr.bf16.mxu0 0
      %3343 = vmatpush1.bf16.msra.mxu0 %v3340
      %3344 = vmatprep.subr.bf16.mxu0 0
      %3345 = vmatpush1.bf16.msra.mxu0 0
      %3346 = vmatprep.subr.bf16.mxu0 0
      %3347 = vmatpush1.bf16.msra.mxu0 0
      %3348 = vmatprep.subr.bf16.mxu0 0
      %3349 = vmatpush1.bf16.msra.mxu0 0
      %3350 = vmatprep.subr.bf16.mxu0 0
      %3351 = vmatpush1.bf16.msra.mxu0 0
      %3352 = vmatprep.subr.bf16.mxu0 0
      %3353 = vmatpush1.bf16.msra.mxu0 0
      %3354 = vmatprep.subr.bf16.mxu0 0
      %3355 = vmatpush1.bf16.msra.mxu0 0
      %3356 = vmatprep.subr.bf16.mxu0 0
      %3357 = vmatpush1.bf16.msra.mxu0 0
      %3358 = vmatprep.subr.bf16.mxu0 0
      %3359 = vmatpush1.bf16.msra.mxu0 0
      %3360 = vmatprep.subr.bf16.mxu0 0
      %3361 = vmatpush1.bf16.msra.mxu0 0
      %3362 = vmatprep.subr.bf16.mxu0 0
      %3363 = vmatpush1.bf16.msra.mxu0 0
      %3364 = vmatprep.subr.bf16.mxu0 0
      %3365 = vmatpush1.bf16.msra.mxu0 0
      %3366 = vmatprep.subr.bf16.mxu0 0
      %3367 = vmatpush1.bf16.msra.mxu0 0
      %3368 = vmatprep.subr.bf16.mxu0 0
      %3369 = vmatpush1.bf16.msra.mxu0 0
      %3370 = vmatprep.subr.bf16.mxu0 0
      %3371 = vmatpush1.bf16.msra.mxu0 0
      %3372 = vmatprep.subr.bf16.mxu0 0
      %3373 = vmatpush1.bf16.msra.mxu0 0
      %3374 = vmatprep.mubr.bf16.mxu0 0
      %3375 = vmatmul.mubr.bf16.gmra.mrb[0].mxu0 %v3286
      %v3376 = vpop.f32.mrb[0].mxu0
      %v3377 = vadd.f32 0.0, %v3376
      %v3378 = vpop.f32.mrb[0].mxu0
      %v3379 = vpop.f32.mrb[0].mxu0
      %v3380 = vadd.f32 0.0, %v3379
      %v3381 = vpop.f32.mrb[0].mxu0
      %3382 = vmatprep.mubr.bf16.mxu0 0
      %3383 = vmatmul.mubr.bf16.gmra.mrb[0].mxu0 %v3289
      %v3384 = vpop.f32.mrb[0].mxu0
      %v3385 = vadd.f32 0.0, %v3384
      %v3386 = vpop.f32.mrb[0].mxu0
      %v3387 = vpop.f32.mrb[0].mxu0
      %v3388 = vadd.f32 0.0, %v3387
      %v3389 = vpop.f32.mrb[0].mxu0
      %3390 = vmatprep.mubr.bf16.mxu0 0
      %3391 = vmatmul.mubr.bf16.gmra.mrb[0].mxu0 %v3292
      %v3392 = vpop.f32.mrb[0].mxu0
      %v3393 = vadd.f32 0.0, %v3392
      %v3394 = vpop.f32.mrb[0].mxu0
      %v3395 = vpop.f32.mrb[0].mxu0
      %v3396 = vadd.f32 0.0, %v3395
      %v3397 = vpop.f32.mrb[0].mxu0
      %3398 = vmatprep.mubr.bf16.mxu0 0
      %3399 = vmatmul.mubr.bf16.gmra.mrb[0].mxu0 %v3295
      %v3400 = vpop.f32.mrb[0].mxu0
      %v3401 = vadd.f32 0.0, %v3400
      %v3402 = vpop.f32.mrb[0].mxu0
      %v3403 = vpop.f32.mrb[0].mxu0
      %v3404 = vadd.f32 0.0, %v3403
      %v3405 = vpop.f32.mrb[0].mxu0
      %3406 = vmatprep.mubr.bf16.mxu0 0
      %3407 = vmatmul.mubr.bf16.gmra.mrb[0].mxu0 %v3298
      %v3408 = vpop.f32.mrb[0].mxu0
      %v3409 = vadd.f32 0.0, %v3408
      %v3410 = vpop.f32.mrb[0].mxu0
      %v3411 = vpop.f32.mrb[0].mxu0
      %v3412 = vadd.f32 0.0, %v3411
      %v3413 = vpop.f32.mrb[0].mxu0
      %3414 = vmatprep.mubr.bf16.mxu0 0
      %3415 = vmatmul.mubr.bf16.gmra.mrb[0].mxu0 %v3301
      %v3416 = vpop.f32.mrb[0].mxu0
      %v3417 = vadd.f32 0.0, %v3416
      %v3418 = vpop.f32.mrb[0].mxu0
      %v3419 = vpop.f32.mrb[0].mxu0
      %v3420 = vadd.f32 0.0, %v3419
      %v3421 = vpop.f32.mrb[0].mxu0
      %3422 = vmatprep.mubr.bf16.mxu0 0
      %3423 = vmatmul.mubr.bf16.gmra.mrb[0].mxu0 %v3304
      %v3424 = vpop.f32.mrb[0].mxu0
      %v3425 = vadd.f32 0.0, %v3424
      %v3426 = vpop.f32.mrb[0].mxu0
      %v3427 = vpop.f32.mrb[0].mxu0
      %v3428 = vadd.f32 0.0, %v3427
      %v3429 = vpop.f32.mrb[0].mxu0
      %3430 = vmatprep.mubr.bf16.mxu0 0
      %3431 = vmatmul.mubr.bf16.gmra.mrb[0].mxu0 %v3307
      %v3432 = vpop.f32.mrb[0].mxu0
      %v3433 = vadd.f32 0.0, %v3432
      %v3434 = vpop.f32.mrb[0].mxu0
      %v3435 = vpop.f32.mrb[0].mxu0
      %v3436 = vadd.f32 0.0, %v3435
      %v3437 = vpop.f32.mrb[0].mxu0
      %3438 = vmatprep.mubr.bf16.mxu0 0
      %3439 = vmatmul.mubr.bf16.gmra.mrb[0].mxu0 %v3310
      %v3440 = vpop.f32.mrb[0].mxu0
      %v3441 = vadd.f32 0.0, %v3440
      %v3442 = vpop.f32.mrb[0].mxu0
      %v3443 = vpop.f32.mrb[0].mxu0
      %v3444 = vadd.f32 0.0, %v3443
      %v3445 = vpop.f32.mrb[0].mxu0
      %3446 = vmatprep.mubr.bf16.mxu0 0
      %3447 = vmatmul.mubr.bf16.gmra.mrb[0].mxu0 %v3313
      %v3448 = vpop.f32.mrb[0].mxu0
      %v3449 = vadd.f32 0.0, %v3448
      %v3450 = vpop.f32.mrb[0].mxu0
      %v3451 = vpop.f32.mrb[0].mxu0
      %v3452 = vadd.f32 0.0, %v3451
      %v3453 = vpop.f32.mrb[0].mxu0
      %3454 = vmatprep.mubr.bf16.mxu0 0
      %3455 = vmatmul.mubr.bf16.gmra.mrb[0].mxu0 %v3316
      %v3456 = vpop.f32.mrb[0].mxu0
      %v3457 = vadd.f32 0.0, %v3456
      %v3458 = vpop.f32.mrb[0].mxu0
      %v3459 = vpop.f32.mrb[0].mxu0
      %v3460 = vadd.f32 0.0, %v3459
      %v3461 = vpop.f32.mrb[0].mxu0
      %3462 = vmatprep.mubr.bf16.mxu0 0
      %3463 = vmatmul.mubr.bf16.gmra.mrb[0].mxu0 %v3319
      %v3464 = vpop.f32.mrb[0].mxu0
      %v3465 = vadd.f32 0.0, %v3464
      %v3466 = vpop.f32.mrb[0].mxu0
      %v3467 = vpop.f32.mrb[0].mxu0
      %v3468 = vadd.f32 0.0, %v3467
      %v3469 = vpop.f32.mrb[0].mxu0
      %3470 = vmatprep.mubr.bf16.mxu0 0
      %3471 = vmatmul.mubr.bf16.gmra.mrb[0].mxu0 %v3322
      %v3472 = vpop.f32.mrb[0].mxu0
      %v3473 = vadd.f32 0.0, %v3472
      %v3474 = vpop.f32.mrb[0].mxu0
      %v3475 = vpop.f32.mrb[0].mxu0
      %v3476 = vadd.f32 0.0, %v3475
      %v3477 = vpop.f32.mrb[0].mxu0
      %3478 = vmatprep.mubr.bf16.mxu0 0
      %3479 = vmatmul.mubr.bf16.gmra.mrb[0].mxu0 %v3325
      %v3480 = vpop.f32.mrb[0].mxu0
      %v3481 = vadd.f32 0.0, %v3480
      %v3482 = vpop.f32.mrb[0].mxu0
      %v3483 = vpop.f32.mrb[0].mxu0
      %v3484 = vadd.f32 0.0, %v3483
      %v3485 = vpop.f32.mrb[0].mxu0
      %3486 = vmatprep.mubr.bf16.mxu0 0
      %3487 = vmatmul.mubr.bf16.gmra.mrb[0].mxu0 %v3328
      %v3488 = vpop.f32.mrb[0].mxu0
      %v3489 = vadd.f32 0.0, %v3488
      %v3490 = vpop.f32.mrb[0].mxu0
      %v3491 = vpop.f32.mrb[0].mxu0
      %v3492 = vadd.f32 0.0, %v3491
      %v3493 = vpop.f32.mrb[0].mxu0
      %3494 = vmatprep.mubr.bf16.mxu0 0
      %3495 = vmatmul.mubr.bf16.gmra.mrb[0].mxu0 %v3331
      %v3496 = vpop.f32.mrb[0].mxu0
      %v3497 = vadd.f32 0.0, %v3496
      %v3498 = vpop.f32.mrb[0].mxu0
      %v3499 = vpop.f32.mrb[0].mxu0
      %v3500 = vadd.f32 0.0, %v3499
      %v3501 = vpop.f32.mrb[0].mxu0
      %3502 = vmatprep.mubr.bf16.mxu0 0
      %3503 = vmatmul.mubr.bf16.gmra.mrb[0].mxu0 %v3334
      %v3504 = vpop.f32.mrb[0].mxu0
      %v3505 = vadd.f32 0.0, %v3504
      %v3506 = vpop.f32.mrb[0].mxu0
      %v3507 = vpop.f32.mrb[0].mxu0
      %v3508 = vadd.f32 0.0, %v3507
      %v3509 = vpop.f32.mrb[0].mxu0
      %3510 = vmatprep.mubr.bf16.mxu0 0
      %3511 = vmatmul.mubr.bf16.gmra.mrb[0].mxu0 %v3337
      %v3512 = vpop.f32.mrb[0].mxu0
      %v3513 = vadd.f32 0.0, %v3512
      %v3514 = vpop.f32.mrb[0].mxu0
      %v3515 = vpop.f32.mrb[0].mxu0
      %v3516 = vadd.f32 0.0, %v3515
      %v3517 = vpop.f32.mrb[0].mxu0
      %3518 = vdwg.mxu0
      %v3519 = vadd.f32 %v3247, %v3377
      %v3520 = vadd.f32 %v3248, %v3380
      %v3521 = vadd.f32 %v3249, %v3385
      %v3522 = vadd.f32 %v3250, %v3388
      %v3523 = vadd.f32 %v3251, %v3393
      %v3524 = vadd.f32 %v3252, %v3396
      %v3525 = vadd.f32 %v3253, %v3401
      %v3526 = vadd.f32 %v3254, %v3404
      %v3527 = vadd.f32 %v3255, %v3409
      %v3528 = vadd.f32 %v3256, %v3412
      %v3529 = vadd.f32 %v3257, %v3417
      %v3530 = vadd.f32 %v3258, %v3420
      %v3531 = vadd.f32 %v3259, %v3425
      %v3532 = vadd.f32 %v3260, %v3428
      %v3533 = vadd.f32 %v3261, %v3433
      %v3534 = vadd.f32 %v3262, %v3436
      %v3535 = vadd.f32 %v3263, %v3441
      %v3536 = vadd.f32 %v3264, %v3444
      %v3537 = vadd.f32 %v3265, %v3449
      %v3538 = vadd.f32 %v3266, %v3452
      %v3539 = vadd.f32 %v3267, %v3457
      %v3540 = vadd.f32 %v3268, %v3460
      %v3541 = vadd.f32 %v3269, %v3465
      %v3542 = vadd.f32 %v3270, %v3468
      %v3543 = vadd.f32 %v3271, %v3473
      %v3544 = vadd.f32 %v3272, %v3476
      %v3545 = vadd.f32 %v3273, %v3481
      %v3546 = vadd.f32 %v3274, %v3484
      %v3547 = vadd.f32 %v3275, %v3489
      %v3548 = vadd.f32 %v3276, %v3492
      %v3549 = vadd.f32 %v3277, %v3497
      %v3550 = vadd.f32 %v3278, %v3500
      %v3551 = vadd.f32 %v3279, %v3505
      %v3552 = vadd.f32 %v3280, %v3508
      %v3553 = vadd.f32 %v3281, %v3513
      %v3554 = vadd.f32 %v3282, %v3516
      %3555 = vst.msk [vmem:[#allocation3] sm:$0xff] %vm370, %v3519
      %3556 = vst.msk [vmem:[#allocation3 + $0x8] sm:$0xff] %vm370, %v3520
      %3557 = vst.msk [vmem:[#allocation3 + $0x10] sm:$0xff] %vm370, %v3521
      %3558 = vst.msk [vmem:[#allocation3 + $0x18] sm:$0xff] %vm370, %v3522
      %3559 = vst.msk [vmem:[#allocation3 + $0x20] sm:$0xff] %vm370, %v3523
      %3560 = vst.msk [vmem:[#allocation3 + $0x28] sm:$0xff] %vm370, %v3524
      %3561 = vst.msk [vmem:[#allocation3 + $0x30] sm:$0xff] %vm370, %v3525
      %3562 = vst.msk [vmem:[#allocation3 + $0x38] sm:$0xff] %vm370, %v3526
      %3563 = vst.msk [vmem:[#allocation3 + $0x40] sm:$0xff] %vm370, %v3527
      %3564 = vst.msk [vmem:[#allocation3 + $0x48] sm:$0xff] %vm370, %v3528
      %3565 = vst.msk [vmem:[#allocation3 + $0x50] sm:$0xff] %vm370, %v3529
      %3566 = vst.msk [vmem:[#allocation3 + $0x58] sm:$0xff] %vm370, %v3530
      %3567 = vst.msk [vmem:[#allocation3 + $0x60] sm:$0xff] %vm370, %v3531
      %3568 = vst.msk [vmem:[#allocation3 + $0x68] sm:$0xff] %vm370, %v3532
      %3569 = vst.msk [vmem:[#allocation3 + $0x70] sm:$0xff] %vm370, %v3533
      %3570 = vst.msk [vmem:[#allocation3 + $0x78] sm:$0xff] %vm370, %v3534
      %3571 = vst.msk [vmem:[#allocation3 + $0x80] sm:$0xff] %vm370, %v3535
      %3572 = vst.msk [vmem:[#allocation3 + $0x88] sm:$0xff] %vm370, %v3536
      %3573 = vst.msk [vmem:[#allocation3 + $0x90] sm:$0xff] %vm370, %v3537
      %3574 = vst.msk [vmem:[#allocation3 + $0x98] sm:$0xff] %vm370, %v3538
      %3575 = vst.msk [vmem:[#allocation3 + $0xa0] sm:$0xff] %vm370, %v3539
      %3576 = vst.msk [vmem:[#allocation3 + $0xa8] sm:$0xff] %vm370, %v3540
      %3577 = vst.msk [vmem:[#allocation3 + $0xb0] sm:$0xff] %vm370, %v3541
      %3578 = vst.msk [vmem:[#allocation3 + $0xb8] sm:$0xff] %vm370, %v3542
      %3579 = vst.msk [vmem:[#allocation3 + $0xc0] sm:$0xff] %vm370, %v3543
      %3580 = vst.msk [vmem:[#allocation3 + $0xc8] sm:$0xff] %vm370, %v3544
      %3581 = vst.msk [vmem:[#allocation3 + $0xd0] sm:$0xff] %vm370, %v3545
      %3582 = vst.msk [vmem:[#allocation3 + $0xd8] sm:$0xff] %vm370, %v3546
      %3583 = vst.msk [vmem:[#allocation3 + $0xe0] sm:$0xff] %vm370, %v3547
      %3584 = vst.msk [vmem:[#allocation3 + $0xe8] sm:$0xff] %vm370, %v3548
      %3585 = vst.msk [vmem:[#allocation3 + $0xf0] sm:$0xff] %vm370, %v3549
      %3586 = vst.msk [vmem:[#allocation3 + $0xf8] sm:$0xff] %vm370, %v3550
      %3587 = vst.msk [vmem:[#allocation3 + $0x100] sm:$0xff] %vm370, %v3551
      %3588 = vst.msk [vmem:[#allocation3 + $0x108] sm:$0xff] %vm370, %v3552
      %3589 = vst.msk [vmem:[#allocation3 + $0x110] sm:$0xff] %vm370, %v3553
      %3590 = vst.msk [vmem:[#allocation3 + $0x118] sm:$0xff] %vm370, %v3554
      %v3591 = vld [vmem:[#allocation2 + $0x26] sm:$0xff]
      %v3592 = vld [vmem:[#allocation2 + $0x2e] sm:$0xff]
      %v3593 = vld [vmem:[#allocation2 + $0x36] sm:$0xff]
      %v3594 = vld [vmem:[#allocation2 + $0x3e] sm:$0xff]
      %v3595 = vld [vmem:[#allocation2 + $0x46] sm:$0xff]
      %v3596 = vld [vmem:[#allocation2 + $0x4e] sm:$0xff]
      %v3597 = vld [vmem:[#allocation2 + $0x56] sm:$0xff]
      %v3598 = vld [vmem:[#allocation2 + $0x5e] sm:$0xff]
      %v3599 = vld [vmem:[#allocation2 + $0x66] sm:$0xff]
      %v3600 = vld [vmem:[#allocation2 + $0x6e] sm:$0xff]
      %v3601 = vld [vmem:[#allocation2 + $0x76] sm:$0xff]
      %v3602 = vld [vmem:[#allocation2 + $0x7e] sm:$0xff]
      %v3603 = vld [vmem:[#allocation2 + $0x86] sm:$0xff]
      %v3604 = vld [vmem:[#allocation2 + $0x8e] sm:$0xff]
      %v3605 = vld [vmem:[#allocation2 + $0x96] sm:$0xff]
      %v3606 = vld [vmem:[#allocation2 + $0x9e] sm:$0xff]
      %v3607 = vld [vmem:[#allocation2 + $0xa6] sm:$0xff]
      %v3608 = vld [vmem:[#allocation2 + $0xae] sm:$0xff]
      %v3609 = vld [vmem:[#allocation2 + $0xb6] sm:$0xff]
      %v3610 = vld [vmem:[#allocation2 + $0xbe] sm:$0xff]
      %v3611 = vld [vmem:[#allocation2 + $0xc6] sm:$0xff]
      %v3612 = vld [vmem:[#allocation2 + $0xce] sm:$0xff]
      %v3613 = vld [vmem:[#allocation2 + $0xd6] sm:$0xff]
      %v3614 = vld [vmem:[#allocation2 + $0xde] sm:$0xff]
      %v3615 = vld [vmem:[#allocation2 + $0xe6] sm:$0xff]
      %v3616 = vld [vmem:[#allocation2 + $0xee] sm:$0xff]
      %v3617 = vld [vmem:[#allocation2 + $0xf6] sm:$0xff]
      %v3618 = vld [vmem:[#allocation2 + $0xfe] sm:$0xff]
      %v3619 = vld [vmem:[#allocation2 + $0x106] sm:$0xff]
      %v3620 = vld [vmem:[#allocation2 + $0x10e] sm:$0xff]
      %v3621 = vld [vmem:[#allocation2 + $0x116] sm:$0xff]
      %v3622 = vld [vmem:[#allocation2 + $0x11e] sm:$0xff]
      %v3623 = vld [vmem:[#allocation2 + $0x126] sm:$0xff]
      %v3624 = vld [vmem:[#allocation2 + $0x12e] sm:$0xff]
      %v3625 = vld [vmem:[#allocation2 + $0x136] sm:$0xff]
      %v3626 = vld [vmem:[#allocation2 + $0x13e] sm:$0xff]
      %v3627 = vpack.c.bf16 %v3592, %v3591
      %v3628 = vpack.c.bf16 %v3594, %v3593
      %v3629 = vpack.c.bf16 %v3596, %v3595
      %v3630 = vpack.c.bf16 %v3598, %v3597
      %v3631 = vpack.c.bf16 %v3600, %v3599
      %v3632 = vpack.c.bf16 %v3602, %v3601
      %v3633 = vpack.c.bf16 %v3604, %v3603
      %v3634 = vpack.c.bf16 %v3606, %v3605
      %v3635 = vpack.c.bf16 %v3608, %v3607
      %v3636 = vpack.c.bf16 %v3610, %v3609
      %v3637 = vpack.c.bf16 %v3612, %v3611
      %v3638 = vpack.c.bf16 %v3614, %v3613
      %v3639 = vpack.c.bf16 %v3616, %v3615
      %v3640 = vpack.c.bf16 %v3618, %v3617
      %v3641 = vpack.c.bf16 %v3620, %v3619
      %v3642 = vpack.c.bf16 %v3622, %v3621
      %v3643 = vpack.c.bf16 %v3624, %v3623
      %v3644 = vpack.c.bf16 %v3626, %v3625
      %v3645 = vld [vmem:[#allocation3] sm:$0xff]
      %v3646 = vld [vmem:[#allocation3 + $0x8] sm:$0xff]
      %v3647 = vld [vmem:[#allocation3 + $0x10] sm:$0xff]
      %v3648 = vld [vmem:[#allocation3 + $0x18] sm:$0xff]
      %v3649 = vld [vmem:[#allocation3 + $0x20] sm:$0xff]
      %v3650 = vld [vmem:[#allocation3 + $0x28] sm:$0xff]
      %v3651 = vld [vmem:[#allocation3 + $0x30] sm:$0xff]
      %v3652 = vld [vmem:[#allocation3 + $0x38] sm:$0xff]
      %v3653 = vld [vmem:[#allocation3 + $0x40] sm:$0xff]
      %v3654 = vld [vmem:[#allocation3 + $0x48] sm:$0xff]
      %v3655 = vld [vmem:[#allocation3 + $0x50] sm:$0xff]
      %v3656 = vld [vmem:[#allocation3 + $0x58] sm:$0xff]
      %v3657 = vld [vmem:[#allocation3 + $0x60] sm:$0xff]
      %v3658 = vld [vmem:[#allocation3 + $0x68] sm:$0xff]
      %v3659 = vld [vmem:[#allocation3 + $0x70] sm:$0xff]
      %v3660 = vld [vmem:[#allocation3 + $0x78] sm:$0xff]
      %v3661 = vld [vmem:[#allocation3 + $0x80] sm:$0xff]
      %v3662 = vld [vmem:[#allocation3 + $0x88] sm:$0xff]
      %v3663 = vld [vmem:[#allocation3 + $0x90] sm:$0xff]
      %v3664 = vld [vmem:[#allocation3 + $0x98] sm:$0xff]
      %v3665 = vld [vmem:[#allocation3 + $0xa0] sm:$0xff]
      %v3666 = vld [vmem:[#allocation3 + $0xa8] sm:$0xff]
      %v3667 = vld [vmem:[#allocation3 + $0xb0] sm:$0xff]
      %v3668 = vld [vmem:[#allocation3 + $0xb8] sm:$0xff]
      %v3669 = vld [vmem:[#allocation3 + $0xc0] sm:$0xff]
      %v3670 = vld [vmem:[#allocation3 + $0xc8] sm:$0xff]
      %v3671 = vld [vmem:[#allocation3 + $0xd0] sm:$0xff]
      %v3672 = vld [vmem:[#allocation3 + $0xd8] sm:$0xff]
      %v3673 = vld [vmem:[#allocation3 + $0xe0] sm:$0xff]
      %v3674 = vld [vmem:[#allocation3 + $0xe8] sm:$0xff]
      %v3675 = vld [vmem:[#allocation3 + $0xf0] sm:$0xff]
      %v3676 = vld [vmem:[#allocation3 + $0xf8] sm:$0xff]
      %v3677 = vld [vmem:[#allocation3 + $0x100] sm:$0xff]
      %v3678 = vld [vmem:[#allocation3 + $0x108] sm:$0xff]
      %v3679 = vld [vmem:[#allocation3 + $0x110] sm:$0xff]
      %v3680 = vld [vmem:[#allocation3 + $0x118] sm:$0xff]
      %s3681 = scalar_lea.vmem %s1, 16
      %v3682 = vld [vmem:[%s3681] sm:$0x3]
      %v3684 = vsel %vm328, %v3627, 0
      %v3687 = vsel %vm328, %v3628, 0
      %v3690 = vsel %vm328, %v3629, 0
      %v3693 = vsel %vm328, %v3630, 0
      %v3696 = vsel %vm328, %v3631, 0
      %v3699 = vsel %vm328, %v3632, 0
      %v3702 = vsel %vm328, %v3633, 0
      %v3705 = vsel %vm328, %v3634, 0
      %v3708 = vsel %vm328, %v3635, 0
      %v3711 = vsel %vm328, %v3636, 0
      %v3714 = vsel %vm328, %v3637, 0
      %v3717 = vsel %vm328, %v3638, 0
      %v3720 = vsel %vm328, %v3639, 0
      %v3723 = vsel %vm328, %v3640, 0
      %v3726 = vsel %vm328, %v3641, 0
      %v3729 = vsel %vm328, %v3642, 0
      %v3732 = vsel %vm328, %v3643, 0
      %v3735 = vsel %vm328, %v3644, 0
      %v3738 = vsel %vm552, %v3682, 0
      %3740 = vmatprep.subr.bf16.mxu0 0
      %3741 = vmatpush1.bf16.msra.mxu0 %v3738
      %3742 = vmatprep.subr.bf16.mxu0 0
      %3743 = vmatpush1.bf16.msra.mxu0 0
      %3744 = vmatprep.subr.bf16.mxu0 0
      %3745 = vmatpush1.bf16.msra.mxu0 0
      %3746 = vmatprep.subr.bf16.mxu0 0
      %3747 = vmatpush1.bf16.msra.mxu0 0
      %3748 = vmatprep.subr.bf16.mxu0 0
      %3749 = vmatpush1.bf16.msra.mxu0 0
      %3750 = vmatprep.subr.bf16.mxu0 0
      %3751 = vmatpush1.bf16.msra.mxu0 0
      %3752 = vmatprep.subr.bf16.mxu0 0
      %3753 = vmatpush1.bf16.msra.mxu0 0
      %3754 = vmatprep.subr.bf16.mxu0 0
      %3755 = vmatpush1.bf16.msra.mxu0 0
      %3756 = vmatprep.subr.bf16.mxu0 0
      %3757 = vmatpush1.bf16.msra.mxu0 0
      %3758 = vmatprep.subr.bf16.mxu0 0
      %3759 = vmatpush1.bf16.msra.mxu0 0
      %3760 = vmatprep.subr.bf16.mxu0 0
      %3761 = vmatpush1.bf16.msra.mxu0 0
      %3762 = vmatprep.subr.bf16.mxu0 0
      %3763 = vmatpush1.bf16.msra.mxu0 0
      %3764 = vmatprep.subr.bf16.mxu0 0
      %3765 = vmatpush1.bf16.msra.mxu0 0
      %3766 = vmatprep.subr.bf16.mxu0 0
      %3767 = vmatpush1.bf16.msra.mxu0 0
      %3768 = vmatprep.subr.bf16.mxu0 0
      %3769 = vmatpush1.bf16.msra.mxu0 0
      %3770 = vmatprep.subr.bf16.mxu0 0
      %3771 = vmatpush1.bf16.msra.mxu0 0
      %3772 = vmatprep.mubr.bf16.mxu0 0
      %3773 = vmatmul.mubr.bf16.gmra.mrb[0].mxu0 %v3684
      %v3774 = vpop.f32.mrb[0].mxu0
      %v3775 = vadd.f32 0.0, %v3774
      %v3776 = vpop.f32.mrb[0].mxu0
      %v3777 = vpop.f32.mrb[0].mxu0
      %v3778 = vadd.f32 0.0, %v3777
      %v3779 = vpop.f32.mrb[0].mxu0
      %3780 = vmatprep.mubr.bf16.mxu0 0
      %3781 = vmatmul.mubr.bf16.gmra.mrb[0].mxu0 %v3687
      %v3782 = vpop.f32.mrb[0].mxu0
      %v3783 = vadd.f32 0.0, %v3782
      %v3784 = vpop.f32.mrb[0].mxu0
      %v3785 = vpop.f32.mrb[0].mxu0
      %v3786 = vadd.f32 0.0, %v3785
      %v3787 = vpop.f32.mrb[0].mxu0
      %3788 = vmatprep.mubr.bf16.mxu0 0
      %3789 = vmatmul.mubr.bf16.gmra.mrb[0].mxu0 %v3690
      %v3790 = vpop.f32.mrb[0].mxu0
      %v3791 = vadd.f32 0.0, %v3790
      %v3792 = vpop.f32.mrb[0].mxu0
      %v3793 = vpop.f32.mrb[0].mxu0
      %v3794 = vadd.f32 0.0, %v3793
      %v3795 = vpop.f32.mrb[0].mxu0
      %3796 = vmatprep.mubr.bf16.mxu0 0
      %3797 = vmatmul.mubr.bf16.gmra.mrb[0].mxu0 %v3693
      %v3798 = vpop.f32.mrb[0].mxu0
      %v3799 = vadd.f32 0.0, %v3798
      %v3800 = vpop.f32.mrb[0].mxu0
      %v3801 = vpop.f32.mrb[0].mxu0
      %v3802 = vadd.f32 0.0, %v3801
      %v3803 = vpop.f32.mrb[0].mxu0
      %3804 = vmatprep.mubr.bf16.mxu0 0
      %3805 = vmatmul.mubr.bf16.gmra.mrb[0].mxu0 %v3696
      %v3806 = vpop.f32.mrb[0].mxu0
      %v3807 = vadd.f32 0.0, %v3806
      %v3808 = vpop.f32.mrb[0].mxu0
      %v3809 = vpop.f32.mrb[0].mxu0
      %v3810 = vadd.f32 0.0, %v3809
      %v3811 = vpop.f32.mrb[0].mxu0
      %3812 = vmatprep.mubr.bf16.mxu0 0
      %3813 = vmatmul.mubr.bf16.gmra.mrb[0].mxu0 %v3699
      %v3814 = vpop.f32.mrb[0].mxu0
      %v3815 = vadd.f32 0.0, %v3814
      %v3816 = vpop.f32.mrb[0].mxu0
      %v3817 = vpop.f32.mrb[0].mxu0
      %v3818 = vadd.f32 0.0, %v3817
      %v3819 = vpop.f32.mrb[0].mxu0
      %3820 = vmatprep.mubr.bf16.mxu0 0
      %3821 = vmatmul.mubr.bf16.gmra.mrb[0].mxu0 %v3702
      %v3822 = vpop.f32.mrb[0].mxu0
      %v3823 = vadd.f32 0.0, %v3822
      %v3824 = vpop.f32.mrb[0].mxu0
      %v3825 = vpop.f32.mrb[0].mxu0
      %v3826 = vadd.f32 0.0, %v3825
      %v3827 = vpop.f32.mrb[0].mxu0
      %3828 = vmatprep.mubr.bf16.mxu0 0
      %3829 = vmatmul.mubr.bf16.gmra.mrb[0].mxu0 %v3705
      %v3830 = vpop.f32.mrb[0].mxu0
      %v3831 = vadd.f32 0.0, %v3830
      %v3832 = vpop.f32.mrb[0].mxu0
      %v3833 = vpop.f32.mrb[0].mxu0
      %v3834 = vadd.f32 0.0, %v3833
      %v3835 = vpop.f32.mrb[0].mxu0
      %3836 = vmatprep.mubr.bf16.mxu0 0
      %3837 = vmatmul.mubr.bf16.gmra.mrb[0].mxu0 %v3708
      %v3838 = vpop.f32.mrb[0].mxu0
      %v3839 = vadd.f32 0.0, %v3838
      %v3840 = vpop.f32.mrb[0].mxu0
      %v3841 = vpop.f32.mrb[0].mxu0
      %v3842 = vadd.f32 0.0, %v3841
      %v3843 = vpop.f32.mrb[0].mxu0
      %3844 = vmatprep.mubr.bf16.mxu0 0
      %3845 = vmatmul.mubr.bf16.gmra.mrb[0].mxu0 %v3711
      %v3846 = vpop.f32.mrb[0].mxu0
      %v3847 = vadd.f32 0.0, %v3846
      %v3848 = vpop.f32.mrb[0].mxu0
      %v3849 = vpop.f32.mrb[0].mxu0
      %v3850 = vadd.f32 0.0, %v3849
      %v3851 = vpop.f32.mrb[0].mxu0
      %3852 = vmatprep.mubr.bf16.mxu0 0
      %3853 = vmatmul.mubr.bf16.gmra.mrb[0].mxu0 %v3714
      %v3854 = vpop.f32.mrb[0].mxu0
      %v3855 = vadd.f32 0.0, %v3854
      %v3856 = vpop.f32.mrb[0].mxu0
      %v3857 = vpop.f32.mrb[0].mxu0
      %v3858 = vadd.f32 0.0, %v3857
      %v3859 = vpop.f32.mrb[0].mxu0
      %3860 = vmatprep.mubr.bf16.mxu0 0
      %3861 = vmatmul.mubr.bf16.gmra.mrb[0].mxu0 %v3717
      %v3862 = vpop.f32.mrb[0].mxu0
      %v3863 = vadd.f32 0.0, %v3862
      %v3864 = vpop.f32.mrb[0].mxu0
      %v3865 = vpop.f32.mrb[0].mxu0
      %v3866 = vadd.f32 0.0, %v3865
      %v3867 = vpop.f32.mrb[0].mxu0
      %3868 = vmatprep.mubr.bf16.mxu0 0
      %3869 = vmatmul.mubr.bf16.gmra.mrb[0].mxu0 %v3720
      %v3870 = vpop.f32.mrb[0].mxu0
      %v3871 = vadd.f32 0.0, %v3870
      %v3872 = vpop.f32.mrb[0].mxu0
      %v3873 = vpop.f32.mrb[0].mxu0
      %v3874 = vadd.f32 0.0, %v3873
      %v3875 = vpop.f32.mrb[0].mxu0
      %3876 = vmatprep.mubr.bf16.mxu0 0
      %3877 = vmatmul.mubr.bf16.gmra.mrb[0].mxu0 %v3723
      %v3878 = vpop.f32.mrb[0].mxu0
      %v3879 = vadd.f32 0.0, %v3878
      %v3880 = vpop.f32.mrb[0].mxu0
      %v3881 = vpop.f32.mrb[0].mxu0
      %v3882 = vadd.f32 0.0, %v3881
      %v3883 = vpop.f32.mrb[0].mxu0
      %3884 = vmatprep.mubr.bf16.mxu0 0
      %3885 = vmatmul.mubr.bf16.gmra.mrb[0].mxu0 %v3726
      %v3886 = vpop.f32.mrb[0].mxu0
      %v3887 = vadd.f32 0.0, %v3886
      %v3888 = vpop.f32.mrb[0].mxu0
      %v3889 = vpop.f32.mrb[0].mxu0
      %v3890 = vadd.f32 0.0, %v3889
      %v3891 = vpop.f32.mrb[0].mxu0
      %3892 = vmatprep.mubr.bf16.mxu0 0
      %3893 = vmatmul.mubr.bf16.gmra.mrb[0].mxu0 %v3729
      %v3894 = vpop.f32.mrb[0].mxu0
      %v3895 = vadd.f32 0.0, %v3894
      %v3896 = vpop.f32.mrb[0].mxu0
      %v3897 = vpop.f32.mrb[0].mxu0
      %v3898 = vadd.f32 0.0, %v3897
      %v3899 = vpop.f32.mrb[0].mxu0
      %3900 = vmatprep.mubr.bf16.mxu0 0
      %3901 = vmatmul.mubr.bf16.gmra.mrb[0].mxu0 %v3732
      %v3902 = vpop.f32.mrb[0].mxu0
      %v3903 = vadd.f32 0.0, %v3902
      %v3904 = vpop.f32.mrb[0].mxu0
      %v3905 = vpop.f32.mrb[0].mxu0
      %v3906 = vadd.f32 0.0, %v3905
      %v3907 = vpop.f32.mrb[0].mxu0
      %3908 = vmatprep.mubr.bf16.mxu0 0
      %3909 = vmatmul.mubr.bf16.gmra.mrb[0].mxu0 %v3735
      %v3910 = vpop.f32.mrb[0].mxu0
      %v3911 = vadd.f32 0.0, %v3910
      %v3912 = vpop.f32.mrb[0].mxu0
      %v3913 = vpop.f32.mrb[0].mxu0
      %v3914 = vadd.f32 0.0, %v3913
      %v3915 = vpop.f32.mrb[0].mxu0
      %3916 = vdwg.mxu0
      %v3917 = vadd.f32 %v3645, %v3775
      %v3918 = vadd.f32 %v3646, %v3778
      %v3919 = vadd.f32 %v3647, %v3783
      %v3920 = vadd.f32 %v3648, %v3786
      %v3921 = vadd.f32 %v3649, %v3791
      %v3922 = vadd.f32 %v3650, %v3794
      %v3923 = vadd.f32 %v3651, %v3799
      %v3924 = vadd.f32 %v3652, %v3802
      %v3925 = vadd.f32 %v3653, %v3807
      %v3926 = vadd.f32 %v3654, %v3810
      %v3927 = vadd.f32 %v3655, %v3815
      %v3928 = vadd.f32 %v3656, %v3818
      %v3929 = vadd.f32 %v3657, %v3823
      %v3930 = vadd.f32 %v3658, %v3826
      %v3931 = vadd.f32 %v3659, %v3831
      %v3932 = vadd.f32 %v3660, %v3834
      %v3933 = vadd.f32 %v3661, %v3839
      %v3934 = vadd.f32 %v3662, %v3842
      %v3935 = vadd.f32 %v3663, %v3847
      %v3936 = vadd.f32 %v3664, %v3850
      %v3937 = vadd.f32 %v3665, %v3855
      %v3938 = vadd.f32 %v3666, %v3858
      %v3939 = vadd.f32 %v3667, %v3863
      %v3940 = vadd.f32 %v3668, %v3866
      %v3941 = vadd.f32 %v3669, %v3871
      %v3942 = vadd.f32 %v3670, %v3874
      %v3943 = vadd.f32 %v3671, %v3879
      %v3944 = vadd.f32 %v3672, %v3882
      %v3945 = vadd.f32 %v3673, %v3887
      %v3946 = vadd.f32 %v3674, %v3890
      %v3947 = vadd.f32 %v3675, %v3895
      %v3948 = vadd.f32 %v3676, %v3898
      %v3949 = vadd.f32 %v3677, %v3903
      %v3950 = vadd.f32 %v3678, %v3906
      %v3951 = vadd.f32 %v3679, %v3911
      %v3952 = vadd.f32 %v3680, %v3914
      %3953 = vst.msk [vmem:[#allocation3] sm:$0xff] %vm370, %v3917
      %3954 = vst.msk [vmem:[#allocation3 + $0x8] sm:$0xff] %vm370, %v3918
      %3955 = vst.msk [vmem:[#allocation3 + $0x10] sm:$0xff] %vm370, %v3919
      %3956 = vst.msk [vmem:[#allocation3 + $0x18] sm:$0xff] %vm370, %v3920
      %3957 = vst.msk [vmem:[#allocation3 + $0x20] sm:$0xff] %vm370, %v3921
      %3958 = vst.msk [vmem:[#allocation3 + $0x28] sm:$0xff] %vm370, %v3922
      %3959 = vst.msk [vmem:[#allocation3 + $0x30] sm:$0xff] %vm370, %v3923
      %3960 = vst.msk [vmem:[#allocation3 + $0x38] sm:$0xff] %vm370, %v3924
      %3961 = vst.msk [vmem:[#allocation3 + $0x40] sm:$0xff] %vm370, %v3925
      %3962 = vst.msk [vmem:[#allocation3 + $0x48] sm:$0xff] %vm370, %v3926
      %3963 = vst.msk [vmem:[#allocation3 + $0x50] sm:$0xff] %vm370, %v3927
      %3964 = vst.msk [vmem:[#allocation3 + $0x58] sm:$0xff] %vm370, %v3928
      %3965 = vst.msk [vmem:[#allocation3 + $0x60] sm:$0xff] %vm370, %v3929
      %3966 = vst.msk [vmem:[#allocation3 + $0x68] sm:$0xff] %vm370, %v3930
      %3967 = vst.msk [vmem:[#allocation3 + $0x70] sm:$0xff] %vm370, %v3931
      %3968 = vst.msk [vmem:[#allocation3 + $0x78] sm:$0xff] %vm370, %v3932
      %3969 = vst.msk [vmem:[#allocation3 + $0x80] sm:$0xff] %vm370, %v3933
      %3970 = vst.msk [vmem:[#allocation3 + $0x88] sm:$0xff] %vm370, %v3934
      %3971 = vst.msk [vmem:[#allocation3 + $0x90] sm:$0xff] %vm370, %v3935
      %3972 = vst.msk [vmem:[#allocation3 + $0x98] sm:$0xff] %vm370, %v3936
      %3973 = vst.msk [vmem:[#allocation3 + $0xa0] sm:$0xff] %vm370, %v3937
      %3974 = vst.msk [vmem:[#allocation3 + $0xa8] sm:$0xff] %vm370, %v3938
      %3975 = vst.msk [vmem:[#allocation3 + $0xb0] sm:$0xff] %vm370, %v3939
      %3976 = vst.msk [vmem:[#allocation3 + $0xb8] sm:$0xff] %vm370, %v3940
      %3977 = vst.msk [vmem:[#allocation3 + $0xc0] sm:$0xff] %vm370, %v3941
      %3978 = vst.msk [vmem:[#allocation3 + $0xc8] sm:$0xff] %vm370, %v3942
      %3979 = vst.msk [vmem:[#allocation3 + $0xd0] sm:$0xff] %vm370, %v3943
      %3980 = vst.msk [vmem:[#allocation3 + $0xd8] sm:$0xff] %vm370, %v3944
      %3981 = vst.msk [vmem:[#allocation3 + $0xe0] sm:$0xff] %vm370, %v3945
      %3982 = vst.msk [vmem:[#allocation3 + $0xe8] sm:$0xff] %vm370, %v3946
      %3983 = vst.msk [vmem:[#allocation3 + $0xf0] sm:$0xff] %vm370, %v3947
      %3984 = vst.msk [vmem:[#allocation3 + $0xf8] sm:$0xff] %vm370, %v3948
      %3985 = vst.msk [vmem:[#allocation3 + $0x100] sm:$0xff] %vm370, %v3949
      %3986 = vst.msk [vmem:[#allocation3 + $0x108] sm:$0xff] %vm370, %v3950
      %3987 = vst.msk [vmem:[#allocation3 + $0x110] sm:$0xff] %vm370, %v3951
      %3988 = vst.msk [vmem:[#allocation3 + $0x118] sm:$0xff] %vm370, %v3952
      %v3989 = vld [vmem:[#allocation3] sm:$0xff]
      %v3990 = vld [vmem:[#allocation3 + $0x8] sm:$0xff]
      %v3991 = vld [vmem:[#allocation3 + $0x10] sm:$0xff]
      %v3992 = vld [vmem:[#allocation3 + $0x18] sm:$0xff]
      %v3993 = vld [vmem:[#allocation3 + $0x20] sm:$0xff]
      %v3994 = vld [vmem:[#allocation3 + $0x28] sm:$0xff]
      %v3995 = vld [vmem:[#allocation3 + $0x30] sm:$0xff]
      %v3996 = vld [vmem:[#allocation3 + $0x38] sm:$0xff]
      %v3997 = vld [vmem:[#allocation3 + $0x40] sm:$0xff]
      %v3998 = vld [vmem:[#allocation3 + $0x48] sm:$0xff]
      %v3999 = vld [vmem:[#allocation3 + $0x50] sm:$0xff]
      %v4000 = vld [vmem:[#allocation3 + $0x58] sm:$0xff]
      %v4001 = vld [vmem:[#allocation3 + $0x60] sm:$0xff]
      %v4002 = vld [vmem:[#allocation3 + $0x68] sm:$0xff]
      %v4003 = vld [vmem:[#allocation3 + $0x70] sm:$0xff]
      %v4004 = vld [vmem:[#allocation3 + $0x78] sm:$0xff]
      %v4005 = vld [vmem:[#allocation3 + $0x80] sm:$0xff]
      %v4006 = vld [vmem:[#allocation3 + $0x88] sm:$0xff]
      %v4007 = vld [vmem:[#allocation3 + $0x90] sm:$0xff]
      %v4008 = vld [vmem:[#allocation3 + $0x98] sm:$0xff]
      %v4009 = vld [vmem:[#allocation3 + $0xa0] sm:$0xff]
      %v4010 = vld [vmem:[#allocation3 + $0xa8] sm:$0xff]
      %v4011 = vld [vmem:[#allocation3 + $0xb0] sm:$0xff]
      %v4012 = vld [vmem:[#allocation3 + $0xb8] sm:$0xff]
      %v4013 = vld [vmem:[#allocation3 + $0xc0] sm:$0xff]
      %v4014 = vld [vmem:[#allocation3 + $0xc8] sm:$0xff]
      %v4015 = vld [vmem:[#allocation3 + $0xd0] sm:$0xff]
      %v4016 = vld [vmem:[#allocation3 + $0xd8] sm:$0xff]
      %v4017 = vld [vmem:[#allocation3 + $0xe0] sm:$0xff]
      %v4018 = vld [vmem:[#allocation3 + $0xe8] sm:$0xff]
      %v4019 = vld [vmem:[#allocation3 + $0xf0] sm:$0xff]
      %v4020 = vld [vmem:[#allocation3 + $0xf8] sm:$0xff]
      %v4021 = vld [vmem:[#allocation3 + $0x100] sm:$0xff]
      %v4022 = vld [vmem:[#allocation3 + $0x108] sm:$0xff]
      %v4023 = vld [vmem:[#allocation3 + $0x110] sm:$0xff]
      %v4024 = vld [vmem:[#allocation3 + $0x118] sm:$0xff]
      %v4025 = vld [vmem:[%s2] sm:$0xff]
      %v4026 = vld [vmem:[%s2 + $0x8] sm:$0xff]
      %v4027 = vld [vmem:[%s2 + $0x10] sm:$0xff]
      %v4028 = vld [vmem:[%s2 + $0x18] sm:$0xff]
      %v4029 = vld [vmem:[%s2 + $0x20] sm:$0xff]
      %v4030 = vld [vmem:[%s2 + $0x28] sm:$0xff]
      %v4031 = vld [vmem:[%s2 + $0x30] sm:$0xff]
      %v4032 = vld [vmem:[%s2 + $0x38] sm:$0xff]
      %v4033 = vld [vmem:[%s2 + $0x40] sm:$0xff]
      %v4034 = vld [vmem:[%s2 + $0x48] sm:$0xff]
      %v4035 = vld [vmem:[%s2 + $0x50] sm:$0xff]
      %v4036 = vld [vmem:[%s2 + $0x58] sm:$0xff]
      %v4037 = vld [vmem:[%s2 + $0x60] sm:$0xff]
      %v4038 = vld [vmem:[%s2 + $0x68] sm:$0xff]
      %v4039 = vld [vmem:[%s2 + $0x70] sm:$0xff]
      %v4040 = vld [vmem:[%s2 + $0x78] sm:$0xff]
      %v4041 = vld [vmem:[%s2 + $0x80] sm:$0xff]
      %v4042 = vld [vmem:[%s2 + $0x88] sm:$0xff]
      %v4043 = vld [vmem:[%s2 + $0x90] sm:$0xff]
      %v4044 = vld [vmem:[%s2 + $0x98] sm:$0xff]
      %v4045 = vld [vmem:[%s2 + $0xa0] sm:$0xff]
      %v4046 = vld [vmem:[%s2 + $0xa8] sm:$0xff]
      %v4047 = vld [vmem:[%s2 + $0xb0] sm:$0xff]
      %v4048 = vld [vmem:[%s2 + $0xb8] sm:$0xff]
      %v4049 = vld [vmem:[%s2 + $0xc0] sm:$0xff]
      %v4050 = vld [vmem:[%s2 + $0xc8] sm:$0xff]
      %v4051 = vld [vmem:[%s2 + $0xd0] sm:$0xff]
      %v4052 = vld [vmem:[%s2 + $0xd8] sm:$0xff]
      %v4053 = vld [vmem:[%s2 + $0xe0] sm:$0xff]
      %v4054 = vld [vmem:[%s2 + $0xe8] sm:$0xff]
      %v4055 = vld [vmem:[%s2 + $0xf0] sm:$0xff]
      %v4056 = vld [vmem:[%s2 + $0xf8] sm:$0xff]
      %v4057 = vld [vmem:[%s2 + $0x100] sm:$0xff]
      %v4058 = vld [vmem:[%s2 + $0x108] sm:$0xff]
      %v4059 = vld [vmem:[%s2 + $0x110] sm:$0xff]
      %v4060 = vld [vmem:[%s2 + $0x118] sm:$0xff]
      %4062 = vset.pattern.permute.xlu0 0
      %4063 = vperm.xlu0 %4062, %v4025
      %v4064 = vpop.permute.xlu0 %4063
      %4067 = vset.pattern.permute.xlu0 0
      %4068 = vperm.xlu0 %4067, %v4026
      %v4069 = vpop.permute.xlu0 %4068
      %4072 = vset.pattern.permute.xlu0 0
      %4073 = vperm.xlu0 %4072, %v4027
      %v4074 = vpop.permute.xlu0 %4073
      %4077 = vset.pattern.permute.xlu0 0
      %4078 = vperm.xlu0 %4077, %v4028
      %v4079 = vpop.permute.xlu0 %4078
      %4082 = vset.pattern.permute.xlu0 0
      %4083 = vperm.xlu0 %4082, %v4029
      %v4084 = vpop.permute.xlu0 %4083
      %4087 = vset.pattern.permute.xlu0 0
      %4088 = vperm.xlu0 %4087, %v4030
      %v4089 = vpop.permute.xlu0 %4088
      %4092 = vset.pattern.permute.xlu0 0
      %4093 = vperm.xlu0 %4092, %v4031
      %v4094 = vpop.permute.xlu0 %4093
      %4097 = vset.pattern.permute.xlu0 0
      %4098 = vperm.xlu0 %4097, %v4032
      %v4099 = vpop.permute.xlu0 %4098
      %4102 = vset.pattern.permute.xlu0 0
      %4103 = vperm.xlu0 %4102, %v4033
      %v4104 = vpop.permute.xlu0 %4103
      %4107 = vset.pattern.permute.xlu0 0
      %4108 = vperm.xlu0 %4107, %v4034
      %v4109 = vpop.permute.xlu0 %4108
      %4112 = vset.pattern.permute.xlu0 0
      %4113 = vperm.xlu0 %4112, %v4035
      %v4114 = vpop.permute.xlu0 %4113
      %4117 = vset.pattern.permute.xlu0 0
      %4118 = vperm.xlu0 %4117, %v4036
      %v4119 = vpop.permute.xlu0 %4118
      %4122 = vset.pattern.permute.xlu0 0
      %4123 = vperm.xlu0 %4122, %v4037
      %v4124 = vpop.permute.xlu0 %4123
      %4127 = vset.pattern.permute.xlu0 0
      %4128 = vperm.xlu0 %4127, %v4038
      %v4129 = vpop.permute.xlu0 %4128
      %4132 = vset.pattern.permute.xlu0 0
      %4133 = vperm.xlu0 %4132, %v4039
      %v4134 = vpop.permute.xlu0 %4133
      %4137 = vset.pattern.permute.xlu0 0
      %4138 = vperm.xlu0 %4137, %v4040
      %v4139 = vpop.permute.xlu0 %4138
      %4142 = vset.pattern.permute.xlu0 0
      %4143 = vperm.xlu0 %4142, %v4041
      %v4144 = vpop.permute.xlu0 %4143
      %4147 = vset.pattern.permute.xlu0 0
      %4148 = vperm.xlu0 %4147, %v4042
      %v4149 = vpop.permute.xlu0 %4148
      %4152 = vset.pattern.permute.xlu0 0
      %4153 = vperm.xlu0 %4152, %v4043
      %v4154 = vpop.permute.xlu0 %4153
      %4157 = vset.pattern.permute.xlu0 0
      %4158 = vperm.xlu0 %4157, %v4044
      %v4159 = vpop.permute.xlu0 %4158
      %4162 = vset.pattern.permute.xlu0 0
      %4163 = vperm.xlu0 %4162, %v4045
      %v4164 = vpop.permute.xlu0 %4163
      %4167 = vset.pattern.permute.xlu0 0
      %4168 = vperm.xlu0 %4167, %v4046
      %v4169 = vpop.permute.xlu0 %4168
      %4172 = vset.pattern.permute.xlu0 0
      %4173 = vperm.xlu0 %4172, %v4047
      %v4174 = vpop.permute.xlu0 %4173
      %4177 = vset.pattern.permute.xlu0 0
      %4178 = vperm.xlu0 %4177, %v4048
      %v4179 = vpop.permute.xlu0 %4178
      %4182 = vset.pattern.permute.xlu0 0
      %4183 = vperm.xlu0 %4182, %v4049
      %v4184 = vpop.permute.xlu0 %4183
      %4187 = vset.pattern.permute.xlu0 0
      %4188 = vperm.xlu0 %4187, %v4050
      %v4189 = vpop.permute.xlu0 %4188
      %4192 = vset.pattern.permute.xlu0 0
      %4193 = vperm.xlu0 %4192, %v4051
      %v4194 = vpop.permute.xlu0 %4193
      %4197 = vset.pattern.permute.xlu0 0
      %4198 = vperm.xlu0 %4197, %v4052
      %v4199 = vpop.permute.xlu0 %4198
      %4202 = vset.pattern.permute.xlu0 0
      %4203 = vperm.xlu0 %4202, %v4053
      %v4204 = vpop.permute.xlu0 %4203
      %4207 = vset.pattern.permute.xlu0 0
      %4208 = vperm.xlu0 %4207, %v4054
      %v4209 = vpop.permute.xlu0 %4208
      %4212 = vset.pattern.permute.xlu0 0
      %4213 = vperm.xlu0 %4212, %v4055
      %v4214 = vpop.permute.xlu0 %4213
      %4217 = vset.pattern.permute.xlu0 0
      %4218 = vperm.xlu0 %4217, %v4056
      %v4219 = vpop.permute.xlu0 %4218
      %4222 = vset.pattern.permute.xlu0 0
      %4223 = vperm.xlu0 %4222, %v4057
      %v4224 = vpop.permute.xlu0 %4223
      %4227 = vset.pattern.permute.xlu0 0
      %4228 = vperm.xlu0 %4227, %v4058
      %v4229 = vpop.permute.xlu0 %4228
      %4232 = vset.pattern.permute.xlu0 0
      %4233 = vperm.xlu0 %4232, %v4059
      %v4234 = vpop.permute.xlu0 %4233
      %4237 = vset.pattern.permute.xlu0 0
      %4238 = vperm.xlu0 %4237, %v4060
      %v4239 = vpop.permute.xlu0 %4238
      %v4241 = vmul.f32 %v3989, %v4064
      %v4242 = vmul.f32 %v3990, %v4069
      %v4243 = vmul.f32 %v3991, %v4074
      %v4244 = vmul.f32 %v3992, %v4079
      %v4245 = vmul.f32 %v3993, %v4084
      %v4246 = vmul.f32 %v3994, %v4089
      %v4247 = vmul.f32 %v3995, %v4094
      %v4248 = vmul.f32 %v3996, %v4099
      %v4249 = vmul.f32 %v3997, %v4104
      %v4250 = vmul.f32 %v3998, %v4109
      %v4251 = vmul.f32 %v3999, %v4114
      %v4252 = vmul.f32 %v4000, %v4119
      %v4253 = vmul.f32 %v4001, %v4124
      %v4254 = vmul.f32 %v4002, %v4129
      %v4255 = vmul.f32 %v4003, %v4134
      %v4256 = vmul.f32 %v4004, %v4139
      %v4257 = vmul.f32 %v4005, %v4144
      %v4258 = vmul.f32 %v4006, %v4149
      %v4259 = vmul.f32 %v4007, %v4154
      %v4260 = vmul.f32 %v4008, %v4159
      %v4261 = vmul.f32 %v4009, %v4164
      %v4262 = vmul.f32 %v4010, %v4169
      %v4263 = vmul.f32 %v4011, %v4174
      %v4264 = vmul.f32 %v4012, %v4179
      %v4265 = vmul.f32 %v4013, %v4184
      %v4266 = vmul.f32 %v4014, %v4189
      %v4267 = vmul.f32 %v4015, %v4194
      %v4268 = vmul.f32 %v4016, %v4199
      %v4269 = vmul.f32 %v4017, %v4204
      %v4270 = vmul.f32 %v4018, %v4209
      %v4271 = vmul.f32 %v4019, %v4214
      %v4272 = vmul.f32 %v4020, %v4219
      %v4273 = vmul.f32 %v4021, %v4224
      %v4274 = vmul.f32 %v4022, %v4229
      %v4275 = vmul.f32 %v4023, %v4234
      %v4276 = vmul.f32 %v4024, %v4239
      %v4277 = vpack.c.bf16 %v4242, %v4241
      %v4278 = vpack.c.bf16 %v4244, %v4243
      %v4279 = vpack.c.bf16 %v4246, %v4245
      %v4280 = vpack.c.bf16 %v4248, %v4247
      %v4281 = vpack.c.bf16 %v4250, %v4249
      %v4282 = vpack.c.bf16 %v4252, %v4251
      %v4283 = vpack.c.bf16 %v4254, %v4253
      %v4284 = vpack.c.bf16 %v4256, %v4255
      %v4285 = vpack.c.bf16 %v4258, %v4257
      %v4286 = vpack.c.bf16 %v4260, %v4259
      %v4287 = vpack.c.bf16 %v4262, %v4261
      %v4288 = vpack.c.bf16 %v4264, %v4263
      %v4289 = vpack.c.bf16 %v4266, %v4265
      %v4290 = vpack.c.bf16 %v4268, %v4267
      %v4291 = vpack.c.bf16 %v4270, %v4269
      %v4292 = vpack.c.bf16 %v4272, %v4271
      %v4293 = vpack.c.bf16 %v4274, %v4273
      %v4294 = vpack.c.bf16 %v4276, %v4275
      %v4313 = vunpack.c.l.b16 %v4277
      %v4314 = vunpack.c.h.b16 %v4277
      %v4315 = vunpack.c.l.b16 %v4278
      %v4316 = vunpack.c.h.b16 %v4278
      %v4317 = vunpack.c.l.b16 %v4279
      %v4318 = vunpack.c.h.b16 %v4279
      %v4319 = vunpack.c.l.b16 %v4280
      %v4320 = vunpack.c.h.b16 %v4280
      %v4321 = vunpack.c.l.b16 %v4281
      %v4322 = vunpack.c.h.b16 %v4281
      %v4323 = vunpack.c.l.b16 %v4282
      %v4324 = vunpack.c.h.b16 %v4282
      %v4325 = vunpack.c.l.b16 %v4283
      %v4326 = vunpack.c.h.b16 %v4283
      %v4327 = vunpack.c.l.b16 %v4284
      %v4328 = vunpack.c.h.b16 %v4284
      %v4329 = vunpack.c.l.b16 %v4285
      %v4330 = vunpack.c.h.b16 %v4285
      %v4331 = vunpack.c.l.b16 %v4286
      %v4332 = vunpack.c.h.b16 %v4286
      %v4333 = vunpack.c.l.b16 %v4287
      %v4334 = vunpack.c.h.b16 %v4287
      %v4335 = vunpack.c.l.b16 %v4288
      %v4336 = vunpack.c.h.b16 %v4288
      %v4337 = vunpack.c.l.b16 %v4289
      %v4338 = vunpack.c.h.b16 %v4289
      %v4339 = vunpack.c.l.b16 %v4290
      %v4340 = vunpack.c.h.b16 %v4290
      %v4341 = vunpack.c.l.b16 %v4291
      %v4342 = vunpack.c.h.b16 %v4291
      %v4343 = vunpack.c.l.b16 %v4292
      %v4344 = vunpack.c.h.b16 %v4292
      %v4345 = vunpack.c.l.b16 %v4293
      %v4346 = vunpack.c.h.b16 %v4293
      %v4347 = vunpack.c.l.b16 %v4294
      %v4348 = vunpack.c.h.b16 %v4294
      %v4349 = vpack.c.b16 %v4313, %v4313
      %v4350 = vpack.c.b16 %v4314, %v4314
      %v4351 = vpack.c.b16 %v4315, %v4315
      %v4352 = vpack.c.b16 %v4316, %v4316
      %v4353 = vpack.c.b16 %v4317, %v4317
      %v4354 = vpack.c.b16 %v4318, %v4318
      %v4355 = vpack.c.b16 %v4319, %v4319
      %v4356 = vpack.c.b16 %v4320, %v4320
      %v4357 = vpack.c.b16 %v4321, %v4321
      %v4358 = vpack.c.b16 %v4322, %v4322
      %v4359 = vpack.c.b16 %v4323, %v4323
      %v4360 = vpack.c.b16 %v4324, %v4324
      %v4361 = vpack.c.b16 %v4325, %v4325
      %v4362 = vpack.c.b16 %v4326, %v4326
      %v4363 = vpack.c.b16 %v4327, %v4327
      %v4364 = vpack.c.b16 %v4328, %v4328
      %v4365 = vpack.c.b16 %v4329, %v4329
      %v4366 = vpack.c.b16 %v4330, %v4330
      %v4367 = vpack.c.b16 %v4331, %v4331
      %v4368 = vpack.c.b16 %v4332, %v4332
      %v4369 = vpack.c.b16 %v4333, %v4333
      %v4370 = vpack.c.b16 %v4334, %v4334
      %v4371 = vpack.c.b16 %v4335, %v4335
      %v4372 = vpack.c.b16 %v4336, %v4336
      %v4373 = vpack.c.b16 %v4337, %v4337
      %v4374 = vpack.c.b16 %v4338, %v4338
      %v4375 = vpack.c.b16 %v4339, %v4339
      %v4376 = vpack.c.b16 %v4340, %v4340
      %v4377 = vpack.c.b16 %v4341, %v4341
      %v4378 = vpack.c.b16 %v4342, %v4342
      %v4379 = vpack.c.b16 %v4343, %v4343
      %v4380 = vpack.c.b16 %v4344, %v4344
      %v4381 = vpack.c.b16 %v4345, %v4345
      %v4382 = vpack.c.b16 %v4346, %v4346
      %v4383 = vpack.c.b16 %v4347, %v4347
      %v4384 = vpack.c.b16 %v4348, %v4348
      %vm4421 = vcmask 60416
      %4422 = vst.msk [vmem:[%s237] sm:$0xf] %vm4421, %v4349
      %4423 = vst.msk [vmem:[%s237 + $0x4] sm:$0xf] %vm4421, %v4350
      %4424 = vst.msk [vmem:[%s237 + $0x8] sm:$0xf] %vm4421, %v4351
      %4425 = vst.msk [vmem:[%s237 + $0xc] sm:$0xf] %vm4421, %v4352
      %4426 = vst.msk [vmem:[%s237 + $0x10] sm:$0xf] %vm4421, %v4353
      %4427 = vst.msk [vmem:[%s237 + $0x14] sm:$0xf] %vm4421, %v4354
      %4428 = vst.msk [vmem:[%s237 + $0x18] sm:$0xf] %vm4421, %v4355
      %4429 = vst.msk [vmem:[%s237 + $0x1c] sm:$0xf] %vm4421, %v4356
      %4430 = vst.msk [vmem:[%s237 + $0x20] sm:$0xf] %vm4421, %v4357
      %4431 = vst.msk [vmem:[%s237 + $0x24] sm:$0xf] %vm4421, %v4358
      %4432 = vst.msk [vmem:[%s237 + $0x28] sm:$0xf] %vm4421, %v4359
      %4433 = vst.msk [vmem:[%s237 + $0x2c] sm:$0xf] %vm4421, %v4360
      %4434 = vst.msk [vmem:[%s237 + $0x30] sm:$0xf] %vm4421, %v4361
      %4435 = vst.msk [vmem:[%s237 + $0x34] sm:$0xf] %vm4421, %v4362
      %4436 = vst.msk [vmem:[%s237 + $0x38] sm:$0xf] %vm4421, %v4363
      %4437 = vst.msk [vmem:[%s237 + $0x3c] sm:$0xf] %vm4421, %v4364
      %4438 = vst.msk [vmem:[%s237 + $0x40] sm:$0xf] %vm4421, %v4365
      %4439 = vst.msk [vmem:[%s237 + $0x44] sm:$0xf] %vm4421, %v4366
      %4440 = vst.msk [vmem:[%s237 + $0x48] sm:$0xf] %vm4421, %v4367
      %4441 = vst.msk [vmem:[%s237 + $0x4c] sm:$0xf] %vm4421, %v4368
      %4442 = vst.msk [vmem:[%s237 + $0x50] sm:$0xf] %vm4421, %v4369
      %4443 = vst.msk [vmem:[%s237 + $0x54] sm:$0xf] %vm4421, %v4370
      %4444 = vst.msk [vmem:[%s237 + $0x58] sm:$0xf] %vm4421, %v4371
      %4445 = vst.msk [vmem:[%s237 + $0x5c] sm:$0xf] %vm4421, %v4372
      %4446 = vst.msk [vmem:[%s237 + $0x60] sm:$0xf] %vm4421, %v4373
      %4447 = vst.msk [vmem:[%s237 + $0x64] sm:$0xf] %vm4421, %v4374
      %4448 = vst.msk [vmem:[%s237 + $0x68] sm:$0xf] %vm4421, %v4375
      %4449 = vst.msk [vmem:[%s237 + $0x6c] sm:$0xf] %vm4421, %v4376
      %4450 = vst.msk [vmem:[%s237 + $0x70] sm:$0xf] %vm4421, %v4377
      %4451 = vst.msk [vmem:[%s237 + $0x74] sm:$0xf] %vm4421, %v4378
      %4452 = vst.msk [vmem:[%s237 + $0x78] sm:$0xf] %vm4421, %v4379
      %4453 = vst.msk [vmem:[%s237 + $0x7c] sm:$0xf] %vm4421, %v4380
      %4454 = vst.msk [vmem:[%s237 + $0x80] sm:$0xf] %vm4421, %v4381
      %4455 = vst.msk [vmem:[%s237 + $0x84] sm:$0xf] %vm4421, %v4382
      %4456 = vst.msk [vmem:[%s237 + $0x88] sm:$0xf] %vm4421, %v4383
      %4457 = vst.msk [vmem:[%s237 + $0x8c] sm:$0xf] %vm4421, %v4384
      %v4458 = vsel %vm370, %v4241, 0.0
      %v4459 = vsel %vm370, %v4242, 0.0
      %v4460 = vadd.f32 %v4458, %v4459
      %v4461 = vsel %vm370, %v4243, 0.0
      %v4462 = vadd.f32 %v4460, %v4461
      %v4463 = vsel %vm370, %v4244, 0.0
      %v4464 = vadd.f32 %v4462, %v4463
      %v4465 = vsel %vm370, %v4245, 0.0
      %v4466 = vadd.f32 %v4464, %v4465
      %v4467 = vsel %vm370, %v4246, 0.0
      %v4468 = vadd.f32 %v4466, %v4467
      %v4469 = vsel %vm370, %v4247, 0.0
      %v4470 = vadd.f32 %v4468, %v4469
      %v4471 = vsel %vm370, %v4248, 0.0
      %v4472 = vadd.f32 %v4470, %v4471
      %v4473 = vsel %vm370, %v4249, 0.0
      %v4474 = vadd.f32 %v4472, %v4473
      %v4475 = vsel %vm370, %v4250, 0.0
      %v4476 = vadd.f32 %v4474, %v4475
      %v4477 = vsel %vm370, %v4251, 0.0
      %v4478 = vadd.f32 %v4476, %v4477
      %v4479 = vsel %vm370, %v4252, 0.0
      %v4480 = vadd.f32 %v4478, %v4479
      %v4481 = vsel %vm370, %v4253, 0.0
      %v4482 = vadd.f32 %v4480, %v4481
      %v4483 = vsel %vm370, %v4254, 0.0
      %v4484 = vadd.f32 %v4482, %v4483
      %v4485 = vsel %vm370, %v4255, 0.0
      %v4486 = vadd.f32 %v4484, %v4485
      %v4487 = vsel %vm370, %v4256, 0.0
      %v4488 = vadd.f32 %v4486, %v4487
      %v4489 = vsel %vm370, %v4257, 0.0
      %v4490 = vadd.f32 %v4488, %v4489
      %v4491 = vsel %vm370, %v4258, 0.0
      %v4492 = vadd.f32 %v4490, %v4491
      %v4493 = vsel %vm370, %v4259, 0.0
      %v4494 = vadd.f32 %v4492, %v4493
      %v4495 = vsel %vm370, %v4260, 0.0
      %v4496 = vadd.f32 %v4494, %v4495
      %v4497 = vsel %vm370, %v4261, 0.0
      %v4498 = vadd.f32 %v4496, %v4497
      %v4499 = vsel %vm370, %v4262, 0.0
      %v4500 = vadd.f32 %v4498, %v4499
      %v4501 = vsel %vm370, %v4263, 0.0
      %v4502 = vadd.f32 %v4500, %v4501
      %v4503 = vsel %vm370, %v4264, 0.0
      %v4504 = vadd.f32 %v4502, %v4503
      %v4505 = vsel %vm370, %v4265, 0.0
      %v4506 = vadd.f32 %v4504, %v4505
      %v4507 = vsel %vm370, %v4266, 0.0
      %v4508 = vadd.f32 %v4506, %v4507
      %v4509 = vsel %vm370, %v4267, 0.0
      %v4510 = vadd.f32 %v4508, %v4509
      %v4511 = vsel %vm370, %v4268, 0.0
      %v4512 = vadd.f32 %v4510, %v4511
      %v4513 = vsel %vm370, %v4269, 0.0
      %v4514 = vadd.f32 %v4512, %v4513
      %v4515 = vsel %vm370, %v4270, 0.0
      %v4516 = vadd.f32 %v4514, %v4515
      %v4517 = vsel %vm370, %v4271, 0.0
      %v4518 = vadd.f32 %v4516, %v4517
      %v4519 = vsel %vm370, %v4272, 0.0
      %v4520 = vadd.f32 %v4518, %v4519
      %v4521 = vsel %vm370, %v4273, 0.0
      %v4522 = vadd.f32 %v4520, %v4521
      %v4523 = vsel %vm370, %v4274, 0.0
      %v4524 = vadd.f32 %v4522, %v4523
      %v4525 = vsel %vm370, %v4275, 0.0
      %v4526 = vadd.f32 %v4524, %v4525
      %v4527 = vsel %vm370, %v4276, 0.0
      %v4528 = vadd.f32 %v4526, %v4527
      %v4529 = vrot.slane %v4528, 4
      %v4530 = vadd.f32 %v4528, %v4529
      %v4531 = vrot.slane %v4530, 2
      %v4532 = vadd.f32 %v4530, %v4531
      %v4533 = vrot.slane %v4532, 1
      %v4534 = vadd.f32 %v4532, %v4533
      %vm4535 = vcmask 57344
      %4536 = vst.msk [vmem:[%s241] sm:$0x1] %vm4535, %v4534
      %v4537 = vmul.f32 %v4241, %v4241
      %v4538 = vmul.f32 %v4242, %v4242
      %v4539 = vmul.f32 %v4243, %v4243
      %v4540 = vmul.f32 %v4244, %v4244
      %v4541 = vmul.f32 %v4245, %v4245
      %v4542 = vmul.f32 %v4246, %v4246
      %v4543 = vmul.f32 %v4247, %v4247
      %v4544 = vmul.f32 %v4248, %v4248
      %v4545 = vmul.f32 %v4249, %v4249
      %v4546 = vmul.f32 %v4250, %v4250
      %v4547 = vmul.f32 %v4251, %v4251
      %v4548 = vmul.f32 %v4252, %v4252
      %v4549 = vmul.f32 %v4253, %v4253
      %v4550 = vmul.f32 %v4254, %v4254
      %v4551 = vmul.f32 %v4255, %v4255
      %v4552 = vmul.f32 %v4256, %v4256
      %v4553 = vmul.f32 %v4257, %v4257
      %v4554 = vmul.f32 %v4258, %v4258
      %v4555 = vmul.f32 %v4259, %v4259
      %v4556 = vmul.f32 %v4260, %v4260
      %v4557 = vmul.f32 %v4261, %v4261
      %v4558 = vmul.f32 %v4262, %v4262
      %v4559 = vmul.f32 %v4263, %v4263
      %v4560 = vmul.f32 %v4264, %v4264
      %v4561 = vmul.f32 %v4265, %v4265
      %v4562 = vmul.f32 %v4266, %v4266
      %v4563 = vmul.f32 %v4267, %v4267
      %v4564 = vmul.f32 %v4268, %v4268
      %v4565 = vmul.f32 %v4269, %v4269
      %v4566 = vmul.f32 %v4270, %v4270
      %v4567 = vmul.f32 %v4271, %v4271
      %v4568 = vmul.f32 %v4272, %v4272
      %v4569 = vmul.f32 %v4273, %v4273
      %v4570 = vmul.f32 %v4274, %v4274
      %v4571 = vmul.f32 %v4275, %v4275
      %v4572 = vmul.f32 %v4276, %v4276
      %v4573 = vsel %vm370, %v4537, 0.0
      %v4574 = vsel %vm370, %v4538, 0.0
      %v4575 = vadd.f32 %v4573, %v4574
      %v4576 = vsel %vm370, %v4539, 0.0
      %v4577 = vadd.f32 %v4575, %v4576
      %v4578 = vsel %vm370, %v4540, 0.0
      %v4579 = vadd.f32 %v4577, %v4578
      %v4580 = vsel %vm370, %v4541, 0.0
      %v4581 = vadd.f32 %v4579, %v4580
      %v4582 = vsel %vm370, %v4542, 0.0
      %v4583 = vadd.f32 %v4581, %v4582
      %v4584 = vsel %vm370, %v4543, 0.0
      %v4585 = vadd.f32 %v4583, %v4584
      %v4586 = vsel %vm370, %v4544, 0.0
      %v4587 = vadd.f32 %v4585, %v4586
      %v4588 = vsel %vm370, %v4545, 0.0
      %v4589 = vadd.f32 %v4587, %v4588
      %v4590 = vsel %vm370, %v4546, 0.0
      %v4591 = vadd.f32 %v4589, %v4590
      %v4592 = vsel %vm370, %v4547, 0.0
      %v4593 = vadd.f32 %v4591, %v4592
      %v4594 = vsel %vm370, %v4548, 0.0
      %v4595 = vadd.f32 %v4593, %v4594
      %v4596 = vsel %vm370, %v4549, 0.0
      %v4597 = vadd.f32 %v4595, %v4596
      %v4598 = vsel %vm370, %v4550, 0.0
      %v4599 = vadd.f32 %v4597, %v4598
      %v4600 = vsel %vm370, %v4551, 0.0
      %v4601 = vadd.f32 %v4599, %v4600
      %v4602 = vsel %vm370, %v4552, 0.0
      %v4603 = vadd.f32 %v4601, %v4602
      %v4604 = vsel %vm370, %v4553, 0.0
      %v4605 = vadd.f32 %v4603, %v4604
      %v4606 = vsel %vm370, %v4554, 0.0
      %v4607 = vadd.f32 %v4605, %v4606
      %v4608 = vsel %vm370, %v4555, 0.0
      %v4609 = vadd.f32 %v4607, %v4608
      %v4610 = vsel %vm370, %v4556, 0.0
      %v4611 = vadd.f32 %v4609, %v4610
      %v4612 = vsel %vm370, %v4557, 0.0
      %v4613 = vadd.f32 %v4611, %v4612
      %v4614 = vsel %vm370, %v4558, 0.0
      %v4615 = vadd.f32 %v4613, %v4614
      %v4616 = vsel %vm370, %v4559, 0.0
      %v4617 = vadd.f32 %v4615, %v4616
      %v4618 = vsel %vm370, %v4560, 0.0
      %v4619 = vadd.f32 %v4617, %v4618
      %v4620 = vsel %vm370, %v4561, 0.0
      %v4621 = vadd.f32 %v4619, %v4620
      %v4622 = vsel %vm370, %v4562, 0.0
      %v4623 = vadd.f32 %v4621, %v4622
      %v4624 = vsel %vm370, %v4563, 0.0
      %v4625 = vadd.f32 %v4623, %v4624
      %v4626 = vsel %vm370, %v4564, 0.0
      %v4627 = vadd.f32 %v4625, %v4626
      %v4628 = vsel %vm370, %v4565, 0.0
      %v4629 = vadd.f32 %v4627, %v4628
      %v4630 = vsel %vm370, %v4566, 0.0
      %v4631 = vadd.f32 %v4629, %v4630
      %v4632 = vsel %vm370, %v4567, 0.0
      %v4633 = vadd.f32 %v4631, %v4632
      %v4634 = vsel %vm370, %v4568, 0.0
      %v4635 = vadd.f32 %v4633, %v4634
      %v4636 = vsel %vm370, %v4569, 0.0
      %v4637 = vadd.f32 %v4635, %v4636
      %v4638 = vsel %vm370, %v4570, 0.0
      %v4639 = vadd.f32 %v4637, %v4638
      %v4640 = vsel %vm370, %v4571, 0.0
      %v4641 = vadd.f32 %v4639, %v4640
      %v4642 = vsel %vm370, %v4572, 0.0
      %v4643 = vadd.f32 %v4641, %v4642
      %v4644 = vrot.slane %v4643, 4
      %v4645 = vadd.f32 %v4643, %v4644
      %v4646 = vrot.slane %v4645, 2
      %v4647 = vadd.f32 %v4645, %v4646
      %v4648 = vrot.slane %v4647, 1
      %v4649 = vadd.f32 %v4647, %v4648
      %4650 = vst.msk [vmem:[%s244] sm:$0x1] %vm4535, %v4649
      %s4651 = smul.u32 36, %s17
      %p4652 = scmp.lt.s32.totalorder %s4651, 71
      %s4653 = scalar_select %p4652, %s4651, 71
      %s4654 = smul.addr %s4653, 4
      %s4655 = scalar_lea.vmem %s3, %s4654
      %p4656 = scmp.lt.s32.totalorder %s17, 1
      %s4657 = scalar_select %p4656, %s17, 1
      %s4658 = scalar_lea.vmem %s4, %s4657
      %p4659 = scmp.lt.s32.totalorder %s17, 1
      %s4660 = scalar_select %p4659, %s17, 1
      %s4661 = scalar_lea.vmem %s5, %s4660
      // Predicated region
      $region33: #{conv_bn_relu.2} parent=31 // pred_check
        %p4662 = pneg %p103
      $region34: #{conv_bn_relu.2} parent=31 // pred_check_branch
        %4664 = sbr.rel (%p4662) target = $region36
      $region35: #{conv_bn_relu.2} parent=31 // pred_region
        %s4665 = smul.u32 36, %s17
      $region36: #{conv_bn_relu.2} parent=31 // pred_fallthru
        _
      // Predicated region
      $region37: #{conv_bn_relu.2} parent=31 // pred_check
        %p4666 = pneg %p129
      $region38: #{conv_bn_relu.2} parent=31 // pred_check_branch
        %4668 = sbr.rel (%p4666) target = $region40
      $region39: #{conv_bn_relu.2} parent=31 // pred_region
        _
      $region40: #{conv_bn_relu.2} parent=31 // pred_fallthru
        _
      // Predicated region
      $region41: #{conv_bn_relu.2} parent=31 // pred_check
        %p4669 = pneg %p155
      $region42: #{conv_bn_relu.2} parent=31 // pred_check_branch
        %4671 = sbr.rel (%p4669) target = $region44
      $region43: #{conv_bn_relu.2} parent=31 // pred_region
        _
      $region44: #{conv_bn_relu.2} parent=31 // pred_fallthru
        _
    $region32: #{conv_bn_relu.2} parent=5 // pred_fallthru
      _
    %p4672 = scmp.le.s32.totalorder 2, %s12
    // Predicated region
    $region45: #{conv_bn_relu.2} parent=5 // pred_check
      %p4673 = pneg %p4672
    $region46: #{conv_bn_relu.2} parent=5 // pred_check_branch
      %4675 = sbr.rel (%p4673) target = $region48
    $region47: #{conv_bn_relu.2} parent=5 // pred_region
      %s4676 = ssub.s32 %s12, 2
      // Predicated region
      $region49: #{conv_bn_relu.2} parent=47 // pred_check
        %p4677 = pneg %p109
      $region50: #{conv_bn_relu.2} parent=47 // pred_check_branch
        %4679 = sbr.rel (%p4677) target = $region52
      $region51: #{conv_bn_relu.2} parent=47 // pred_region
        %s4680 = smul.u32 36, %s18
        %p4681 = scmp.lt.s32.totalorder %s4680, 71
        %s4682 = scalar_select %p4681, %s4680, 71
        %s4683 = smul.addr %s4682, 4
        %s4684 = scalar_lea.vmem %s3, %s4683
      $region52: #{conv_bn_relu.2} parent=47 // pred_fallthru
        _
      // Predicated region
      $region53: #{conv_bn_relu.2} parent=47 // pred_check
        %p4685 = pneg %p135
      $region54: #{conv_bn_relu.2} parent=47 // pred_check_branch
        %4687 = sbr.rel (%p4685) target = $region56
      $region55: #{conv_bn_relu.2} parent=47 // pred_region
        %p4688 = scmp.lt.s32.totalorder %s18, 1
        %s4689 = scalar_select %p4688, %s18, 1
        %s4690 = scalar_lea.vmem %s4, %s4689
      $region56: #{conv_bn_relu.2} parent=47 // pred_fallthru
        _
      // Predicated region
      $region57: #{conv_bn_relu.2} parent=47 // pred_check
        %p4691 = pneg %p161
      $region58: #{conv_bn_relu.2} parent=47 // pred_check_branch
        %4693 = sbr.rel (%p4691) target = $region60
      $region59: #{conv_bn_relu.2} parent=47 // pred_region
        %p4694 = scmp.lt.s32.totalorder %s18, 1
        %s4695 = scalar_select %p4694, %s18, 1
        %s4696 = scalar_lea.vmem %s5, %s4695
      $region60: #{conv_bn_relu.2} parent=47 // pred_fallthru
        _
    $region48: #{conv_bn_relu.2} parent=5 // pred_fallthru
      _
  $region6: #{conv_bn_relu.2} parent=0 // loop_footer
    %s16 = sadd.s32 1, %s12
  $region7: #{conv_bn_relu.2} parent=0 // loop_footer_branch
    %11 = sbr.rel target = $region3
  $region8: #{conv_bn_relu.2} parent=0 // loop_exit
    _

</llo_original>
